<compile_context>
chip_gen: v6e
topology: v6e:2x2x1
jax: 0.10.0
libtpu: 0.0.40
codegen_flags: <defaults>
</compile_context>

<pallas_src>
import functools

import jax
import jax.numpy as jnp
from jax.experimental import pallas as pl
from jax.experimental.pallas import tpu as pltpu


def _store_padded(pad_ref, img, ph, pw):
    """Write `img` into the interior of `pad_ref` and zero only the halo frame.

    pad_ref : VMEM ref of shape (H+2*ph, W+2*pw, C)
    img     : value of shape (H, W, C)
    """
    H, W, _ = img.shape
    Hp, Wp, C = pad_ref.shape
    dt = pad_ref.dtype
    if ph > 0:
        pad_ref[0:ph, :, :] = jnp.zeros((ph, Wp, C), dt)          # top rows
        pad_ref[ph + H:Hp, :, :] = jnp.zeros((ph, Wp, C), dt)     # bottom rows
    if pw > 0:
        pad_ref[ph:ph + H, 0:pw, :] = jnp.zeros((H, pw, C), dt)   # left cols
        pad_ref[ph:ph + H, pw + W:Wp, :] = jnp.zeros((H, pw, C), dt)  # right cols
    pad_ref[ph:ph + H, pw:pw + W, :] = img.astype(dt)             # interior, once


def _join_block_kernel(x_ref, w0_ref, b0_ref, w1t_ref, b1_ref, o_ref,
                       xpad_ref, ypad_ref, *, KH, KW):
    """Fused conv0(+bias+ReLU) -> conv1(+bias+ReLU) for one image of the batch.

    x_ref   : (1, H, W, C0)      unpadded NHWC input tile (channels on lanes)
    w0_ref  : (KH*KW*C0, C0)     conv0 weights, im2col layout
    b0_ref  : (1, C0)            conv0 bias
    w1t_ref : (C1, KH*KW*C0)     conv1 weights, transposed im2col layout
    b1_ref  : (C1, 1)            conv1 bias (column vector)
    o_ref   : (1, C1, H*W)       lane-dense output block (H*W on the lane axis)
    xpad_ref: VMEM (Hp, Wp, C0)  scratch: zero-padded input (in-kernel halo)
    ypad_ref: VMEM (Hp, Wp, C0)  scratch: zero-padded intermediate activation
    """
    _, H, W, C0 = x_ref.shape
    HW = o_ref.shape[2]
    ph, pw = KH // 2, KW // 2

    def im2col(pad_ref):
        # Build the (H*W, KH*KW*C0) patch matrix: one big-K operand feeding a
        # single MXU matmul (instead of KH*KW tiny K=C0 matmuls).  The static
        # Python loop is fully unrolled at trace time.
        cols = []
        for kh in range(KH):
            for kw in range(KW):
                cols.append(pad_ref[kh:kh + H, kw:kw + W, :].reshape(HW, C0))
        return jnp.concatenate(cols, axis=1)

    # ---- stage zero-padded input in VMEM (SAME halo handled in-kernel) -------
    _store_padded(xpad_ref, x_ref[0], ph, pw)

    # ---- conv0: one K=KH*KW*C0 matmul + bias + ReLU ---------------------------
    p0 = im2col(xpad_ref)                                         # (HW, 72)
    y0 = jnp.dot(p0, w0_ref[...], preferred_element_type=jnp.float32)
    y0 = jnp.maximum(y0 + b0_ref[...], 0.0)                       # (HW, C0)

    # ---- intermediate never leaves VMEM: re-pad it for conv1 -----------------
    _store_padded(ypad_ref, y0.reshape(H, W, C0), ph, pw)

    # ---- conv1: one matmul computed directly in (C1, HW) orientation so the --
    # ---- store to HBM is lane-dense (256 lanes) ------------------------------
    p1 = im2col(ypad_ref)                                         # (HW, 72)
    y1t = jax.lax.dot_general(
        w1t_ref[...], p1,
        dimension_numbers=(((1,), (1,)), ((), ())),               # contract K on both
        preferred_element_type=jnp.float32)                       # (C1, HW)
    y1t = jnp.maximum(y1t + b1_ref[...], 0.0)
    o_ref[0] = y1t.astype(o_ref.dtype)


def join_block_forward(params, x_nchw):
    """Matches JoinBlock.forward: x = conv1(conv0(x)).  Input/output NCHW."""
    w0, b0, w1, b1 = params["w0"], params["b0"], params["w1"], params["b1"]
    N, C0, H, W = x_nchw.shape
    KH, KW, _, _ = w0.shape
    C1 = w1.shape[-1]
    ph, pw = KH // 2, KW // 2
    Hp, Wp = H + 2 * ph, W + 2 * pw

    # One small layout transform on the way in (channels -> TPU lane axis).
    x_nhwc = jnp.transpose(x_nchw, (0, 2, 3, 1))

    # Host-side weight/bias re-layout: 2-D im2col matrices, no 4-D blocks in-kernel.
    w0_2d = w0.reshape(KH * KW * C0, C0)                    # (72, C0)
    b0_2d = b0.reshape(1, C0)
    w1t_2d = jnp.transpose(w1.reshape(KH * KW * C0, C1))    # (C1, 72)
    b1_2d = b1.reshape(C1, 1)

    kernel = functools.partial(_join_block_kernel, KH=KH, KW=KW)

    out = pl.pallas_call(
        kernel,
        out_shape=jax.ShapeDtypeStruct((N, C1, H * W), x_nchw.dtype),
        grid_spec=pltpu.PrefetchScalarGridSpec(
            num_scalar_prefetch=0,
            grid=(N,),                                      # one image per step
            in_specs=[
                pl.BlockSpec((1, H, W, C0), lambda n: (n, 0, 0, 0)),
                pl.BlockSpec((KH * KW * C0, C0), lambda n: (0, 0)),
                pl.BlockSpec((1, C0), lambda n: (0, 0)),
                pl.BlockSpec((C1, KH * KW * C0), lambda n: (0, 0)),
                pl.BlockSpec((C1, 1), lambda n: (0, 0)),
            ],
            out_specs=pl.BlockSpec((1, C1, H * W), lambda n: (n, 0, 0)),
            scratch_shapes=[
                pltpu.VMEM((Hp, Wp, C0), x_nchw.dtype),     # padded input
                pltpu.VMEM((Hp, Wp, C0), x_nchw.dtype),     # padded intermediate
            ],
        ),
        compiler_params=pltpu.CompilerParams(
            dimension_semantics=("parallel",)),             # both megacore TCs busy
    )(x_nhwc, w0_2d, b0_2d, w1t_2d, b1_2d)

    # (N, C1, H*W) -> (N, C1, H, W): contiguous (free) reshape straight to NCHW.
    return out.reshape(N, C1, H, W)


def init_join_block_params(key, features_out=4, depth=1, kernel_size=3):
    """JoinBlock: in1 = out0 = in0 = f * 2**d ; out1 = 2 * in1."""
    f, d, k = features_out, depth, kernel_size
    in0 = out0 = in1 = f * 2 ** d
    out1 = 2 * in1
    k0, k1, k2, k3 = jax.random.split(key, 4)
    scale0 = 1.0 / jnp.sqrt(in0 * k * k)
    scale1 = 1.0 / jnp.sqrt(in1 * k * k)
    return {
        "w0": jax.random.normal(k0, (k, k, in0, out0), jnp.float32) * scale0,
        "b0": jax.random.normal(k1, (out0,), jnp.float32) * scale0,
        "w1": jax.random.normal(k2, (k, k, in1, out1), jnp.float32) * scale1,
        "b1": jax.random.normal(k3, (out1,), jnp.float32) * scale1,
    }


def _reference_forward(params, x_nchw):
    """Pure-JAX reference (lax.conv) for correctness checking."""
    def conv_relu(x, w, b):
        y = jax.lax.conv_general_dilated(
            x, w, window_strides=(1, 1), padding="SAME",
            dimension_numbers=("NHWC", "HWIO", "NHWC"),
        )
        return jnp.maximum(y + b, 0.0)

    x = jnp.transpose(x_nchw, (0, 2, 3, 1))
    x = conv_relu(x, params["w0"], params["b0"])
    x = conv_relu(x, params["w1"], params["b1"])
    return jnp.transpose(x, (0, 3, 1, 2))


if __name__ == "__main__":
    key = jax.random.PRNGKey(0)
    kp, kx = jax.random.split(key)

    # features_out=4, depth=1  ->  in channels = 8, JoinBlock output = 16 channels.
    features_out, depth = 4, 1
    in_ch = features_out * 2 ** depth                       # 8
    params = init_join_block_params(kp, features_out, depth, kernel_size=3)

    x = jax.random.normal(kx, (2, in_ch, 16, 16), jnp.float32)   # NCHW like PyTorch

    out = jax.block_until_ready(join_block_forward(params, x))
    ref = _reference_forward(params, x)

    assert out.shape == (2, 2 * in_ch, 16, 16), out.shape
    assert jnp.allclose(out, ref, atol=2e-4, rtol=2e-4), "mismatch vs reference"

    print("KERNEL_OK")
</pallas_src>

<mosaic_0001>
module attributes {stable_mosaic.version = 11 : i64} {
  func.func @_join_block_kernel(%arg0: i32, %arg1: memref<1x16x16x8xf32, #tpu.memory_space<vmem>>, %arg2: memref<72x8xf32, #tpu.memory_space<vmem>>, %arg3: memref<1x8xf32, #tpu.memory_space<vmem>>, %arg4: memref<16x72xf32, #tpu.memory_space<vmem>>, %arg5: memref<16x1xf32, #tpu.memory_space<vmem>>, %arg6: memref<1x16x256xf32, #tpu.memory_space<vmem>>, %arg7: memref<18x18x8xf32, #tpu.memory_space<vmem>>, %arg8: memref<18x18x8xf32, #tpu.memory_space<vmem>>) attributes {dimension_semantics = [#tpu.dimension_semantics<parallel>], iteration_bounds = array<i64: 2>, scalar_prefetch = 0 : i64, scratch_operands = 2 : i64, tpu.core_type = #tpu.core_type<tc>, window_params = [{transform_indices = @transform_0, window_bounds = array<i64: 1, 16, 16, 8>}, {pipeline_mode = #tpu.pipeline_mode<synchronous>, transform_indices = @transform_1, window_bounds = array<i64: 72, 8>}, {pipeline_mode = #tpu.pipeline_mode<synchronous>, transform_indices = @transform_2, window_bounds = array<i64: 1, 8>}, {pipeline_mode = #tpu.pipeline_mode<synchronous>, transform_indices = @transform_3, window_bounds = array<i64: 16, 72>}, {pipeline_mode = #tpu.pipeline_mode<synchronous>, transform_indices = @transform_4, window_bounds = array<i64: 16, 1>}, {transform_indices = @transform_5, window_bounds = array<i64: 1, 16, 256>}]} {
    %c0 = arith.constant 0 : index
    %c0_0 = arith.constant 0 : index
    %c0_1 = arith.constant 0 : index
    %c0_2 = arith.constant 0 : index
    %0 = vector.load %arg1[%c0, %c0_0, %c0_1, %c0_2] : memref<1x16x16x8xf32, #tpu.memory_space<vmem>>, vector<1x16x16x8xf32>
    %1 = vector.shape_cast %0 : vector<1x16x16x8xf32> to vector<16x16x8xf32>
    %cst = arith.constant 0.000000e+00 : f32
    %2 = vector.broadcast %cst : f32 to vector<1x18x8xf32>
    %c0_3 = arith.constant 0 : index
    %c0_4 = arith.constant 0 : index
    %c0_5 = arith.constant 0 : index
    %3 = vector.load %arg7[%c0_3, %c0_4, %c0_5] : memref<18x18x8xf32, #tpu.memory_space<vmem>>, vector<1x18x8xf32>
    tpu.vector_store %arg7[%c0_3, %c0_4, %c0_5], %2 {strides = array<i32>} : memref<18x18x8xf32, #tpu.memory_space<vmem>>, vector<1x18x8xf32>,
    %cst_6 = arith.constant 0.000000e+00 : f32
    %4 = vector.broadcast %cst_6 : f32 to vector<1x18x8xf32>
    %c17 = arith.constant 17 : index
    %c0_7 = arith.constant 0 : index
    %c0_8 = arith.constant 0 : index
    %5 = vector.load %arg7[%c17, %c0_7, %c0_8] : memref<18x18x8xf32, #tpu.memory_space<vmem>>, vector<1x18x8xf32>
    tpu.vector_store %arg7[%c17, %c0_7, %c0_8], %4 {strides = array<i32>} : memref<18x18x8xf32, #tpu.memory_space<vmem>>, vector<1x18x8xf32>,
    %cst_9 = arith.constant 0.000000e+00 : f32
    %6 = vector.broadcast %cst_9 : f32 to vector<16x1x8xf32>
    %c1 = arith.constant 1 : index
    %c0_10 = arith.constant 0 : index
    %c0_11 = arith.constant 0 : index
    %7 = vector.load %arg7[%c1, %c0_10, %c0_11] : memref<18x18x8xf32, #tpu.memory_space<vmem>>, vector<16x1x8xf32>
    tpu.vector_store %arg7[%c1, %c0_10, %c0_11], %6 {strides = array<i32>} : memref<18x18x8xf32, #tpu.memory_space<vmem>>, vector<16x1x8xf32>,
    %cst_12 = arith.constant 0.000000e+00 : f32
    %8 = vector.broadcast %cst_12 : f32 to vector<16x1x8xf32>
    %c1_13 = arith.constant 1 : index
    %c17_14 = arith.constant 17 : index
    %c0_15 = arith.constant 0 : index
    %9 = vector.load %arg7[%c1_13, %c17_14, %c0_15] : memref<18x18x8xf32, #tpu.memory_space<vmem>>, vector<16x1x8xf32>
    tpu.vector_store %arg7[%c1_13, %c17_14, %c0_15], %8 {strides = array<i32>} : memref<18x18x8xf32, #tpu.memory_space<vmem>>, vector<16x1x8xf32>,
    %c1_16 = arith.constant 1 : index
    %c1_17 = arith.constant 1 : index
    %c0_18 = arith.constant 0 : index
    %10 = vector.load %arg7[%c1_16, %c1_17, %c0_18] : memref<18x18x8xf32, #tpu.memory_space<vmem>>, vector<16x16x8xf32>
    tpu.vector_store %arg7[%c1_16, %c1_17, %c0_18], %1 {strides = array<i32>} : memref<18x18x8xf32, #tpu.memory_space<vmem>>, vector<16x16x8xf32>,
    %c0_19 = arith.constant 0 : index
    %c0_20 = arith.constant 0 : index
    %c0_21 = arith.constant 0 : index
    %11 = vector.load %arg7[%c0_19, %c0_20, %c0_21] : memref<18x18x8xf32, #tpu.memory_space<vmem>>, vector<16x16x8xf32>
    %12 = vector.shape_cast %11 : vector<16x16x8xf32> to vector<256x8xf32>
    %c0_22 = arith.constant 0 : index
    %c1_23 = arith.constant 1 : index
    %c0_24 = arith.constant 0 : index
    %13 = vector.load %arg7[%c0_22, %c1_23, %c0_24] : memref<18x18x8xf32, #tpu.memory_space<vmem>>, vector<16x16x8xf32>
    %14 = vector.shape_cast %13 : vector<16x16x8xf32> to vector<256x8xf32>
    %c0_25 = arith.constant 0 : index
    %c2 = arith.constant 2 : index
    %c0_26 = arith.constant 0 : index
    %15 = vector.load %arg7[%c0_25, %c2, %c0_26] : memref<18x18x8xf32, #tpu.memory_space<vmem>>, vector<16x16x8xf32>
    %16 = vector.shape_cast %15 : vector<16x16x8xf32> to vector<256x8xf32>
    %c1_27 = arith.constant 1 : index
    %c0_28 = arith.constant 0 : index
    %c0_29 = arith.constant 0 : index
    %17 = vector.load %arg7[%c1_27, %c0_28, %c0_29] : memref<18x18x8xf32, #tpu.memory_space<vmem>>, vector<16x16x8xf32>
    %18 = vector.shape_cast %17 : vector<16x16x8xf32> to vector<256x8xf32>
    %c1_30 = arith.constant 1 : index
    %c1_31 = arith.constant 1 : index
    %c0_32 = arith.constant 0 : index
    %19 = vector.load %arg7[%c1_30, %c1_31, %c0_32] : memref<18x18x8xf32, #tpu.memory_space<vmem>>, vector<16x16x8xf32>
    %20 = vector.shape_cast %19 : vector<16x16x8xf32> to vector<256x8xf32>
    %c1_33 = arith.constant 1 : index
    %c2_34 = arith.constant 2 : index
    %c0_35 = arith.constant 0 : index
    %21 = vector.load %arg7[%c1_33, %c2_34, %c0_35] : memref<18x18x8xf32, #tpu.memory_space<vmem>>, vector<16x16x8xf32>
    %22 = vector.shape_cast %21 : vector<16x16x8xf32> to vector<256x8xf32>
    %c2_36 = arith.constant 2 : index
    %c0_37 = arith.constant 0 : index
    %c0_38 = arith.constant 0 : index
    %23 = vector.load %arg7[%c2_36, %c0_37, %c0_38] : memref<18x18x8xf32, #tpu.memory_space<vmem>>, vector<16x16x8xf32>
    %24 = vector.shape_cast %23 : vector<16x16x8xf32> to vector<256x8xf32>
    %c2_39 = arith.constant 2 : index
    %c1_40 = arith.constant 1 : index
    %c0_41 = arith.constant 0 : index
    %25 = vector.load %arg7[%c2_39, %c1_40, %c0_41] : memref<18x18x8xf32, #tpu.memory_space<vmem>>, vector<16x16x8xf32>
    %26 = vector.shape_cast %25 : vector<16x16x8xf32> to vector<256x8xf32>
    %c2_42 = arith.constant 2 : index
    %c2_43 = arith.constant 2 : index
    %c0_44 = arith.constant 0 : index
    %27 = vector.load %arg7[%c2_42, %c2_43, %c0_44] : memref<18x18x8xf32, #tpu.memory_space<vmem>>, vector<16x16x8xf32>
    %28 = vector.shape_cast %27 : vector<16x16x8xf32> to vector<256x8xf32>
    %29 = tpu.concatenate %12, %14, %16, %18, %20, %22, %24, %26, %28 in 1 : vector<256x8xf32>, vector<256x8xf32>, vector<256x8xf32>, vector<256x8xf32>, vector<256x8xf32>, vector<256x8xf32>, vector<256x8xf32>, vector<256x8xf32>, vector<256x8xf32> -> vector<256x72xf32>
    %c0_45 = arith.constant 0 : index
    %c0_46 = arith.constant 0 : index
    %30 = vector.load %arg2[%c0_45, %c0_46] : memref<72x8xf32, #tpu.memory_space<vmem>>, vector<72x8xf32>
    %cst_47 = arith.constant dense<0.000000e+00> : vector<256x8xf32>
    %31 = tpu.matmul %29, %30, %cst_47 {dimension_numbers = #tpu.dot_dimension_numbers<[1], [0], [0], [1], [0, 0, 1, 1], [], []>} : vector<256x72xf32>, vector<72x8xf32>, vector<256x8xf32> -> vector<256x8xf32>
    %c0_48 = arith.constant 0 : index
    %c0_49 = arith.constant 0 : index
    %32 = vector.load %arg3[%c0_48, %c0_49] : memref<1x8xf32, #tpu.memory_space<vmem>>, vector<1x8xf32>
    %33 = vector.broadcast %32 : vector<1x8xf32> to vector<256x8xf32>
    %34 = arith.addf %31, %33 : vector<256x8xf32>
    %cst_50 = arith.constant 0.000000e+00 : f32
    %35 = vector.broadcast %cst_50 : f32 to vector<256x8xf32>
    %36 = arith.maximumf %34, %35 : vector<256x8xf32>
    %37 = vector.shape_cast %36 : vector<256x8xf32> to vector<16x16x8xf32>
    %cst_51 = arith.constant 0.000000e+00 : f32
    %38 = vector.broadcast %cst_51 : f32 to vector<1x18x8xf32>
    %c0_52 = arith.constant 0 : index
    %c0_53 = arith.constant 0 : index
    %c0_54 = arith.constant 0 : index
    %39 = vector.load %arg8[%c0_52, %c0_53, %c0_54] : memref<18x18x8xf32, #tpu.memory_space<vmem>>, vector<1x18x8xf32>
    tpu.vector_store %arg8[%c0_52, %c0_53, %c0_54], %38 {strides = array<i32>} : memref<18x18x8xf32, #tpu.memory_space<vmem>>, vector<1x18x8xf32>,
    %cst_55 = arith.constant 0.000000e+00 : f32
    %40 = vector.broadcast %cst_55 : f32 to vector<1x18x8xf32>
    %c17_56 = arith.constant 17 : index
    %c0_57 = arith.constant 0 : index
    %c0_58 = arith.constant 0 : index
    %41 = vector.load %arg8[%c17_56, %c0_57, %c0_58] : memref<18x18x8xf32, #tpu.memory_space<vmem>>, vector<1x18x8xf32>
    tpu.vector_store %arg8[%c17_56, %c0_57, %c0_58], %40 {strides = array<i32>} : memref<18x18x8xf32, #tpu.memory_space<vmem>>, vector<1x18x8xf32>,
    %cst_59 = arith.constant 0.000000e+00 : f32
    %42 = vector.broadcast %cst_59 : f32 to vector<16x1x8xf32>
    %c1_60 = arith.constant 1 : index
    %c0_61 = arith.constant 0 : index
    %c0_62 = arith.constant 0 : index
    %43 = vector.load %arg8[%c1_60, %c0_61, %c0_62] : memref<18x18x8xf32, #tpu.memory_space<vmem>>, vector<16x1x8xf32>
    tpu.vector_store %arg8[%c1_60, %c0_61, %c0_62], %42 {strides = array<i32>} : memref<18x18x8xf32, #tpu.memory_space<vmem>>, vector<16x1x8xf32>,
    %cst_63 = arith.constant 0.000000e+00 : f32
    %44 = vector.broadcast %cst_63 : f32 to vector<16x1x8xf32>
    %c1_64 = arith.constant 1 : index
    %c17_65 = arith.constant 17 : index
    %c0_66 = arith.constant 0 : index
    %45 = vector.load %arg8[%c1_64, %c17_65, %c0_66] : memref<18x18x8xf32, #tpu.memory_space<vmem>>, vector<16x1x8xf32>
    tpu.vector_store %arg8[%c1_64, %c17_65, %c0_66], %44 {strides = array<i32>} : memref<18x18x8xf32, #tpu.memory_space<vmem>>, vector<16x1x8xf32>,
    %c1_67 = arith.constant 1 : index
    %c1_68 = arith.constant 1 : index
    %c0_69 = arith.constant 0 : index
    %46 = vector.load %arg8[%c1_67, %c1_68, %c0_69] : memref<18x18x8xf32, #tpu.memory_space<vmem>>, vector<16x16x8xf32>
    tpu.vector_store %arg8[%c1_67, %c1_68, %c0_69], %37 {strides = array<i32>} : memref<18x18x8xf32, #tpu.memory_space<vmem>>, vector<16x16x8xf32>,
    %c0_70 = arith.constant 0 : index
    %c0_71 = arith.constant 0 : index
    %c0_72 = arith.constant 0 : index
    %47 = vector.load %arg8[%c0_70, %c0_71, %c0_72] : memref<18x18x8xf32, #tpu.memory_space<vmem>>, vector<16x16x8xf32>
    %48 = vector.shape_cast %47 : vector<16x16x8xf32> to vector<256x8xf32>
    %c0_73 = arith.constant 0 : index
    %c1_74 = arith.constant 1 : index
    %c0_75 = arith.constant 0 : index
    %49 = vector.load %arg8[%c0_73, %c1_74, %c0_75] : memref<18x18x8xf32, #tpu.memory_space<vmem>>, vector<16x16x8xf32>
    %50 = vector.shape_cast %49 : vector<16x16x8xf32> to vector<256x8xf32>
    %c0_76 = arith.constant 0 : index
    %c2_77 = arith.constant 2 : index
    %c0_78 = arith.constant 0 : index
    %51 = vector.load %arg8[%c0_76, %c2_77, %c0_78] : memref<18x18x8xf32, #tpu.memory_space<vmem>>, vector<16x16x8xf32>
    %52 = vector.shape_cast %51 : vector<16x16x8xf32> to vector<256x8xf32>
    %c1_79 = arith.constant 1 : index
    %c0_80 = arith.constant 0 : index
    %c0_81 = arith.constant 0 : index
    %53 = vector.load %arg8[%c1_79, %c0_80, %c0_81] : memref<18x18x8xf32, #tpu.memory_space<vmem>>, vector<16x16x8xf32>
    %54 = vector.shape_cast %53 : vector<16x16x8xf32> to vector<256x8xf32>
    %c1_82 = arith.constant 1 : index
    %c1_83 = arith.constant 1 : index
    %c0_84 = arith.constant 0 : index
    %55 = vector.load %arg8[%c1_82, %c1_83, %c0_84] : memref<18x18x8xf32, #tpu.memory_space<vmem>>, vector<16x16x8xf32>
    %56 = vector.shape_cast %55 : vector<16x16x8xf32> to vector<256x8xf32>
    %c1_85 = arith.constant 1 : index
    %c2_86 = arith.constant 2 : index
    %c0_87 = arith.constant 0 : index
    %57 = vector.load %arg8[%c1_85, %c2_86, %c0_87] : memref<18x18x8xf32, #tpu.memory_space<vmem>>, vector<16x16x8xf32>
    %58 = vector.shape_cast %57 : vector<16x16x8xf32> to vector<256x8xf32>
    %c2_88 = arith.constant 2 : index
    %c0_89 = arith.constant 0 : index
    %c0_90 = arith.constant 0 : index
    %59 = vector.load %arg8[%c2_88, %c0_89, %c0_90] : memref<18x18x8xf32, #tpu.memory_space<vmem>>, vector<16x16x8xf32>
    %60 = vector.shape_cast %59 : vector<16x16x8xf32> to vector<256x8xf32>
    %c2_91 = arith.constant 2 : index
    %c1_92 = arith.constant 1 : index
    %c0_93 = arith.constant 0 : index
    %61 = vector.load %arg8[%c2_91, %c1_92, %c0_93] : memref<18x18x8xf32, #tpu.memory_space<vmem>>, vector<16x16x8xf32>
    %62 = vector.shape_cast %61 : vector<16x16x8xf32> to vector<256x8xf32>
    %c2_94 = arith.constant 2 : index
    %c2_95 = arith.constant 2 : index
    %c0_96 = arith.constant 0 : index
    %63 = vector.load %arg8[%c2_94, %c2_95, %c0_96] : memref<18x18x8xf32, #tpu.memory_space<vmem>>, vector<16x16x8xf32>
    %64 = vector.shape_cast %63 : vector<16x16x8xf32> to vector<256x8xf32>
    %65 = tpu.concatenate %48, %50, %52, %54, %56, %58, %60, %62, %64 in 1 : vector<256x8xf32>, vector<256x8xf32>, vector<256x8xf32>, vector<256x8xf32>, vector<256x8xf32>, vector<256x8xf32>, vector<256x8xf32>, vector<256x8xf32>, vector<256x8xf32> -> vector<256x72xf32>
    %c0_97 = arith.constant 0 : index
    %c0_98 = arith.constant 0 : index
    %66 = vector.load %arg4[%c0_97, %c0_98] : memref<16x72xf32, #tpu.memory_space<vmem>>, vector<16x72xf32>
    %cst_99 = arith.constant dense<0.000000e+00> : vector<16x256xf32>
    %67 = tpu.matmul %66, %65, %cst_99 {dimension_numbers = #tpu.dot_dimension_numbers<[1], [1], [0], [0], [0, 0, 1, 0], [], []>} : vector<16x72xf32>, vector<256x72xf32>, vector<16x256xf32> -> vector<16x256xf32>
    %c0_100 = arith.constant 0 : index
    %c0_101 = arith.constant 0 : index
    %68 = vector.load %arg5[%c0_100, %c0_101] : memref<16x1xf32, #tpu.memory_space<vmem>>, vector<16x1xf32>
    %69 = vector.broadcast %68 : vector<16x1xf32> to vector<16x256xf32>
    %70 = arith.addf %67, %69 : vector<16x256xf32>
    %cst_102 = arith.constant 0.000000e+00 : f32
    %71 = vector.broadcast %cst_102 : f32 to vector<16x256xf32>
    %72 = arith.maximumf %70, %71 : vector<16x256xf32>
    %c0_103 = arith.constant 0 : index
    %c0_104 = arith.constant 0 : index
    %c0_105 = arith.constant 0 : index
    %73 = vector.load %arg6[%c0_103, %c0_104, %c0_105] : memref<1x16x256xf32, #tpu.memory_space<vmem>>, vector<1x16x256xf32>
    %74 = vector.shape_cast %73 : vector<1x16x256xf32> to vector<16x256xf32>
    %75 = vector.shape_cast %72 : vector<16x256xf32> to vector<1x16x256xf32>
    tpu.vector_store %arg6[%c0_103, %c0_104, %c0_105], %75 {strides = array<i32>} : memref<1x16x256xf32, #tpu.memory_space<vmem>>, vector<1x16x256xf32>,
    return
  }
  func.func @transform_0(%arg0: i32) -> (i32, i32, i32, i32) {
    %c0_i32 = arith.constant 0 : i32
    %c0_i32_0 = arith.constant 0 : i32
    %c0_i32_1 = arith.constant 0 : i32
    %c0_i32_2 = arith.constant 0 : i32
    return %arg0, %c0_i32, %c0_i32_0, %c0_i32_1 : i32, i32, i32, i32
  }
  func.func @transform_1(%arg0: i32) -> (i32, i32) {
    %c0_i32 = arith.constant 0 : i32
    %c0_i32_0 = arith.constant 0 : i32
    %c0_i32_1 = arith.constant 0 : i32
    return %c0_i32, %c0_i32_0 : i32, i32
  }
  func.func @transform_2(%arg0: i32) -> (i32, i32) {
    %c0_i32 = arith.constant 0 : i32
    %c0_i32_0 = arith.constant 0 : i32
    %c0_i32_1 = arith.constant 0 : i32
    return %c0_i32, %c0_i32_0 : i32, i32
  }
  func.func @transform_3(%arg0: i32) -> (i32, i32) {
    %c0_i32 = arith.constant 0 : i32
    %c0_i32_0 = arith.constant 0 : i32
    %c0_i32_1 = arith.constant 0 : i32
    return %c0_i32, %c0_i32_0 : i32, i32
  }
  func.func @transform_4(%arg0: i32) -> (i32, i32) {
    %c0_i32 = arith.constant 0 : i32
    %c0_i32_0 = arith.constant 0 : i32
    %c0_i32_1 = arith.constant 0 : i32
    return %c0_i32, %c0_i32_0 : i32, i32
  }
  func.func @transform_5(%arg0: i32) -> (i32, i32, i32) {
    %c0_i32 = arith.constant 0 : i32
    %c0_i32_0 = arith.constant 0 : i32
    %c0_i32_1 = arith.constant 0 : i32
    return %arg0, %c0_i32, %c0_i32_0 : i32, i32, i32
  }
}

</mosaic_0001>

<llo_original>
// kernel: tpu_custom_call.1
$region0: #{tpu_custom_call.1}
  #allocation0 [shape = 'u32[]', space=smem, size = 0x4, offset = 0x4, fixed_abs, tag = 'smem constant byte address 0x4 - core index']
  #allocation1 [shape = 'u32[144,128]{1,0:T(1,128)}', space=vmem, size = 0x12000, scoped, tag = 'internal scratch']
  #allocation2 [shape = 'f32[18,18,8]{2,1,0:T(8,128)}', space=vmem, size = 0x36000, scoped, tag = 'scratch operand']
  #allocation3 [shape = 'f32[18,18,8]{2,1,0:T(8,128)}', space=vmem, size = 0x36000, scoped, tag = 'scratch operand']
  %s0 = inlined_call_operand.vmem [shape: f32[2,16,16,8], index: 0, kind: input, shape index: {}]
  %s1 = inlined_call_operand.vmem [shape: f32[72,8], index: 1, kind: input, shape index: {}]
  %s2 = inlined_call_operand.vmem [shape: f32[1,8], index: 2, kind: input, shape index: {}]
  %s3 = inlined_call_operand.vmem [shape: f32[16,72], index: 3, kind: input, shape index: {}]
  %s4 = inlined_call_operand.vmem [shape: f32[16,1], index: 4, kind: input, shape index: {}]
  %s5 = inlined_call_operand.hbm [shape: f32[2,16,256], index: 5, kind: output, shape index: {}]
  %s6 = sld [smem:[#allocation0]]
  $region53: #{tpu_custom_call.1} parent=0
    _
  %s8 = ssub.s32 1, %s6
  %s9 = scalar_select 0, %s8, %s6
  $region1: #{tpu_custom_call.1} parent=0
    #allocation4 [shape = 'u8[32768]{0}', space=vmem, size = 0x8000, scoped, tag = 'output window, operand 0']
    #allocation5 [shape = 's32[2]{0}', space=sflag, size = 0x8, scoped, tag = 'scoped memory for tpu_custom_call.1']
    %10 = vsyncpa [#allocation5], 0
    %s11 = scalar_lea.sflag [#allocation5], 1
    %12 = vsyncpa %s11, 0
    loop: start=0, step=1, limit=4
    $region2: #{tpu_custom_call.1} parent=1 // loop_pre_header
      _
    $region3: #{tpu_custom_call.1} parent=1 // loop_header
      %s14 = sphi 0, %s18
      %p15 = scmp.ge.s32.totalorder %s14, 4
      %s24 = sphi 0, %s26
      %s27 = sphi 0, %s24
      %s28 = sphi 0, %s27
      %s44 = sphi 0, %s28
      %s48 = sphi 0, %s48
      %s50 = sphi 0, %s48
      %s51 = sphi 0, %s50
      %s65 = sphi 0, %s51
      %s69 = sphi 0, %s69
      %s71 = sphi 0, %s69
      %s72 = sphi 0, %s71
      %s86 = sphi 0, %s72
      %s90 = sphi 0, %s90
      %s92 = sphi 0, %s90
      %s93 = sphi 0, %s92
      %s107 = sphi 0, %s93
      %s111 = sphi 0, %s111
      %s113 = sphi 0, %s111
      %s114 = sphi 0, %s113
      %s128 = sphi 0, %s114
      %s134 = sphi 0, %s136
      %s137 = sphi 0, %s134
      %s138 = sphi 0, %s137
      %s154 = sphi 0, %s138
    $region4: #{tpu_custom_call.1} parent=1 // loop_header_branch
      %17 = sbr.rel (%p15) target = $region8
    $region5: #{tpu_custom_call.1} parent=1 // loop_body
      %s19 = ssub.s32 %s14, 1
      %s20 = ssub.s32 %s14, 2
      %s21 = sadd.s32 %s14, 1
      %s22 = ssub.s32 %s14, %s21
      %p23 = scmp.eq.s32.totalorder %s22, 0
      %s25 = sadd.s32 %s24, 1
      %s26 = scalar_select %p23, %s24, %s25
      %p29 = pneg %p23
      %p30 = scmp.eq.s32.totalorder %s14, 1
      %p31 = por %p29, %p30
      %p32 = scmp.ne.s32.totalorder %s24, %s27
      %p33 = scmp.eq.s32.totalorder %s14, 0
      %p34 = por %p32, %p33
      %p35 = scmp.ne.s32.totalorder %s24, %s27
      %p36 = scmp.eq.s32.totalorder %s19, 1
      %p37 = por %p35, %p36
      %p38 = scmp.ne.s32.totalorder %s27, %s28
      %p39 = scmp.eq.s32.totalorder %s19, 0
      %p40 = por %p38, %p39
      %p41 = scmp.ne.s32.totalorder %s27, %s28
      %p42 = scmp.eq.s32.totalorder %s20, 1
      %p43 = por %p41, %p42
      %p45 = scmp.ne.s32.totalorder %s28, %s44
      %p46 = scmp.eq.s32.totalorder %s20, 0
      %p47 = por %p45, %p46
      %s49 = sadd.s32 %s48, 1
      %p52 = scmp.eq.s32.totalorder %s14, 1
      %p53 = scmp.ne.s32.totalorder %s48, %s50
      %p54 = scmp.eq.s32.totalorder %s14, 0
      %p55 = por %p53, %p54
      %p56 = scmp.ne.s32.totalorder %s48, %s50
      %p57 = scmp.eq.s32.totalorder %s19, 1
      %p58 = por %p56, %p57
      %p59 = scmp.ne.s32.totalorder %s50, %s51
      %p60 = scmp.eq.s32.totalorder %s19, 0
      %p61 = por %p59, %p60
      %p62 = scmp.ne.s32.totalorder %s50, %s51
      %p63 = scmp.eq.s32.totalorder %s20, 1
      %p64 = por %p62, %p63
      %p66 = scmp.ne.s32.totalorder %s51, %s65
      %p67 = scmp.eq.s32.totalorder %s20, 0
      %p68 = por %p66, %p67
      %s70 = sadd.s32 %s69, 1
      %p73 = scmp.eq.s32.totalorder %s14, 1
      %p74 = scmp.ne.s32.totalorder %s69, %s71
      %p75 = scmp.eq.s32.totalorder %s14, 0
      %p76 = por %p74, %p75
      %p77 = scmp.ne.s32.totalorder %s69, %s71
      %p78 = scmp.eq.s32.totalorder %s19, 1
      %p79 = por %p77, %p78
      %p80 = scmp.ne.s32.totalorder %s71, %s72
      %p81 = scmp.eq.s32.totalorder %s19, 0
      %p82 = por %p80, %p81
      %p83 = scmp.ne.s32.totalorder %s71, %s72
      %p84 = scmp.eq.s32.totalorder %s20, 1
      %p85 = por %p83, %p84
      %p87 = scmp.ne.s32.totalorder %s72, %s86
      %p88 = scmp.eq.s32.totalorder %s20, 0
      %p89 = por %p87, %p88
      %s91 = sadd.s32 %s90, 1
      %p94 = scmp.eq.s32.totalorder %s14, 1
      %p95 = scmp.ne.s32.totalorder %s90, %s92
      %p96 = scmp.eq.s32.totalorder %s14, 0
      %p97 = por %p95, %p96
      %p98 = scmp.ne.s32.totalorder %s90, %s92
      %p99 = scmp.eq.s32.totalorder %s19, 1
      %p100 = por %p98, %p99
      %p101 = scmp.ne.s32.totalorder %s92, %s93
      %p102 = scmp.eq.s32.totalorder %s19, 0
      %p103 = por %p101, %p102
      %p104 = scmp.ne.s32.totalorder %s92, %s93
      %p105 = scmp.eq.s32.totalorder %s20, 1
      %p106 = por %p104, %p105
      %p108 = scmp.ne.s32.totalorder %s93, %s107
      %p109 = scmp.eq.s32.totalorder %s20, 0
      %p110 = por %p108, %p109
      %s112 = sadd.s32 %s111, 1
      %p115 = scmp.eq.s32.totalorder %s14, 1
      %p116 = scmp.ne.s32.totalorder %s111, %s113
      %p117 = scmp.eq.s32.totalorder %s14, 0
      %p118 = por %p116, %p117
      %p119 = scmp.ne.s32.totalorder %s111, %s113
      %p120 = scmp.eq.s32.totalorder %s19, 1
      %p121 = por %p119, %p120
      %p122 = scmp.ne.s32.totalorder %s113, %s114
      %p123 = scmp.eq.s32.totalorder %s19, 0
      %p124 = por %p122, %p123
      %p125 = scmp.ne.s32.totalorder %s113, %s114
      %p126 = scmp.eq.s32.totalorder %s20, 1
      %p127 = por %p125, %p126
      %p129 = scmp.ne.s32.totalorder %s114, %s128
      %p130 = scmp.eq.s32.totalorder %s20, 0
      %p131 = por %p129, %p130
      %s132 = ssub.s32 %s14, %s21
      %p133 = scmp.eq.s32.totalorder %s132, 0
      %s135 = sadd.s32 %s134, 1
      %s136 = scalar_select %p133, %s134, %s135
      %p139 = pneg %p133
      %p140 = scmp.eq.s32.totalorder %s14, 1
      %p141 = por %p139, %p140
      %p142 = scmp.ne.s32.totalorder %s134, %s137
      %p143 = scmp.eq.s32.totalorder %s14, 0
      %p144 = por %p142, %p143
      %p145 = scmp.ne.s32.totalorder %s134, %s137
      %p146 = scmp.eq.s32.totalorder %s19, 1
      %p147 = por %p145, %p146
      %p148 = scmp.ne.s32.totalorder %s137, %s138
      %p149 = scmp.eq.s32.totalorder %s19, 0
      %p150 = por %p148, %p149
      %p151 = scmp.ne.s32.totalorder %s137, %s138
      %p152 = scmp.eq.s32.totalorder %s20, 1
      %p153 = por %p151, %p152
      %p155 = scmp.ne.s32.totalorder %s138, %s154
      %p156 = scmp.eq.s32.totalorder %s20, 0
      %p157 = por %p155, %p156
      %p158 = scmp.le.s32.totalorder 1, %s14
      %p159 = scmp.lt.s32.totalorder %s14, 3
      %p160 = pnand %p158, %p159
      %p161 = pneg %p160
      // Predicated region
      $region9: #{tpu_custom_call.1} parent=5 // pred_check
        _
      $region10: #{tpu_custom_call.1} parent=5 // pred_check_branch
        %163 = sbr.rel (%p160) target = $region12
      $region11: #{tpu_custom_call.1} parent=5 // pred_region
        %s164 = ssub.s32 %s14, 1
        // Predicated region
        $region13: #{tpu_custom_call.1} parent=11 // pred_check
          %p165 = pneg %p61
        $region14: #{tpu_custom_call.1} parent=11 // pred_check_branch
          %167 = sbr.rel (%p165) target = $region16
        $region15: #{tpu_custom_call.1} parent=11 // pred_region
          _
        $region16: #{tpu_custom_call.1} parent=11 // pred_fallthru
          _
        // Predicated region
        $region17: #{tpu_custom_call.1} parent=11 // pred_check
          %p168 = pneg %p82
        $region18: #{tpu_custom_call.1} parent=11 // pred_check_branch
          %170 = sbr.rel (%p168) target = $region20
        $region19: #{tpu_custom_call.1} parent=11 // pred_region
          _
        $region20: #{tpu_custom_call.1} parent=11 // pred_fallthru
          _
        // Predicated region
        $region21: #{tpu_custom_call.1} parent=11 // pred_check
          %p171 = pneg %p103
        $region22: #{tpu_custom_call.1} parent=11 // pred_check_branch
          %173 = sbr.rel (%p171) target = $region24
        $region23: #{tpu_custom_call.1} parent=11 // pred_region
          _
        $region24: #{tpu_custom_call.1} parent=11 // pred_fallthru
          _
        // Predicated region
        $region25: #{tpu_custom_call.1} parent=11 // pred_check
          %p174 = pneg %p124
        $region26: #{tpu_custom_call.1} parent=11 // pred_check_branch
          %176 = sbr.rel (%p174) target = $region28
        $region27: #{tpu_custom_call.1} parent=11 // pred_region
          _
        $region28: #{tpu_custom_call.1} parent=11 // pred_fallthru
          _
      $region12: #{tpu_custom_call.1} parent=5 // pred_fallthru
        _
      %p177 = scmp.lt.s32.totalorder %s14, 2
      // Predicated region
      $region29: #{tpu_custom_call.1} parent=5 // pred_check
        %p178 = pneg %p177
      $region30: #{tpu_custom_call.1} parent=5 // pred_check_branch
        %180 = sbr.rel (%p178) target = $region32
      $region31: #{tpu_custom_call.1} parent=5 // pred_region
        // Predicated region
        $region33: #{tpu_custom_call.1} parent=31 // pred_check
          %p181 = pneg %p34
        $region34: #{tpu_custom_call.1} parent=31 // pred_check_branch
          %183 = sbr.rel (%p181) target = $region36
        $region35: #{tpu_custom_call.1} parent=31 // pred_region
          %p184 = scmp.lt.s32.totalorder %s14, 1
          %s185 = scalar_select %p184, %s14, 1
          %s186 = smul.addr %s185, 32
          %s187 = smul.addr %s186, 8
          %s188 = scalar_lea.vmem %s0, %s187
        $region36: #{tpu_custom_call.1} parent=31 // pred_fallthru
          _
      $region32: #{tpu_custom_call.1} parent=5 // pred_fallthru
        _
      %p189 = scmp.le.s32.totalorder 1, %s14
      %p190 = scmp.lt.s32.totalorder %s14, 3
      %p191 = pnand %p189, %p190
      %p192 = pneg %p191
      // Predicated region
      $region37: #{tpu_custom_call.1} parent=5 // pred_check
        _
      $region38: #{tpu_custom_call.1} parent=5 // pred_check_branch
        %194 = sbr.rel (%p191) target = $region40
      $region39: #{tpu_custom_call.1} parent=5 // pred_region
        %s195 = ssub.s32 %s14, 1
        %p196 = scmp.lt.s32.totalorder %s19, 1
        %s197 = scalar_select %p196, %s19, 1
        %s198 = smul.addr %s197, 32
        %s199 = smul.addr %s198, 8
        %s200 = scalar_lea.vmem %s0, %s199
        %p201 = pneg %p40
        %p202 = pneg %p37
        %p203 = pneg %p61
        %p204 = pneg %p58
        %p205 = pneg %p82
        %p206 = pneg %p79
        %p207 = pneg %p103
        %p208 = pneg %p100
        %p209 = pneg %p124
        %p210 = pneg %p121
        %p211 = pneg %p150
        %p212 = pneg %p147
        %s213 = sand.u32 %s137, 1
        %s214 = scalar_lea.sflag [#allocation5], %s213
        %s215 = sand.u32 %s137, 1
        %s216 = smul.addr %s215, 32
        %s217 = scalar_lea.vmem [#allocation4], %s216
        %p218 = scmp.lt.s32.totalorder %s19, 1
        %s219 = scalar_select %p218, %s19, 1
        %s220 = smul.addr %s219, 32
        %s221 = smul.addr %s220, 8
        %s222 = scalar_lea.vmem %s0, %s221
        %v223 = vld [vmem:[%s222] sm:$0xff]
        %v224 = vld [vmem:[%s222 + $0x8] sm:$0xff]
        %v225 = vld [vmem:[%s222 + $0x10] sm:$0xff]
        %v226 = vld [vmem:[%s222 + $0x18] sm:$0xff]
        %v227 = vld [vmem:[%s222 + $0x20] sm:$0xff]
        %v228 = vld [vmem:[%s222 + $0x28] sm:$0xff]
        %v229 = vld [vmem:[%s222 + $0x30] sm:$0xff]
        %v230 = vld [vmem:[%s222 + $0x38] sm:$0xff]
        %v231 = vld [vmem:[%s222 + $0x40] sm:$0xff]
        %v232 = vld [vmem:[%s222 + $0x48] sm:$0xff]
        %v233 = vld [vmem:[%s222 + $0x50] sm:$0xff]
        %v234 = vld [vmem:[%s222 + $0x58] sm:$0xff]
        %v235 = vld [vmem:[%s222 + $0x60] sm:$0xff]
        %v236 = vld [vmem:[%s222 + $0x68] sm:$0xff]
        %v237 = vld [vmem:[%s222 + $0x70] sm:$0xff]
        %v238 = vld [vmem:[%s222 + $0x78] sm:$0xff]
        %v239 = vld [vmem:[%s222 + $0x80] sm:$0xff]
        %v240 = vld [vmem:[%s222 + $0x88] sm:$0xff]
        %v241 = vld [vmem:[%s222 + $0x90] sm:$0xff]
        %v242 = vld [vmem:[%s222 + $0x98] sm:$0xff]
        %v243 = vld [vmem:[%s222 + $0xa0] sm:$0xff]
        %v244 = vld [vmem:[%s222 + $0xa8] sm:$0xff]
        %v245 = vld [vmem:[%s222 + $0xb0] sm:$0xff]
        %v246 = vld [vmem:[%s222 + $0xb8] sm:$0xff]
        %v247 = vld [vmem:[%s222 + $0xc0] sm:$0xff]
        %v248 = vld [vmem:[%s222 + $0xc8] sm:$0xff]
        %v249 = vld [vmem:[%s222 + $0xd0] sm:$0xff]
        %v250 = vld [vmem:[%s222 + $0xd8] sm:$0xff]
        %v251 = vld [vmem:[%s222 + $0xe0] sm:$0xff]
        %v252 = vld [vmem:[%s222 + $0xe8] sm:$0xff]
        %v253 = vld [vmem:[%s222 + $0xf0] sm:$0xff]
        %v254 = vld [vmem:[%s222 + $0xf8] sm:$0xff]
        %vm255 = vcmask 64512
        %256 = vst.msk [vmem:[#allocation2] sm:$0xff] %vm255, 0.0
        %257 = vst.msk [vmem:[#allocation2 + $0x8] sm:$0xff] %vm255, 0.0
        %vm258 = vcmask 58368
        %259 = vst.msk [vmem:[#allocation2 + $0x10] sm:$0x3] %vm258, 0.0
        %s260 = scalar_lea.vmem [#allocation2], 408
        %261 = vst.msk [vmem:[%s260] sm:$0xff] %vm255, 0.0
        %262 = vst.msk [vmem:[%s260 + $0x8] sm:$0xff] %vm255, 0.0
        %263 = vst.msk [vmem:[%s260 + $0x10] sm:$0x3] %vm258, 0.0
        %s264 = scalar_lea.vmem [#allocation2], 24
        %vm265 = vcmask 57344
        %266 = vst.msk [vmem:[%s264] sm:$0x1] %vm265, 0.0
        %267 = vst.msk [vmem:[%s264 + $0x18] sm:$0x1] %vm265, 0.0
        %268 = vst.msk [vmem:[%s264 + $0x30] sm:$0x1] %vm265, 0.0
        %269 = vst.msk [vmem:[%s264 + $0x48] sm:$0x1] %vm265, 0.0
        %270 = vst.msk [vmem:[%s264 + $0x60] sm:$0x1] %vm265, 0.0
        %271 = vst.msk [vmem:[%s264 + $0x78] sm:$0x1] %vm265, 0.0
        %272 = vst.msk [vmem:[%s264 + $0x90] sm:$0x1] %vm265, 0.0
        %273 = vst.msk [vmem:[%s264 + $0xa8] sm:$0x1] %vm265, 0.0
        %274 = vst.msk [vmem:[%s264 + $0xc0] sm:$0x1] %vm265, 0.0
        %275 = vst.msk [vmem:[%s264 + $0xd8] sm:$0x1] %vm265, 0.0
        %276 = vst.msk [vmem:[%s264 + $0xf0] sm:$0x1] %vm265, 0.0
        %277 = vst.msk [vmem:[%s264 + $0x108] sm:$0x1] %vm265, 0.0
        %278 = vst.msk [vmem:[%s264 + $0x120] sm:$0x1] %vm265, 0.0
        %279 = vst.msk [vmem:[%s264 + $0x138] sm:$0x1] %vm265, 0.0
        %280 = vst.msk [vmem:[%s264 + $0x150] sm:$0x1] %vm265, 0.0
        %281 = vst.msk [vmem:[%s264 + $0x168] sm:$0x1] %vm265, 0.0
        %282 = vst.msk [vmem:[%s264 + $0x11] sm:$0x1] %vm265, 0.0
        %283 = vst.msk [vmem:[%s264 + $0x29] sm:$0x1] %vm265, 0.0
        %284 = vst.msk [vmem:[%s264 + $0x41] sm:$0x1] %vm265, 0.0
        %285 = vst.msk [vmem:[%s264 + $0x59] sm:$0x1] %vm265, 0.0
        %286 = vst.msk [vmem:[%s264 + $0x71] sm:$0x1] %vm265, 0.0
        %287 = vst.msk [vmem:[%s264 + $0x89] sm:$0x1] %vm265, 0.0
        %288 = vst.msk [vmem:[%s264 + $0xa1] sm:$0x1] %vm265, 0.0
        %289 = vst.msk [vmem:[%s264 + $0xb9] sm:$0x1] %vm265, 0.0
        %290 = vst.msk [vmem:[%s264 + $0xd1] sm:$0x1] %vm265, 0.0
        %291 = vst.msk [vmem:[%s264 + $0xe9] sm:$0x1] %vm265, 0.0
        %292 = vst.msk [vmem:[%s264 + $0x101] sm:$0x1] %vm265, 0.0
        %293 = vst.msk [vmem:[%s264 + $0x119] sm:$0x1] %vm265, 0.0
        %294 = vst.msk [vmem:[%s264 + $0x131] sm:$0x1] %vm265, 0.0
        %295 = vst.msk [vmem:[%s264 + $0x149] sm:$0x1] %vm265, 0.0
        %296 = vst.msk [vmem:[%s264 + $0x161] sm:$0x1] %vm265, 0.0
        %297 = vst.msk [vmem:[%s264 + $0x179] sm:$0x1] %vm265, 0.0
        %298 = vst.msk [vmem:[%s264 + $0x1] sm:$0xff] %vm255, %v223
        %299 = vst.msk [vmem:[%s264 + $0x9] sm:$0xff] %vm255, %v224
        %300 = vst.msk [vmem:[%s264 + $0x19] sm:$0xff] %vm255, %v225
        %301 = vst.msk [vmem:[%s264 + $0x21] sm:$0xff] %vm255, %v226
        %302 = vst.msk [vmem:[%s264 + $0x31] sm:$0xff] %vm255, %v227
        %303 = vst.msk [vmem:[%s264 + $0x39] sm:$0xff] %vm255, %v228
        %304 = vst.msk [vmem:[%s264 + $0x49] sm:$0xff] %vm255, %v229
        %305 = vst.msk [vmem:[%s264 + $0x51] sm:$0xff] %vm255, %v230
        %306 = vst.msk [vmem:[%s264 + $0x61] sm:$0xff] %vm255, %v231
        %307 = vst.msk [vmem:[%s264 + $0x69] sm:$0xff] %vm255, %v232
        %308 = vst.msk [vmem:[%s264 + $0x79] sm:$0xff] %vm255, %v233
        %309 = vst.msk [vmem:[%s264 + $0x81] sm:$0xff] %vm255, %v234
        %310 = vst.msk [vmem:[%s264 + $0x91] sm:$0xff] %vm255, %v235
        %311 = vst.msk [vmem:[%s264 + $0x99] sm:$0xff] %vm255, %v236
        %312 = vst.msk [vmem:[%s264 + $0xa9] sm:$0xff] %vm255, %v237
        %313 = vst.msk [vmem:[%s264 + $0xb1] sm:$0xff] %vm255, %v238
        %314 = vst.msk [vmem:[%s264 + $0xc1] sm:$0xff] %vm255, %v239
        %315 = vst.msk [vmem:[%s264 + $0xc9] sm:$0xff] %vm255, %v240
        %316 = vst.msk [vmem:[%s264 + $0xd9] sm:$0xff] %vm255, %v241
        %317 = vst.msk [vmem:[%s264 + $0xe1] sm:$0xff] %vm255, %v242
        %318 = vst.msk [vmem:[%s264 + $0xf1] sm:$0xff] %vm255, %v243
        %319 = vst.msk [vmem:[%s264 + $0xf9] sm:$0xff] %vm255, %v244
        %320 = vst.msk [vmem:[%s264 + $0x109] sm:$0xff] %vm255, %v245
        %321 = vst.msk [vmem:[%s264 + $0x111] sm:$0xff] %vm255, %v246
        %322 = vst.msk [vmem:[%s264 + $0x121] sm:$0xff] %vm255, %v247
        %323 = vst.msk [vmem:[%s264 + $0x129] sm:$0xff] %vm255, %v248
        %324 = vst.msk [vmem:[%s264 + $0x139] sm:$0xff] %vm255, %v249
        %325 = vst.msk [vmem:[%s264 + $0x141] sm:$0xff] %vm255, %v250
        %326 = vst.msk [vmem:[%s264 + $0x151] sm:$0xff] %vm255, %v251
        %327 = vst.msk [vmem:[%s264 + $0x159] sm:$0xff] %vm255, %v252
        %328 = vst.msk [vmem:[%s264 + $0x169] sm:$0xff] %vm255, %v253
        %329 = vst.msk [vmem:[%s264 + $0x171] sm:$0xff] %vm255, %v254
        %v330 = vld [vmem:[#allocation2] sm:$0xff]
        %v331 = vld [vmem:[#allocation2 + $0x8] sm:$0xff]
        %v332 = vld [vmem:[#allocation2 + $0x18] sm:$0xff]
        %v333 = vld [vmem:[#allocation2 + $0x20] sm:$0xff]
        %v334 = vld [vmem:[#allocation2 + $0x30] sm:$0xff]
        %v335 = vld [vmem:[#allocation2 + $0x38] sm:$0xff]
        %v336 = vld [vmem:[#allocation2 + $0x48] sm:$0xff]
        %v337 = vld [vmem:[#allocation2 + $0x50] sm:$0xff]
        %v338 = vld [vmem:[#allocation2 + $0x60] sm:$0xff]
        %v339 = vld [vmem:[#allocation2 + $0x68] sm:$0xff]
        %v340 = vld [vmem:[#allocation2 + $0x78] sm:$0xff]
        %v341 = vld [vmem:[#allocation2 + $0x80] sm:$0xff]
        %v342 = vld [vmem:[#allocation2 + $0x90] sm:$0xff]
        %v343 = vld [vmem:[#allocation2 + $0x98] sm:$0xff]
        %v344 = vld [vmem:[#allocation2 + $0xa8] sm:$0xff]
        %v345 = vld [vmem:[#allocation2 + $0xb0] sm:$0xff]
        %v346 = vld [vmem:[#allocation2 + $0xc0] sm:$0xff]
        %v347 = vld [vmem:[#allocation2 + $0xc8] sm:$0xff]
        %v348 = vld [vmem:[#allocation2 + $0xd8] sm:$0xff]
        %v349 = vld [vmem:[#allocation2 + $0xe0] sm:$0xff]
        %v350 = vld [vmem:[#allocation2 + $0xf0] sm:$0xff]
        %v351 = vld [vmem:[#allocation2 + $0xf8] sm:$0xff]
        %v352 = vld [vmem:[#allocation2 + $0x108] sm:$0xff]
        %v353 = vld [vmem:[#allocation2 + $0x110] sm:$0xff]
        %v354 = vld [vmem:[#allocation2 + $0x120] sm:$0xff]
        %v355 = vld [vmem:[#allocation2 + $0x128] sm:$0xff]
        %v356 = vld [vmem:[#allocation2 + $0x138] sm:$0xff]
        %v357 = vld [vmem:[#allocation2 + $0x140] sm:$0xff]
        %v358 = vld [vmem:[#allocation2 + $0x150] sm:$0xff]
        %v359 = vld [vmem:[#allocation2 + $0x158] sm:$0xff]
        %v360 = vld [vmem:[#allocation2 + $0x168] sm:$0xff]
        %v361 = vld [vmem:[#allocation2 + $0x170] sm:$0xff]
        %v362 = vld [vmem:[#allocation2 + $0x1] sm:$0xff]
        %v363 = vld [vmem:[#allocation2 + $0x9] sm:$0xff]
        %v364 = vld [vmem:[#allocation2 + $0x19] sm:$0xff]
        %v365 = vld [vmem:[#allocation2 + $0x21] sm:$0xff]
        %v366 = vld [vmem:[#allocation2 + $0x31] sm:$0xff]
        %v367 = vld [vmem:[#allocation2 + $0x39] sm:$0xff]
        %v368 = vld [vmem:[#allocation2 + $0x49] sm:$0xff]
        %v369 = vld [vmem:[#allocation2 + $0x51] sm:$0xff]
        %v370 = vld [vmem:[#allocation2 + $0x61] sm:$0xff]
        %v371 = vld [vmem:[#allocation2 + $0x69] sm:$0xff]
        %v372 = vld [vmem:[#allocation2 + $0x79] sm:$0xff]
        %v373 = vld [vmem:[#allocation2 + $0x81] sm:$0xff]
        %v374 = vld [vmem:[#allocation2 + $0x91] sm:$0xff]
        %v375 = vld [vmem:[#allocation2 + $0x99] sm:$0xff]
        %v376 = vld [vmem:[#allocation2 + $0xa9] sm:$0xff]
        %v377 = vld [vmem:[#allocation2 + $0xb1] sm:$0xff]
        %v378 = vld [vmem:[#allocation2 + $0xc1] sm:$0xff]
        %v379 = vld [vmem:[#allocation2 + $0xc9] sm:$0xff]
        %v380 = vld [vmem:[#allocation2 + $0xd9] sm:$0xff]
        %v381 = vld [vmem:[#allocation2 + $0xe1] sm:$0xff]
        %v382 = vld [vmem:[#allocation2 + $0xf1] sm:$0xff]
        %v383 = vld [vmem:[#allocation2 + $0xf9] sm:$0xff]
        %v384 = vld [vmem:[#allocation2 + $0x109] sm:$0xff]
        %v385 = vld [vmem:[#allocation2 + $0x111] sm:$0xff]
        %v386 = vld [vmem:[#allocation2 + $0x121] sm:$0xff]
        %v387 = vld [vmem:[#allocation2 + $0x129] sm:$0xff]
        %v388 = vld [vmem:[#allocation2 + $0x139] sm:$0xff]
        %v389 = vld [vmem:[#allocation2 + $0x141] sm:$0xff]
        %v390 = vld [vmem:[#allocation2 + $0x151] sm:$0xff]
        %v391 = vld [vmem:[#allocation2 + $0x159] sm:$0xff]
        %v392 = vld [vmem:[#allocation2 + $0x169] sm:$0xff]
        %v393 = vld [vmem:[#allocation2 + $0x171] sm:$0xff]
        %v394 = vld [vmem:[#allocation2 + $0x2] sm:$0xff]
        %v395 = vld [vmem:[#allocation2 + $0xa] sm:$0xff]
        %v396 = vld [vmem:[#allocation2 + $0x1a] sm:$0xff]
        %v397 = vld [vmem:[#allocation2 + $0x22] sm:$0xff]
        %v398 = vld [vmem:[#allocation2 + $0x32] sm:$0xff]
        %v399 = vld [vmem:[#allocation2 + $0x3a] sm:$0xff]
        %v400 = vld [vmem:[#allocation2 + $0x4a] sm:$0xff]
        %v401 = vld [vmem:[#allocation2 + $0x52] sm:$0xff]
        %v402 = vld [vmem:[#allocation2 + $0x62] sm:$0xff]
        %v403 = vld [vmem:[#allocation2 + $0x6a] sm:$0xff]
        %v404 = vld [vmem:[#allocation2 + $0x7a] sm:$0xff]
        %v405 = vld [vmem:[#allocation2 + $0x82] sm:$0xff]
        %v406 = vld [vmem:[#allocation2 + $0x92] sm:$0xff]
        %v407 = vld [vmem:[#allocation2 + $0x9a] sm:$0xff]
        %v408 = vld [vmem:[#allocation2 + $0xaa] sm:$0xff]
        %v409 = vld [vmem:[#allocation2 + $0xb2] sm:$0xff]
        %v410 = vld [vmem:[#allocation2 + $0xc2] sm:$0xff]
        %v411 = vld [vmem:[#allocation2 + $0xca] sm:$0xff]
        %v412 = vld [vmem:[#allocation2 + $0xda] sm:$0xff]
        %v413 = vld [vmem:[#allocation2 + $0xe2] sm:$0xff]
        %v414 = vld [vmem:[#allocation2 + $0xf2] sm:$0xff]
        %v415 = vld [vmem:[#allocation2 + $0xfa] sm:$0xff]
        %v416 = vld [vmem:[#allocation2 + $0x10a] sm:$0xff]
        %v417 = vld [vmem:[#allocation2 + $0x112] sm:$0xff]
        %v418 = vld [vmem:[#allocation2 + $0x122] sm:$0xff]
        %v419 = vld [vmem:[#allocation2 + $0x12a] sm:$0xff]
        %v420 = vld [vmem:[#allocation2 + $0x13a] sm:$0xff]
        %v421 = vld [vmem:[#allocation2 + $0x142] sm:$0xff]
        %v422 = vld [vmem:[#allocation2 + $0x152] sm:$0xff]
        %v423 = vld [vmem:[#allocation2 + $0x15a] sm:$0xff]
        %v424 = vld [vmem:[#allocation2 + $0x16a] sm:$0xff]
        %v425 = vld [vmem:[#allocation2 + $0x172] sm:$0xff]
        %v426 = vld [vmem:[%s264] sm:$0xff]
        %v427 = vld [vmem:[%s264 + $0x8] sm:$0xff]
        %v428 = vld [vmem:[%s264 + $0x18] sm:$0xff]
        %v429 = vld [vmem:[%s264 + $0x20] sm:$0xff]
        %v430 = vld [vmem:[%s264 + $0x30] sm:$0xff]
        %v431 = vld [vmem:[%s264 + $0x38] sm:$0xff]
        %v432 = vld [vmem:[%s264 + $0x48] sm:$0xff]
        %v433 = vld [vmem:[%s264 + $0x50] sm:$0xff]
        %v434 = vld [vmem:[%s264 + $0x60] sm:$0xff]
        %v435 = vld [vmem:[%s264 + $0x68] sm:$0xff]
        %v436 = vld [vmem:[%s264 + $0x78] sm:$0xff]
        %v437 = vld [vmem:[%s264 + $0x80] sm:$0xff]
        %v438 = vld [vmem:[%s264 + $0x90] sm:$0xff]
        %v439 = vld [vmem:[%s264 + $0x98] sm:$0xff]
        %v440 = vld [vmem:[%s264 + $0xa8] sm:$0xff]
        %v441 = vld [vmem:[%s264 + $0xb0] sm:$0xff]
        %v442 = vld [vmem:[%s264 + $0xc0] sm:$0xff]
        %v443 = vld [vmem:[%s264 + $0xc8] sm:$0xff]
        %v444 = vld [vmem:[%s264 + $0xd8] sm:$0xff]
        %v445 = vld [vmem:[%s264 + $0xe0] sm:$0xff]
        %v446 = vld [vmem:[%s264 + $0xf0] sm:$0xff]
        %v447 = vld [vmem:[%s264 + $0xf8] sm:$0xff]
        %v448 = vld [vmem:[%s264 + $0x108] sm:$0xff]
        %v449 = vld [vmem:[%s264 + $0x110] sm:$0xff]
        %v450 = vld [vmem:[%s264 + $0x120] sm:$0xff]
        %v451 = vld [vmem:[%s264 + $0x128] sm:$0xff]
        %v452 = vld [vmem:[%s264 + $0x138] sm:$0xff]
        %v453 = vld [vmem:[%s264 + $0x140] sm:$0xff]
        %v454 = vld [vmem:[%s264 + $0x150] sm:$0xff]
        %v455 = vld [vmem:[%s264 + $0x158] sm:$0xff]
        %v456 = vld [vmem:[%s264 + $0x168] sm:$0xff]
        %v457 = vld [vmem:[%s264 + $0x170] sm:$0xff]
        %v458 = vld [vmem:[%s264 + $0x1] sm:$0xff]
        %v459 = vld [vmem:[%s264 + $0x9] sm:$0xff]
        %v460 = vld [vmem:[%s264 + $0x19] sm:$0xff]
        %v461 = vld [vmem:[%s264 + $0x21] sm:$0xff]
        %v462 = vld [vmem:[%s264 + $0x31] sm:$0xff]
        %v463 = vld [vmem:[%s264 + $0x39] sm:$0xff]
        %v464 = vld [vmem:[%s264 + $0x49] sm:$0xff]
        %v465 = vld [vmem:[%s264 + $0x51] sm:$0xff]
        %v466 = vld [vmem:[%s264 + $0x61] sm:$0xff]
        %v467 = vld [vmem:[%s264 + $0x69] sm:$0xff]
        %v468 = vld [vmem:[%s264 + $0x79] sm:$0xff]
        %v469 = vld [vmem:[%s264 + $0x81] sm:$0xff]
        %v470 = vld [vmem:[%s264 + $0x91] sm:$0xff]
        %v471 = vld [vmem:[%s264 + $0x99] sm:$0xff]
        %v472 = vld [vmem:[%s264 + $0xa9] sm:$0xff]
        %v473 = vld [vmem:[%s264 + $0xb1] sm:$0xff]
        %v474 = vld [vmem:[%s264 + $0xc1] sm:$0xff]
        %v475 = vld [vmem:[%s264 + $0xc9] sm:$0xff]
        %v476 = vld [vmem:[%s264 + $0xd9] sm:$0xff]
        %v477 = vld [vmem:[%s264 + $0xe1] sm:$0xff]
        %v478 = vld [vmem:[%s264 + $0xf1] sm:$0xff]
        %v479 = vld [vmem:[%s264 + $0xf9] sm:$0xff]
        %v480 = vld [vmem:[%s264 + $0x109] sm:$0xff]
        %v481 = vld [vmem:[%s264 + $0x111] sm:$0xff]
        %v482 = vld [vmem:[%s264 + $0x121] sm:$0xff]
        %v483 = vld [vmem:[%s264 + $0x129] sm:$0xff]
        %v484 = vld [vmem:[%s264 + $0x139] sm:$0xff]
        %v485 = vld [vmem:[%s264 + $0x141] sm:$0xff]
        %v486 = vld [vmem:[%s264 + $0x151] sm:$0xff]
        %v487 = vld [vmem:[%s264 + $0x159] sm:$0xff]
        %v488 = vld [vmem:[%s264 + $0x169] sm:$0xff]
        %v489 = vld [vmem:[%s264 + $0x171] sm:$0xff]
        %v490 = vld [vmem:[%s264 + $0x2] sm:$0xff]
        %v491 = vld [vmem:[%s264 + $0xa] sm:$0xff]
        %v492 = vld [vmem:[%s264 + $0x1a] sm:$0xff]
        %v493 = vld [vmem:[%s264 + $0x22] sm:$0xff]
        %v494 = vld [vmem:[%s264 + $0x32] sm:$0xff]
        %v495 = vld [vmem:[%s264 + $0x3a] sm:$0xff]
        %v496 = vld [vmem:[%s264 + $0x4a] sm:$0xff]
        %v497 = vld [vmem:[%s264 + $0x52] sm:$0xff]
        %v498 = vld [vmem:[%s264 + $0x62] sm:$0xff]
        %v499 = vld [vmem:[%s264 + $0x6a] sm:$0xff]
        %v500 = vld [vmem:[%s264 + $0x7a] sm:$0xff]
        %v501 = vld [vmem:[%s264 + $0x82] sm:$0xff]
        %v502 = vld [vmem:[%s264 + $0x92] sm:$0xff]
        %v503 = vld [vmem:[%s264 + $0x9a] sm:$0xff]
        %v504 = vld [vmem:[%s264 + $0xaa] sm:$0xff]
        %v505 = vld [vmem:[%s264 + $0xb2] sm:$0xff]
        %v506 = vld [vmem:[%s264 + $0xc2] sm:$0xff]
        %v507 = vld [vmem:[%s264 + $0xca] sm:$0xff]
        %v508 = vld [vmem:[%s264 + $0xda] sm:$0xff]
        %v509 = vld [vmem:[%s264 + $0xe2] sm:$0xff]
        %v510 = vld [vmem:[%s264 + $0xf2] sm:$0xff]
        %v511 = vld [vmem:[%s264 + $0xfa] sm:$0xff]
        %v512 = vld [vmem:[%s264 + $0x10a] sm:$0xff]
        %v513 = vld [vmem:[%s264 + $0x112] sm:$0xff]
        %v514 = vld [vmem:[%s264 + $0x122] sm:$0xff]
        %v515 = vld [vmem:[%s264 + $0x12a] sm:$0xff]
        %v516 = vld [vmem:[%s264 + $0x13a] sm:$0xff]
        %v517 = vld [vmem:[%s264 + $0x142] sm:$0xff]
        %v518 = vld [vmem:[%s264 + $0x152] sm:$0xff]
        %v519 = vld [vmem:[%s264 + $0x15a] sm:$0xff]
        %v520 = vld [vmem:[%s264 + $0x16a] sm:$0xff]
        %v521 = vld [vmem:[%s264 + $0x172] sm:$0xff]
        %s522 = scalar_lea.vmem [#allocation2], 48
        %v523 = vld [vmem:[%s522] sm:$0xff]
        %v524 = vld [vmem:[%s522 + $0x8] sm:$0xff]
        %v525 = vld [vmem:[%s522 + $0x18] sm:$0xff]
        %v526 = vld [vmem:[%s522 + $0x20] sm:$0xff]
        %v527 = vld [vmem:[%s522 + $0x30] sm:$0xff]
        %v528 = vld [vmem:[%s522 + $0x38] sm:$0xff]
        %v529 = vld [vmem:[%s522 + $0x48] sm:$0xff]
        %v530 = vld [vmem:[%s522 + $0x50] sm:$0xff]
        %v531 = vld [vmem:[%s522 + $0x60] sm:$0xff]
        %v532 = vld [vmem:[%s522 + $0x68] sm:$0xff]
        %v533 = vld [vmem:[%s522 + $0x78] sm:$0xff]
        %v534 = vld [vmem:[%s522 + $0x80] sm:$0xff]
        %v535 = vld [vmem:[%s522 + $0x90] sm:$0xff]
        %v536 = vld [vmem:[%s522 + $0x98] sm:$0xff]
        %v537 = vld [vmem:[%s522 + $0xa8] sm:$0xff]
        %v538 = vld [vmem:[%s522 + $0xb0] sm:$0xff]
        %v539 = vld [vmem:[%s522 + $0xc0] sm:$0xff]
        %v540 = vld [vmem:[%s522 + $0xc8] sm:$0xff]
        %v541 = vld [vmem:[%s522 + $0xd8] sm:$0xff]
        %v542 = vld [vmem:[%s522 + $0xe0] sm:$0xff]
        %v543 = vld [vmem:[%s522 + $0xf0] sm:$0xff]
        %v544 = vld [vmem:[%s522 + $0xf8] sm:$0xff]
        %v545 = vld [vmem:[%s522 + $0x108] sm:$0xff]
        %v546 = vld [vmem:[%s522 + $0x110] sm:$0xff]
        %v547 = vld [vmem:[%s522 + $0x120] sm:$0xff]
        %v548 = vld [vmem:[%s522 + $0x128] sm:$0xff]
        %v549 = vld [vmem:[%s522 + $0x138] sm:$0xff]
        %v550 = vld [vmem:[%s522 + $0x140] sm:$0xff]
        %v551 = vld [vmem:[%s522 + $0x150] sm:$0xff]
        %v552 = vld [vmem:[%s522 + $0x158] sm:$0xff]
        %v553 = vld [vmem:[%s522 + $0x168] sm:$0xff]
        %v554 = vld [vmem:[%s522 + $0x170] sm:$0xff]
        %v555 = vld [vmem:[%s522 + $0x1] sm:$0xff]
        %v556 = vld [vmem:[%s522 + $0x9] sm:$0xff]
        %v557 = vld [vmem:[%s522 + $0x19] sm:$0xff]
        %v558 = vld [vmem:[%s522 + $0x21] sm:$0xff]
        %v559 = vld [vmem:[%s522 + $0x31] sm:$0xff]
        %v560 = vld [vmem:[%s522 + $0x39] sm:$0xff]
        %v561 = vld [vmem:[%s522 + $0x49] sm:$0xff]
        %v562 = vld [vmem:[%s522 + $0x51] sm:$0xff]
        %v563 = vld [vmem:[%s522 + $0x61] sm:$0xff]
        %v564 = vld [vmem:[%s522 + $0x69] sm:$0xff]
        %v565 = vld [vmem:[%s522 + $0x79] sm:$0xff]
        %v566 = vld [vmem:[%s522 + $0x81] sm:$0xff]
        %v567 = vld [vmem:[%s522 + $0x91] sm:$0xff]
        %v568 = vld [vmem:[%s522 + $0x99] sm:$0xff]
        %v569 = vld [vmem:[%s522 + $0xa9] sm:$0xff]
        %v570 = vld [vmem:[%s522 + $0xb1] sm:$0xff]
        %v571 = vld [vmem:[%s522 + $0xc1] sm:$0xff]
        %v572 = vld [vmem:[%s522 + $0xc9] sm:$0xff]
        %v573 = vld [vmem:[%s522 + $0xd9] sm:$0xff]
        %v574 = vld [vmem:[%s522 + $0xe1] sm:$0xff]
        %v575 = vld [vmem:[%s522 + $0xf1] sm:$0xff]
        %v576 = vld [vmem:[%s522 + $0xf9] sm:$0xff]
        %v577 = vld [vmem:[%s522 + $0x109] sm:$0xff]
        %v578 = vld [vmem:[%s522 + $0x111] sm:$0xff]
        %v579 = vld [vmem:[%s522 + $0x121] sm:$0xff]
        %v580 = vld [vmem:[%s522 + $0x129] sm:$0xff]
        %v581 = vld [vmem:[%s522 + $0x139] sm:$0xff]
        %v582 = vld [vmem:[%s522 + $0x141] sm:$0xff]
        %v583 = vld [vmem:[%s522 + $0x151] sm:$0xff]
        %v584 = vld [vmem:[%s522 + $0x159] sm:$0xff]
        %v585 = vld [vmem:[%s522 + $0x169] sm:$0xff]
        %v586 = vld [vmem:[%s522 + $0x171] sm:$0xff]
        %v587 = vld [vmem:[%s522 + $0x2] sm:$0xff]
        %v588 = vld [vmem:[%s522 + $0xa] sm:$0xff]
        %v589 = vld [vmem:[%s522 + $0x1a] sm:$0xff]
        %v590 = vld [vmem:[%s522 + $0x22] sm:$0xff]
        %v591 = vld [vmem:[%s522 + $0x32] sm:$0xff]
        %v592 = vld [vmem:[%s522 + $0x3a] sm:$0xff]
        %v593 = vld [vmem:[%s522 + $0x4a] sm:$0xff]
        %v594 = vld [vmem:[%s522 + $0x52] sm:$0xff]
        %v595 = vld [vmem:[%s522 + $0x62] sm:$0xff]
        %v596 = vld [vmem:[%s522 + $0x6a] sm:$0xff]
        %v597 = vld [vmem:[%s522 + $0x7a] sm:$0xff]
        %v598 = vld [vmem:[%s522 + $0x82] sm:$0xff]
        %v599 = vld [vmem:[%s522 + $0x92] sm:$0xff]
        %v600 = vld [vmem:[%s522 + $0x9a] sm:$0xff]
        %v601 = vld [vmem:[%s522 + $0xaa] sm:$0xff]
        %v602 = vld [vmem:[%s522 + $0xb2] sm:$0xff]
        %v603 = vld [vmem:[%s522 + $0xc2] sm:$0xff]
        %v604 = vld [vmem:[%s522 + $0xca] sm:$0xff]
        %v605 = vld [vmem:[%s522 + $0xda] sm:$0xff]
        %v606 = vld [vmem:[%s522 + $0xe2] sm:$0xff]
        %v607 = vld [vmem:[%s522 + $0xf2] sm:$0xff]
        %v608 = vld [vmem:[%s522 + $0xfa] sm:$0xff]
        %v609 = vld [vmem:[%s522 + $0x10a] sm:$0xff]
        %v610 = vld [vmem:[%s522 + $0x112] sm:$0xff]
        %v611 = vld [vmem:[%s522 + $0x122] sm:$0xff]
        %v612 = vld [vmem:[%s522 + $0x12a] sm:$0xff]
        %v613 = vld [vmem:[%s522 + $0x13a] sm:$0xff]
        %v614 = vld [vmem:[%s522 + $0x142] sm:$0xff]
        %v615 = vld [vmem:[%s522 + $0x152] sm:$0xff]
        %v616 = vld [vmem:[%s522 + $0x15a] sm:$0xff]
        %v617 = vld [vmem:[%s522 + $0x16a] sm:$0xff]
        %v618 = vld [vmem:[%s522 + $0x172] sm:$0xff]
        %651 = vrot.lane.b32.xlu0 %v362, 8
        %v652 = vpop.permute.xlu0 %651
        %653 = vrot.lane.b32.xlu0 %v363, 8
        %v654 = vpop.permute.xlu0 %653
        %655 = vrot.lane.b32.xlu0 %v364, 8
        %v656 = vpop.permute.xlu0 %655
        %657 = vrot.lane.b32.xlu0 %v365, 8
        %v658 = vpop.permute.xlu0 %657
        %659 = vrot.lane.b32.xlu0 %v366, 8
        %v660 = vpop.permute.xlu0 %659
        %661 = vrot.lane.b32.xlu0 %v367, 8
        %v662 = vpop.permute.xlu0 %661
        %663 = vrot.lane.b32.xlu0 %v368, 8
        %v664 = vpop.permute.xlu0 %663
        %665 = vrot.lane.b32.xlu0 %v369, 8
        %v666 = vpop.permute.xlu0 %665
        %667 = vrot.lane.b32.xlu0 %v370, 8
        %v668 = vpop.permute.xlu0 %667
        %669 = vrot.lane.b32.xlu0 %v371, 8
        %v670 = vpop.permute.xlu0 %669
        %671 = vrot.lane.b32.xlu0 %v372, 8
        %v672 = vpop.permute.xlu0 %671
        %673 = vrot.lane.b32.xlu0 %v373, 8
        %v674 = vpop.permute.xlu0 %673
        %675 = vrot.lane.b32.xlu0 %v374, 8
        %v676 = vpop.permute.xlu0 %675
        %677 = vrot.lane.b32.xlu0 %v375, 8
        %v678 = vpop.permute.xlu0 %677
        %679 = vrot.lane.b32.xlu0 %v376, 8
        %v680 = vpop.permute.xlu0 %679
        %681 = vrot.lane.b32.xlu0 %v377, 8
        %v682 = vpop.permute.xlu0 %681
        %683 = vrot.lane.b32.xlu0 %v378, 8
        %v684 = vpop.permute.xlu0 %683
        %685 = vrot.lane.b32.xlu0 %v379, 8
        %v686 = vpop.permute.xlu0 %685
        %687 = vrot.lane.b32.xlu0 %v380, 8
        %v688 = vpop.permute.xlu0 %687
        %689 = vrot.lane.b32.xlu0 %v381, 8
        %v690 = vpop.permute.xlu0 %689
        %691 = vrot.lane.b32.xlu0 %v382, 8
        %v692 = vpop.permute.xlu0 %691
        %693 = vrot.lane.b32.xlu0 %v383, 8
        %v694 = vpop.permute.xlu0 %693
        %695 = vrot.lane.b32.xlu0 %v384, 8
        %v696 = vpop.permute.xlu0 %695
        %697 = vrot.lane.b32.xlu0 %v385, 8
        %v698 = vpop.permute.xlu0 %697
        %699 = vrot.lane.b32.xlu0 %v386, 8
        %v700 = vpop.permute.xlu0 %699
        %701 = vrot.lane.b32.xlu0 %v387, 8
        %v702 = vpop.permute.xlu0 %701
        %703 = vrot.lane.b32.xlu0 %v388, 8
        %v704 = vpop.permute.xlu0 %703
        %705 = vrot.lane.b32.xlu0 %v389, 8
        %v706 = vpop.permute.xlu0 %705
        %707 = vrot.lane.b32.xlu0 %v390, 8
        %v708 = vpop.permute.xlu0 %707
        %709 = vrot.lane.b32.xlu0 %v391, 8
        %v710 = vpop.permute.xlu0 %709
        %711 = vrot.lane.b32.xlu0 %v392, 8
        %v712 = vpop.permute.xlu0 %711
        %713 = vrot.lane.b32.xlu0 %v393, 8
        %v714 = vpop.permute.xlu0 %713
        %779 = vrot.lane.b32.xlu0 %v394, 16
        %v780 = vpop.permute.xlu0 %779
        %781 = vrot.lane.b32.xlu0 %v395, 16
        %v782 = vpop.permute.xlu0 %781
        %783 = vrot.lane.b32.xlu0 %v396, 16
        %v784 = vpop.permute.xlu0 %783
        %785 = vrot.lane.b32.xlu0 %v397, 16
        %v786 = vpop.permute.xlu0 %785
        %787 = vrot.lane.b32.xlu0 %v398, 16
        %v788 = vpop.permute.xlu0 %787
        %789 = vrot.lane.b32.xlu0 %v399, 16
        %v790 = vpop.permute.xlu0 %789
        %791 = vrot.lane.b32.xlu0 %v400, 16
        %v792 = vpop.permute.xlu0 %791
        %793 = vrot.lane.b32.xlu0 %v401, 16
        %v794 = vpop.permute.xlu0 %793
        %795 = vrot.lane.b32.xlu0 %v402, 16
        %v796 = vpop.permute.xlu0 %795
        %797 = vrot.lane.b32.xlu0 %v403, 16
        %v798 = vpop.permute.xlu0 %797
        %799 = vrot.lane.b32.xlu0 %v404, 16
        %v800 = vpop.permute.xlu0 %799
        %801 = vrot.lane.b32.xlu0 %v405, 16
        %v802 = vpop.permute.xlu0 %801
        %803 = vrot.lane.b32.xlu0 %v406, 16
        %v804 = vpop.permute.xlu0 %803
        %805 = vrot.lane.b32.xlu0 %v407, 16
        %v806 = vpop.permute.xlu0 %805
        %807 = vrot.lane.b32.xlu0 %v408, 16
        %v808 = vpop.permute.xlu0 %807
        %809 = vrot.lane.b32.xlu0 %v409, 16
        %v810 = vpop.permute.xlu0 %809
        %811 = vrot.lane.b32.xlu0 %v410, 16
        %v812 = vpop.permute.xlu0 %811
        %813 = vrot.lane.b32.xlu0 %v411, 16
        %v814 = vpop.permute.xlu0 %813
        %815 = vrot.lane.b32.xlu0 %v412, 16
        %v816 = vpop.permute.xlu0 %815
        %817 = vrot.lane.b32.xlu0 %v413, 16
        %v818 = vpop.permute.xlu0 %817
        %819 = vrot.lane.b32.xlu0 %v414, 16
        %v820 = vpop.permute.xlu0 %819
        %821 = vrot.lane.b32.xlu0 %v415, 16
        %v822 = vpop.permute.xlu0 %821
        %823 = vrot.lane.b32.xlu0 %v416, 16
        %v824 = vpop.permute.xlu0 %823
        %825 = vrot.lane.b32.xlu0 %v417, 16
        %v826 = vpop.permute.xlu0 %825
        %827 = vrot.lane.b32.xlu0 %v418, 16
        %v828 = vpop.permute.xlu0 %827
        %829 = vrot.lane.b32.xlu0 %v419, 16
        %v830 = vpop.permute.xlu0 %829
        %831 = vrot.lane.b32.xlu0 %v420, 16
        %v832 = vpop.permute.xlu0 %831
        %833 = vrot.lane.b32.xlu0 %v421, 16
        %v834 = vpop.permute.xlu0 %833
        %835 = vrot.lane.b32.xlu0 %v422, 16
        %v836 = vpop.permute.xlu0 %835
        %837 = vrot.lane.b32.xlu0 %v423, 16
        %v838 = vpop.permute.xlu0 %837
        %839 = vrot.lane.b32.xlu0 %v424, 16
        %v840 = vpop.permute.xlu0 %839
        %841 = vrot.lane.b32.xlu0 %v425, 16
        %v842 = vpop.permute.xlu0 %841
        %907 = vrot.lane.b32.xlu0 %v426, 24
        %v908 = vpop.permute.xlu0 %907
        %909 = vrot.lane.b32.xlu0 %v427, 24
        %v910 = vpop.permute.xlu0 %909
        %911 = vrot.lane.b32.xlu0 %v428, 24
        %v912 = vpop.permute.xlu0 %911
        %913 = vrot.lane.b32.xlu0 %v429, 24
        %v914 = vpop.permute.xlu0 %913
        %915 = vrot.lane.b32.xlu0 %v430, 24
        %v916 = vpop.permute.xlu0 %915
        %917 = vrot.lane.b32.xlu0 %v431, 24
        %v918 = vpop.permute.xlu0 %917
        %919 = vrot.lane.b32.xlu0 %v432, 24
        %v920 = vpop.permute.xlu0 %919
        %921 = vrot.lane.b32.xlu0 %v433, 24
        %v922 = vpop.permute.xlu0 %921
        %923 = vrot.lane.b32.xlu0 %v434, 24
        %v924 = vpop.permute.xlu0 %923
        %925 = vrot.lane.b32.xlu0 %v435, 24
        %v926 = vpop.permute.xlu0 %925
        %927 = vrot.lane.b32.xlu0 %v436, 24
        %v928 = vpop.permute.xlu0 %927
        %929 = vrot.lane.b32.xlu0 %v437, 24
        %v930 = vpop.permute.xlu0 %929
        %931 = vrot.lane.b32.xlu0 %v438, 24
        %v932 = vpop.permute.xlu0 %931
        %933 = vrot.lane.b32.xlu0 %v439, 24
        %v934 = vpop.permute.xlu0 %933
        %935 = vrot.lane.b32.xlu0 %v440, 24
        %v936 = vpop.permute.xlu0 %935
        %937 = vrot.lane.b32.xlu0 %v441, 24
        %v938 = vpop.permute.xlu0 %937
        %939 = vrot.lane.b32.xlu0 %v442, 24
        %v940 = vpop.permute.xlu0 %939
        %941 = vrot.lane.b32.xlu0 %v443, 24
        %v942 = vpop.permute.xlu0 %941
        %943 = vrot.lane.b32.xlu0 %v444, 24
        %v944 = vpop.permute.xlu0 %943
        %945 = vrot.lane.b32.xlu0 %v445, 24
        %v946 = vpop.permute.xlu0 %945
        %947 = vrot.lane.b32.xlu0 %v446, 24
        %v948 = vpop.permute.xlu0 %947
        %949 = vrot.lane.b32.xlu0 %v447, 24
        %v950 = vpop.permute.xlu0 %949
        %951 = vrot.lane.b32.xlu0 %v448, 24
        %v952 = vpop.permute.xlu0 %951
        %953 = vrot.lane.b32.xlu0 %v449, 24
        %v954 = vpop.permute.xlu0 %953
        %955 = vrot.lane.b32.xlu0 %v450, 24
        %v956 = vpop.permute.xlu0 %955
        %957 = vrot.lane.b32.xlu0 %v451, 24
        %v958 = vpop.permute.xlu0 %957
        %959 = vrot.lane.b32.xlu0 %v452, 24
        %v960 = vpop.permute.xlu0 %959
        %961 = vrot.lane.b32.xlu0 %v453, 24
        %v962 = vpop.permute.xlu0 %961
        %963 = vrot.lane.b32.xlu0 %v454, 24
        %v964 = vpop.permute.xlu0 %963
        %965 = vrot.lane.b32.xlu0 %v455, 24
        %v966 = vpop.permute.xlu0 %965
        %967 = vrot.lane.b32.xlu0 %v456, 24
        %v968 = vpop.permute.xlu0 %967
        %969 = vrot.lane.b32.xlu0 %v457, 24
        %v970 = vpop.permute.xlu0 %969
        %1035 = vrot.lane.b32.xlu0 %v458, 32
        %v1036 = vpop.permute.xlu0 %1035
        %1037 = vrot.lane.b32.xlu0 %v459, 32
        %v1038 = vpop.permute.xlu0 %1037
        %1039 = vrot.lane.b32.xlu0 %v460, 32
        %v1040 = vpop.permute.xlu0 %1039
        %1041 = vrot.lane.b32.xlu0 %v461, 32
        %v1042 = vpop.permute.xlu0 %1041
        %1043 = vrot.lane.b32.xlu0 %v462, 32
        %v1044 = vpop.permute.xlu0 %1043
        %1045 = vrot.lane.b32.xlu0 %v463, 32
        %v1046 = vpop.permute.xlu0 %1045
        %1047 = vrot.lane.b32.xlu0 %v464, 32
        %v1048 = vpop.permute.xlu0 %1047
        %1049 = vrot.lane.b32.xlu0 %v465, 32
        %v1050 = vpop.permute.xlu0 %1049
        %1051 = vrot.lane.b32.xlu0 %v466, 32
        %v1052 = vpop.permute.xlu0 %1051
        %1053 = vrot.lane.b32.xlu0 %v467, 32
        %v1054 = vpop.permute.xlu0 %1053
        %1055 = vrot.lane.b32.xlu0 %v468, 32
        %v1056 = vpop.permute.xlu0 %1055
        %1057 = vrot.lane.b32.xlu0 %v469, 32
        %v1058 = vpop.permute.xlu0 %1057
        %1059 = vrot.lane.b32.xlu0 %v470, 32
        %v1060 = vpop.permute.xlu0 %1059
        %1061 = vrot.lane.b32.xlu0 %v471, 32
        %v1062 = vpop.permute.xlu0 %1061
        %1063 = vrot.lane.b32.xlu0 %v472, 32
        %v1064 = vpop.permute.xlu0 %1063
        %1065 = vrot.lane.b32.xlu0 %v473, 32
        %v1066 = vpop.permute.xlu0 %1065
        %1067 = vrot.lane.b32.xlu0 %v474, 32
        %v1068 = vpop.permute.xlu0 %1067
        %1069 = vrot.lane.b32.xlu0 %v475, 32
        %v1070 = vpop.permute.xlu0 %1069
        %1071 = vrot.lane.b32.xlu0 %v476, 32
        %v1072 = vpop.permute.xlu0 %1071
        %1073 = vrot.lane.b32.xlu0 %v477, 32
        %v1074 = vpop.permute.xlu0 %1073
        %1075 = vrot.lane.b32.xlu0 %v478, 32
        %v1076 = vpop.permute.xlu0 %1075
        %1077 = vrot.lane.b32.xlu0 %v479, 32
        %v1078 = vpop.permute.xlu0 %1077
        %1079 = vrot.lane.b32.xlu0 %v480, 32
        %v1080 = vpop.permute.xlu0 %1079
        %1081 = vrot.lane.b32.xlu0 %v481, 32
        %v1082 = vpop.permute.xlu0 %1081
        %1083 = vrot.lane.b32.xlu0 %v482, 32
        %v1084 = vpop.permute.xlu0 %1083
        %1085 = vrot.lane.b32.xlu0 %v483, 32
        %v1086 = vpop.permute.xlu0 %1085
        %1087 = vrot.lane.b32.xlu0 %v484, 32
        %v1088 = vpop.permute.xlu0 %1087
        %1089 = vrot.lane.b32.xlu0 %v485, 32
        %v1090 = vpop.permute.xlu0 %1089
        %1091 = vrot.lane.b32.xlu0 %v486, 32
        %v1092 = vpop.permute.xlu0 %1091
        %1093 = vrot.lane.b32.xlu0 %v487, 32
        %v1094 = vpop.permute.xlu0 %1093
        %1095 = vrot.lane.b32.xlu0 %v488, 32
        %v1096 = vpop.permute.xlu0 %1095
        %1097 = vrot.lane.b32.xlu0 %v489, 32
        %v1098 = vpop.permute.xlu0 %1097
        %1163 = vrot.lane.b32.xlu0 %v490, 40
        %v1164 = vpop.permute.xlu0 %1163
        %1165 = vrot.lane.b32.xlu0 %v491, 40
        %v1166 = vpop.permute.xlu0 %1165
        %1167 = vrot.lane.b32.xlu0 %v492, 40
        %v1168 = vpop.permute.xlu0 %1167
        %1169 = vrot.lane.b32.xlu0 %v493, 40
        %v1170 = vpop.permute.xlu0 %1169
        %1171 = vrot.lane.b32.xlu0 %v494, 40
        %v1172 = vpop.permute.xlu0 %1171
        %1173 = vrot.lane.b32.xlu0 %v495, 40
        %v1174 = vpop.permute.xlu0 %1173
        %1175 = vrot.lane.b32.xlu0 %v496, 40
        %v1176 = vpop.permute.xlu0 %1175
        %1177 = vrot.lane.b32.xlu0 %v497, 40
        %v1178 = vpop.permute.xlu0 %1177
        %1179 = vrot.lane.b32.xlu0 %v498, 40
        %v1180 = vpop.permute.xlu0 %1179
        %1181 = vrot.lane.b32.xlu0 %v499, 40
        %v1182 = vpop.permute.xlu0 %1181
        %1183 = vrot.lane.b32.xlu0 %v500, 40
        %v1184 = vpop.permute.xlu0 %1183
        %1185 = vrot.lane.b32.xlu0 %v501, 40
        %v1186 = vpop.permute.xlu0 %1185
        %1187 = vrot.lane.b32.xlu0 %v502, 40
        %v1188 = vpop.permute.xlu0 %1187
        %1189 = vrot.lane.b32.xlu0 %v503, 40
        %v1190 = vpop.permute.xlu0 %1189
        %1191 = vrot.lane.b32.xlu0 %v504, 40
        %v1192 = vpop.permute.xlu0 %1191
        %1193 = vrot.lane.b32.xlu0 %v505, 40
        %v1194 = vpop.permute.xlu0 %1193
        %1195 = vrot.lane.b32.xlu0 %v506, 40
        %v1196 = vpop.permute.xlu0 %1195
        %1197 = vrot.lane.b32.xlu0 %v507, 40
        %v1198 = vpop.permute.xlu0 %1197
        %1199 = vrot.lane.b32.xlu0 %v508, 40
        %v1200 = vpop.permute.xlu0 %1199
        %1201 = vrot.lane.b32.xlu0 %v509, 40
        %v1202 = vpop.permute.xlu0 %1201
        %1203 = vrot.lane.b32.xlu0 %v510, 40
        %v1204 = vpop.permute.xlu0 %1203
        %1205 = vrot.lane.b32.xlu0 %v511, 40
        %v1206 = vpop.permute.xlu0 %1205
        %1207 = vrot.lane.b32.xlu0 %v512, 40
        %v1208 = vpop.permute.xlu0 %1207
        %1209 = vrot.lane.b32.xlu0 %v513, 40
        %v1210 = vpop.permute.xlu0 %1209
        %1211 = vrot.lane.b32.xlu0 %v514, 40
        %v1212 = vpop.permute.xlu0 %1211
        %1213 = vrot.lane.b32.xlu0 %v515, 40
        %v1214 = vpop.permute.xlu0 %1213
        %1215 = vrot.lane.b32.xlu0 %v516, 40
        %v1216 = vpop.permute.xlu0 %1215
        %1217 = vrot.lane.b32.xlu0 %v517, 40
        %v1218 = vpop.permute.xlu0 %1217
        %1219 = vrot.lane.b32.xlu0 %v518, 40
        %v1220 = vpop.permute.xlu0 %1219
        %1221 = vrot.lane.b32.xlu0 %v519, 40
        %v1222 = vpop.permute.xlu0 %1221
        %1223 = vrot.lane.b32.xlu0 %v520, 40
        %v1224 = vpop.permute.xlu0 %1223
        %1225 = vrot.lane.b32.xlu0 %v521, 40
        %v1226 = vpop.permute.xlu0 %1225
        %1291 = vrot.lane.b32.xlu0 %v523, 48
        %v1292 = vpop.permute.xlu0 %1291
        %1293 = vrot.lane.b32.xlu0 %v524, 48
        %v1294 = vpop.permute.xlu0 %1293
        %1295 = vrot.lane.b32.xlu0 %v525, 48
        %v1296 = vpop.permute.xlu0 %1295
        %1297 = vrot.lane.b32.xlu0 %v526, 48
        %v1298 = vpop.permute.xlu0 %1297
        %1299 = vrot.lane.b32.xlu0 %v527, 48
        %v1300 = vpop.permute.xlu0 %1299
        %1301 = vrot.lane.b32.xlu0 %v528, 48
        %v1302 = vpop.permute.xlu0 %1301
        %1303 = vrot.lane.b32.xlu0 %v529, 48
        %v1304 = vpop.permute.xlu0 %1303
        %1305 = vrot.lane.b32.xlu0 %v530, 48
        %v1306 = vpop.permute.xlu0 %1305
        %1307 = vrot.lane.b32.xlu0 %v531, 48
        %v1308 = vpop.permute.xlu0 %1307
        %1309 = vrot.lane.b32.xlu0 %v532, 48
        %v1310 = vpop.permute.xlu0 %1309
        %1311 = vrot.lane.b32.xlu0 %v533, 48
        %v1312 = vpop.permute.xlu0 %1311
        %1313 = vrot.lane.b32.xlu0 %v534, 48
        %v1314 = vpop.permute.xlu0 %1313
        %1315 = vrot.lane.b32.xlu0 %v535, 48
        %v1316 = vpop.permute.xlu0 %1315
        %1317 = vrot.lane.b32.xlu0 %v536, 48
        %v1318 = vpop.permute.xlu0 %1317
        %1319 = vrot.lane.b32.xlu0 %v537, 48
        %v1320 = vpop.permute.xlu0 %1319
        %1321 = vrot.lane.b32.xlu0 %v538, 48
        %v1322 = vpop.permute.xlu0 %1321
        %1323 = vrot.lane.b32.xlu0 %v539, 48
        %v1324 = vpop.permute.xlu0 %1323
        %1325 = vrot.lane.b32.xlu0 %v540, 48
        %v1326 = vpop.permute.xlu0 %1325
        %1327 = vrot.lane.b32.xlu0 %v541, 48
        %v1328 = vpop.permute.xlu0 %1327
        %1329 = vrot.lane.b32.xlu0 %v542, 48
        %v1330 = vpop.permute.xlu0 %1329
        %1331 = vrot.lane.b32.xlu0 %v543, 48
        %v1332 = vpop.permute.xlu0 %1331
        %1333 = vrot.lane.b32.xlu0 %v544, 48
        %v1334 = vpop.permute.xlu0 %1333
        %1335 = vrot.lane.b32.xlu0 %v545, 48
        %v1336 = vpop.permute.xlu0 %1335
        %1337 = vrot.lane.b32.xlu0 %v546, 48
        %v1338 = vpop.permute.xlu0 %1337
        %1339 = vrot.lane.b32.xlu0 %v547, 48
        %v1340 = vpop.permute.xlu0 %1339
        %1341 = vrot.lane.b32.xlu0 %v548, 48
        %v1342 = vpop.permute.xlu0 %1341
        %1343 = vrot.lane.b32.xlu0 %v549, 48
        %v1344 = vpop.permute.xlu0 %1343
        %1345 = vrot.lane.b32.xlu0 %v550, 48
        %v1346 = vpop.permute.xlu0 %1345
        %1347 = vrot.lane.b32.xlu0 %v551, 48
        %v1348 = vpop.permute.xlu0 %1347
        %1349 = vrot.lane.b32.xlu0 %v552, 48
        %v1350 = vpop.permute.xlu0 %1349
        %1351 = vrot.lane.b32.xlu0 %v553, 48
        %v1352 = vpop.permute.xlu0 %1351
        %1353 = vrot.lane.b32.xlu0 %v554, 48
        %v1354 = vpop.permute.xlu0 %1353
        %1419 = vrot.lane.b32.xlu0 %v555, 56
        %v1420 = vpop.permute.xlu0 %1419
        %1421 = vrot.lane.b32.xlu0 %v556, 56
        %v1422 = vpop.permute.xlu0 %1421
        %1423 = vrot.lane.b32.xlu0 %v557, 56
        %v1424 = vpop.permute.xlu0 %1423
        %1425 = vrot.lane.b32.xlu0 %v558, 56
        %v1426 = vpop.permute.xlu0 %1425
        %1427 = vrot.lane.b32.xlu0 %v559, 56
        %v1428 = vpop.permute.xlu0 %1427
        %1429 = vrot.lane.b32.xlu0 %v560, 56
        %v1430 = vpop.permute.xlu0 %1429
        %1431 = vrot.lane.b32.xlu0 %v561, 56
        %v1432 = vpop.permute.xlu0 %1431
        %1433 = vrot.lane.b32.xlu0 %v562, 56
        %v1434 = vpop.permute.xlu0 %1433
        %1435 = vrot.lane.b32.xlu0 %v563, 56
        %v1436 = vpop.permute.xlu0 %1435
        %1437 = vrot.lane.b32.xlu0 %v564, 56
        %v1438 = vpop.permute.xlu0 %1437
        %1439 = vrot.lane.b32.xlu0 %v565, 56
        %v1440 = vpop.permute.xlu0 %1439
        %1441 = vrot.lane.b32.xlu0 %v566, 56
        %v1442 = vpop.permute.xlu0 %1441
        %1443 = vrot.lane.b32.xlu0 %v567, 56
        %v1444 = vpop.permute.xlu0 %1443
        %1445 = vrot.lane.b32.xlu0 %v568, 56
        %v1446 = vpop.permute.xlu0 %1445
        %1447 = vrot.lane.b32.xlu0 %v569, 56
        %v1448 = vpop.permute.xlu0 %1447
        %1449 = vrot.lane.b32.xlu0 %v570, 56
        %v1450 = vpop.permute.xlu0 %1449
        %1451 = vrot.lane.b32.xlu0 %v571, 56
        %v1452 = vpop.permute.xlu0 %1451
        %1453 = vrot.lane.b32.xlu0 %v572, 56
        %v1454 = vpop.permute.xlu0 %1453
        %1455 = vrot.lane.b32.xlu0 %v573, 56
        %v1456 = vpop.permute.xlu0 %1455
        %1457 = vrot.lane.b32.xlu0 %v574, 56
        %v1458 = vpop.permute.xlu0 %1457
        %1459 = vrot.lane.b32.xlu0 %v575, 56
        %v1460 = vpop.permute.xlu0 %1459
        %1461 = vrot.lane.b32.xlu0 %v576, 56
        %v1462 = vpop.permute.xlu0 %1461
        %1463 = vrot.lane.b32.xlu0 %v577, 56
        %v1464 = vpop.permute.xlu0 %1463
        %1465 = vrot.lane.b32.xlu0 %v578, 56
        %v1466 = vpop.permute.xlu0 %1465
        %1467 = vrot.lane.b32.xlu0 %v579, 56
        %v1468 = vpop.permute.xlu0 %1467
        %1469 = vrot.lane.b32.xlu0 %v580, 56
        %v1470 = vpop.permute.xlu0 %1469
        %1471 = vrot.lane.b32.xlu0 %v581, 56
        %v1472 = vpop.permute.xlu0 %1471
        %1473 = vrot.lane.b32.xlu0 %v582, 56
        %v1474 = vpop.permute.xlu0 %1473
        %1475 = vrot.lane.b32.xlu0 %v583, 56
        %v1476 = vpop.permute.xlu0 %1475
        %1477 = vrot.lane.b32.xlu0 %v584, 56
        %v1478 = vpop.permute.xlu0 %1477
        %1479 = vrot.lane.b32.xlu0 %v585, 56
        %v1480 = vpop.permute.xlu0 %1479
        %1481 = vrot.lane.b32.xlu0 %v586, 56
        %v1482 = vpop.permute.xlu0 %1481
        %1547 = vrot.lane.b32.xlu0 %v587, 64
        %v1548 = vpop.permute.xlu0 %1547
        %1549 = vrot.lane.b32.xlu0 %v588, 64
        %v1550 = vpop.permute.xlu0 %1549
        %1551 = vrot.lane.b32.xlu0 %v589, 64
        %v1552 = vpop.permute.xlu0 %1551
        %1553 = vrot.lane.b32.xlu0 %v590, 64
        %v1554 = vpop.permute.xlu0 %1553
        %1555 = vrot.lane.b32.xlu0 %v591, 64
        %v1556 = vpop.permute.xlu0 %1555
        %1557 = vrot.lane.b32.xlu0 %v592, 64
        %v1558 = vpop.permute.xlu0 %1557
        %1559 = vrot.lane.b32.xlu0 %v593, 64
        %v1560 = vpop.permute.xlu0 %1559
        %1561 = vrot.lane.b32.xlu0 %v594, 64
        %v1562 = vpop.permute.xlu0 %1561
        %1563 = vrot.lane.b32.xlu0 %v595, 64
        %v1564 = vpop.permute.xlu0 %1563
        %1565 = vrot.lane.b32.xlu0 %v596, 64
        %v1566 = vpop.permute.xlu0 %1565
        %1567 = vrot.lane.b32.xlu0 %v597, 64
        %v1568 = vpop.permute.xlu0 %1567
        %1569 = vrot.lane.b32.xlu0 %v598, 64
        %v1570 = vpop.permute.xlu0 %1569
        %1571 = vrot.lane.b32.xlu0 %v599, 64
        %v1572 = vpop.permute.xlu0 %1571
        %1573 = vrot.lane.b32.xlu0 %v600, 64
        %v1574 = vpop.permute.xlu0 %1573
        %1575 = vrot.lane.b32.xlu0 %v601, 64
        %v1576 = vpop.permute.xlu0 %1575
        %1577 = vrot.lane.b32.xlu0 %v602, 64
        %v1578 = vpop.permute.xlu0 %1577
        %1579 = vrot.lane.b32.xlu0 %v603, 64
        %v1580 = vpop.permute.xlu0 %1579
        %1581 = vrot.lane.b32.xlu0 %v604, 64
        %v1582 = vpop.permute.xlu0 %1581
        %1583 = vrot.lane.b32.xlu0 %v605, 64
        %v1584 = vpop.permute.xlu0 %1583
        %1585 = vrot.lane.b32.xlu0 %v606, 64
        %v1586 = vpop.permute.xlu0 %1585
        %1587 = vrot.lane.b32.xlu0 %v607, 64
        %v1588 = vpop.permute.xlu0 %1587
        %1589 = vrot.lane.b32.xlu0 %v608, 64
        %v1590 = vpop.permute.xlu0 %1589
        %1591 = vrot.lane.b32.xlu0 %v609, 64
        %v1592 = vpop.permute.xlu0 %1591
        %1593 = vrot.lane.b32.xlu0 %v610, 64
        %v1594 = vpop.permute.xlu0 %1593
        %1595 = vrot.lane.b32.xlu0 %v611, 64
        %v1596 = vpop.permute.xlu0 %1595
        %1597 = vrot.lane.b32.xlu0 %v612, 64
        %v1598 = vpop.permute.xlu0 %1597
        %1599 = vrot.lane.b32.xlu0 %v613, 64
        %v1600 = vpop.permute.xlu0 %1599
        %1601 = vrot.lane.b32.xlu0 %v614, 64
        %v1602 = vpop.permute.xlu0 %1601
        %1603 = vrot.lane.b32.xlu0 %v615, 64
        %v1604 = vpop.permute.xlu0 %1603
        %1605 = vrot.lane.b32.xlu0 %v616, 64
        %v1606 = vpop.permute.xlu0 %1605
        %1607 = vrot.lane.b32.xlu0 %v617, 64
        %v1608 = vpop.permute.xlu0 %1607
        %1609 = vrot.lane.b32.xlu0 %v618, 64
        %v1610 = vpop.permute.xlu0 %1609
        %v1643 = vsel %vm255, %v330, %v652
        %v1644 = vsel %vm255, %v331, %v654
        %v1645 = vsel %vm255, %v332, %v656
        %v1646 = vsel %vm255, %v333, %v658
        %v1647 = vsel %vm255, %v334, %v660
        %v1648 = vsel %vm255, %v335, %v662
        %v1649 = vsel %vm255, %v336, %v664
        %v1650 = vsel %vm255, %v337, %v666
        %v1651 = vsel %vm255, %v338, %v668
        %v1652 = vsel %vm255, %v339, %v670
        %v1653 = vsel %vm255, %v340, %v672
        %v1654 = vsel %vm255, %v341, %v674
        %v1655 = vsel %vm255, %v342, %v676
        %v1656 = vsel %vm255, %v343, %v678
        %v1657 = vsel %vm255, %v344, %v680
        %v1658 = vsel %vm255, %v345, %v682
        %v1659 = vsel %vm255, %v346, %v684
        %v1660 = vsel %vm255, %v347, %v686
        %v1661 = vsel %vm255, %v348, %v688
        %v1662 = vsel %vm255, %v349, %v690
        %v1663 = vsel %vm255, %v350, %v692
        %v1664 = vsel %vm255, %v351, %v694
        %v1665 = vsel %vm255, %v352, %v696
        %v1666 = vsel %vm255, %v353, %v698
        %v1667 = vsel %vm255, %v354, %v700
        %v1668 = vsel %vm255, %v355, %v702
        %v1669 = vsel %vm255, %v356, %v704
        %v1670 = vsel %vm255, %v357, %v706
        %v1671 = vsel %vm255, %v358, %v708
        %v1672 = vsel %vm255, %v359, %v710
        %v1673 = vsel %vm255, %v360, %v712
        %v1674 = vsel %vm255, %v361, %v714
        %vm1675 = vcmask 130048
        %v1676 = vsel %vm1675, %v1643, %v780
        %v1677 = vsel %vm1675, %v1644, %v782
        %v1678 = vsel %vm1675, %v1645, %v784
        %v1679 = vsel %vm1675, %v1646, %v786
        %v1680 = vsel %vm1675, %v1647, %v788
        %v1681 = vsel %vm1675, %v1648, %v790
        %v1682 = vsel %vm1675, %v1649, %v792
        %v1683 = vsel %vm1675, %v1650, %v794
        %v1684 = vsel %vm1675, %v1651, %v796
        %v1685 = vsel %vm1675, %v1652, %v798
        %v1686 = vsel %vm1675, %v1653, %v800
        %v1687 = vsel %vm1675, %v1654, %v802
        %v1688 = vsel %vm1675, %v1655, %v804
        %v1689 = vsel %vm1675, %v1656, %v806
        %v1690 = vsel %vm1675, %v1657, %v808
        %v1691 = vsel %vm1675, %v1658, %v810
        %v1692 = vsel %vm1675, %v1659, %v812
        %v1693 = vsel %vm1675, %v1660, %v814
        %v1694 = vsel %vm1675, %v1661, %v816
        %v1695 = vsel %vm1675, %v1662, %v818
        %v1696 = vsel %vm1675, %v1663, %v820
        %v1697 = vsel %vm1675, %v1664, %v822
        %v1698 = vsel %vm1675, %v1665, %v824
        %v1699 = vsel %vm1675, %v1666, %v826
        %v1700 = vsel %vm1675, %v1667, %v828
        %v1701 = vsel %vm1675, %v1668, %v830
        %v1702 = vsel %vm1675, %v1669, %v832
        %v1703 = vsel %vm1675, %v1670, %v834
        %v1704 = vsel %vm1675, %v1671, %v836
        %v1705 = vsel %vm1675, %v1672, %v838
        %v1706 = vsel %vm1675, %v1673, %v840
        %v1707 = vsel %vm1675, %v1674, %v842
        %vm1708 = vcmask 195584
        %v1709 = vsel %vm1708, %v1676, %v908
        %v1710 = vsel %vm1708, %v1677, %v910
        %v1711 = vsel %vm1708, %v1678, %v912
        %v1712 = vsel %vm1708, %v1679, %v914
        %v1713 = vsel %vm1708, %v1680, %v916
        %v1714 = vsel %vm1708, %v1681, %v918
        %v1715 = vsel %vm1708, %v1682, %v920
        %v1716 = vsel %vm1708, %v1683, %v922
        %v1717 = vsel %vm1708, %v1684, %v924
        %v1718 = vsel %vm1708, %v1685, %v926
        %v1719 = vsel %vm1708, %v1686, %v928
        %v1720 = vsel %vm1708, %v1687, %v930
        %v1721 = vsel %vm1708, %v1688, %v932
        %v1722 = vsel %vm1708, %v1689, %v934
        %v1723 = vsel %vm1708, %v1690, %v936
        %v1724 = vsel %vm1708, %v1691, %v938
        %v1725 = vsel %vm1708, %v1692, %v940
        %v1726 = vsel %vm1708, %v1693, %v942
        %v1727 = vsel %vm1708, %v1694, %v944
        %v1728 = vsel %vm1708, %v1695, %v946
        %v1729 = vsel %vm1708, %v1696, %v948
        %v1730 = vsel %vm1708, %v1697, %v950
        %v1731 = vsel %vm1708, %v1698, %v952
        %v1732 = vsel %vm1708, %v1699, %v954
        %v1733 = vsel %vm1708, %v1700, %v956
        %v1734 = vsel %vm1708, %v1701, %v958
        %v1735 = vsel %vm1708, %v1702, %v960
        %v1736 = vsel %vm1708, %v1703, %v962
        %v1737 = vsel %vm1708, %v1704, %v964
        %v1738 = vsel %vm1708, %v1705, %v966
        %v1739 = vsel %vm1708, %v1706, %v968
        %v1740 = vsel %vm1708, %v1707, %v970
        %vm1741 = vcmask 261120
        %v1742 = vsel %vm1741, %v1709, %v1036
        %v1743 = vsel %vm1741, %v1710, %v1038
        %v1744 = vsel %vm1741, %v1711, %v1040
        %v1745 = vsel %vm1741, %v1712, %v1042
        %v1746 = vsel %vm1741, %v1713, %v1044
        %v1747 = vsel %vm1741, %v1714, %v1046
        %v1748 = vsel %vm1741, %v1715, %v1048
        %v1749 = vsel %vm1741, %v1716, %v1050
        %v1750 = vsel %vm1741, %v1717, %v1052
        %v1751 = vsel %vm1741, %v1718, %v1054
        %v1752 = vsel %vm1741, %v1719, %v1056
        %v1753 = vsel %vm1741, %v1720, %v1058
        %v1754 = vsel %vm1741, %v1721, %v1060
        %v1755 = vsel %vm1741, %v1722, %v1062
        %v1756 = vsel %vm1741, %v1723, %v1064
        %v1757 = vsel %vm1741, %v1724, %v1066
        %v1758 = vsel %vm1741, %v1725, %v1068
        %v1759 = vsel %vm1741, %v1726, %v1070
        %v1760 = vsel %vm1741, %v1727, %v1072
        %v1761 = vsel %vm1741, %v1728, %v1074
        %v1762 = vsel %vm1741, %v1729, %v1076
        %v1763 = vsel %vm1741, %v1730, %v1078
        %v1764 = vsel %vm1741, %v1731, %v1080
        %v1765 = vsel %vm1741, %v1732, %v1082
        %v1766 = vsel %vm1741, %v1733, %v1084
        %v1767 = vsel %vm1741, %v1734, %v1086
        %v1768 = vsel %vm1741, %v1735, %v1088
        %v1769 = vsel %vm1741, %v1736, %v1090
        %v1770 = vsel %vm1741, %v1737, %v1092
        %v1771 = vsel %vm1741, %v1738, %v1094
        %v1772 = vsel %vm1741, %v1739, %v1096
        %v1773 = vsel %vm1741, %v1740, %v1098
        %vm1774 = vcmask 326656
        %v1775 = vsel %vm1774, %v1742, %v1164
        %v1776 = vsel %vm1774, %v1743, %v1166
        %v1777 = vsel %vm1774, %v1744, %v1168
        %v1778 = vsel %vm1774, %v1745, %v1170
        %v1779 = vsel %vm1774, %v1746, %v1172
        %v1780 = vsel %vm1774, %v1747, %v1174
        %v1781 = vsel %vm1774, %v1748, %v1176
        %v1782 = vsel %vm1774, %v1749, %v1178
        %v1783 = vsel %vm1774, %v1750, %v1180
        %v1784 = vsel %vm1774, %v1751, %v1182
        %v1785 = vsel %vm1774, %v1752, %v1184
        %v1786 = vsel %vm1774, %v1753, %v1186
        %v1787 = vsel %vm1774, %v1754, %v1188
        %v1788 = vsel %vm1774, %v1755, %v1190
        %v1789 = vsel %vm1774, %v1756, %v1192
        %v1790 = vsel %vm1774, %v1757, %v1194
        %v1791 = vsel %vm1774, %v1758, %v1196
        %v1792 = vsel %vm1774, %v1759, %v1198
        %v1793 = vsel %vm1774, %v1760, %v1200
        %v1794 = vsel %vm1774, %v1761, %v1202
        %v1795 = vsel %vm1774, %v1762, %v1204
        %v1796 = vsel %vm1774, %v1763, %v1206
        %v1797 = vsel %vm1774, %v1764, %v1208
        %v1798 = vsel %vm1774, %v1765, %v1210
        %v1799 = vsel %vm1774, %v1766, %v1212
        %v1800 = vsel %vm1774, %v1767, %v1214
        %v1801 = vsel %vm1774, %v1768, %v1216
        %v1802 = vsel %vm1774, %v1769, %v1218
        %v1803 = vsel %vm1774, %v1770, %v1220
        %v1804 = vsel %vm1774, %v1771, %v1222
        %v1805 = vsel %vm1774, %v1772, %v1224
        %v1806 = vsel %vm1774, %v1773, %v1226
        %vm1807 = vcmask 392192
        %v1808 = vsel %vm1807, %v1775, %v1292
        %v1809 = vsel %vm1807, %v1776, %v1294
        %v1810 = vsel %vm1807, %v1777, %v1296
        %v1811 = vsel %vm1807, %v1778, %v1298
        %v1812 = vsel %vm1807, %v1779, %v1300
        %v1813 = vsel %vm1807, %v1780, %v1302
        %v1814 = vsel %vm1807, %v1781, %v1304
        %v1815 = vsel %vm1807, %v1782, %v1306
        %v1816 = vsel %vm1807, %v1783, %v1308
        %v1817 = vsel %vm1807, %v1784, %v1310
        %v1818 = vsel %vm1807, %v1785, %v1312
        %v1819 = vsel %vm1807, %v1786, %v1314
        %v1820 = vsel %vm1807, %v1787, %v1316
        %v1821 = vsel %vm1807, %v1788, %v1318
        %v1822 = vsel %vm1807, %v1789, %v1320
        %v1823 = vsel %vm1807, %v1790, %v1322
        %v1824 = vsel %vm1807, %v1791, %v1324
        %v1825 = vsel %vm1807, %v1792, %v1326
        %v1826 = vsel %vm1807, %v1793, %v1328
        %v1827 = vsel %vm1807, %v1794, %v1330
        %v1828 = vsel %vm1807, %v1795, %v1332
        %v1829 = vsel %vm1807, %v1796, %v1334
        %v1830 = vsel %vm1807, %v1797, %v1336
        %v1831 = vsel %vm1807, %v1798, %v1338
        %v1832 = vsel %vm1807, %v1799, %v1340
        %v1833 = vsel %vm1807, %v1800, %v1342
        %v1834 = vsel %vm1807, %v1801, %v1344
        %v1835 = vsel %vm1807, %v1802, %v1346
        %v1836 = vsel %vm1807, %v1803, %v1348
        %v1837 = vsel %vm1807, %v1804, %v1350
        %v1838 = vsel %vm1807, %v1805, %v1352
        %v1839 = vsel %vm1807, %v1806, %v1354
        %vm1840 = vcmask 457728
        %v1841 = vsel %vm1840, %v1808, %v1420
        %v1842 = vsel %vm1840, %v1809, %v1422
        %v1843 = vsel %vm1840, %v1810, %v1424
        %v1844 = vsel %vm1840, %v1811, %v1426
        %v1845 = vsel %vm1840, %v1812, %v1428
        %v1846 = vsel %vm1840, %v1813, %v1430
        %v1847 = vsel %vm1840, %v1814, %v1432
        %v1848 = vsel %vm1840, %v1815, %v1434
        %v1849 = vsel %vm1840, %v1816, %v1436
        %v1850 = vsel %vm1840, %v1817, %v1438
        %v1851 = vsel %vm1840, %v1818, %v1440
        %v1852 = vsel %vm1840, %v1819, %v1442
        %v1853 = vsel %vm1840, %v1820, %v1444
        %v1854 = vsel %vm1840, %v1821, %v1446
        %v1855 = vsel %vm1840, %v1822, %v1448
        %v1856 = vsel %vm1840, %v1823, %v1450
        %v1857 = vsel %vm1840, %v1824, %v1452
        %v1858 = vsel %vm1840, %v1825, %v1454
        %v1859 = vsel %vm1840, %v1826, %v1456
        %v1860 = vsel %vm1840, %v1827, %v1458
        %v1861 = vsel %vm1840, %v1828, %v1460
        %v1862 = vsel %vm1840, %v1829, %v1462
        %v1863 = vsel %vm1840, %v1830, %v1464
        %v1864 = vsel %vm1840, %v1831, %v1466
        %v1865 = vsel %vm1840, %v1832, %v1468
        %v1866 = vsel %vm1840, %v1833, %v1470
        %v1867 = vsel %vm1840, %v1834, %v1472
        %v1868 = vsel %vm1840, %v1835, %v1474
        %v1869 = vsel %vm1840, %v1836, %v1476
        %v1870 = vsel %vm1840, %v1837, %v1478
        %v1871 = vsel %vm1840, %v1838, %v1480
        %v1872 = vsel %vm1840, %v1839, %v1482
        %vm1873 = vcmask 523264
        %v1874 = vsel %vm1873, %v1841, %v1548
        %v1875 = vsel %vm1873, %v1842, %v1550
        %v1876 = vsel %vm1873, %v1843, %v1552
        %v1877 = vsel %vm1873, %v1844, %v1554
        %v1878 = vsel %vm1873, %v1845, %v1556
        %v1879 = vsel %vm1873, %v1846, %v1558
        %v1880 = vsel %vm1873, %v1847, %v1560
        %v1881 = vsel %vm1873, %v1848, %v1562
        %v1882 = vsel %vm1873, %v1849, %v1564
        %v1883 = vsel %vm1873, %v1850, %v1566
        %v1884 = vsel %vm1873, %v1851, %v1568
        %v1885 = vsel %vm1873, %v1852, %v1570
        %v1886 = vsel %vm1873, %v1853, %v1572
        %v1887 = vsel %vm1873, %v1854, %v1574
        %v1888 = vsel %vm1873, %v1855, %v1576
        %v1889 = vsel %vm1873, %v1856, %v1578
        %v1890 = vsel %vm1873, %v1857, %v1580
        %v1891 = vsel %vm1873, %v1858, %v1582
        %v1892 = vsel %vm1873, %v1859, %v1584
        %v1893 = vsel %vm1873, %v1860, %v1586
        %v1894 = vsel %vm1873, %v1861, %v1588
        %v1895 = vsel %vm1873, %v1862, %v1590
        %v1896 = vsel %vm1873, %v1863, %v1592
        %v1897 = vsel %vm1873, %v1864, %v1594
        %v1898 = vsel %vm1873, %v1865, %v1596
        %v1899 = vsel %vm1873, %v1866, %v1598
        %v1900 = vsel %vm1873, %v1867, %v1600
        %v1901 = vsel %vm1873, %v1868, %v1602
        %v1902 = vsel %vm1873, %v1869, %v1604
        %v1903 = vsel %vm1873, %v1870, %v1606
        %v1904 = vsel %vm1873, %v1871, %v1608
        %v1905 = vsel %vm1873, %v1872, %v1610
        %v1906 = vld [vmem:[%s1] sm:$0xff]
        %v1907 = vld [vmem:[%s1 + $0x8] sm:$0xff]
        %v1908 = vld [vmem:[%s1 + $0x10] sm:$0xff]
        %v1909 = vld [vmem:[%s1 + $0x18] sm:$0xff]
        %v1910 = vld [vmem:[%s1 + $0x20] sm:$0xff]
        %v1911 = vld [vmem:[%s1 + $0x28] sm:$0xff]
        %v1912 = vld [vmem:[%s1 + $0x30] sm:$0xff]
        %v1913 = vld [vmem:[%s1 + $0x38] sm:$0xff]
        %v1914 = vld [vmem:[%s1 + $0x40] sm:$0xff]
        %v1915 = vld [vmem:[%s2] sm:$0x1]
        %v1917 = vlaneseq
        %v1918 = vshrl.u32 %v1917, 7
        %v1919 = vsub.s32 0, %v1918
        %v1920 = vrot.slane %v1915, %v1919
        %vm1922 = vcmask 588800
        %v1924 = vsel %vm1922, %v1874, 0
        %v1927 = vsel %vm1922, %v1875, 0
        %v1930 = vsel %vm1922, %v1876, 0
        %v1933 = vsel %vm1922, %v1877, 0
        %v1936 = vsel %vm1922, %v1878, 0
        %v1939 = vsel %vm1922, %v1879, 0
        %v1942 = vsel %vm1922, %v1880, 0
        %v1945 = vsel %vm1922, %v1881, 0
        %v1948 = vsel %vm1922, %v1882, 0
        %v1951 = vsel %vm1922, %v1883, 0
        %v1954 = vsel %vm1922, %v1884, 0
        %v1957 = vsel %vm1922, %v1885, 0
        %v1960 = vsel %vm1922, %v1886, 0
        %v1963 = vsel %vm1922, %v1887, 0
        %v1966 = vsel %vm1922, %v1888, 0
        %v1969 = vsel %vm1922, %v1889, 0
        %v1972 = vsel %vm1922, %v1890, 0
        %v1975 = vsel %vm1922, %v1891, 0
        %v1978 = vsel %vm1922, %v1892, 0
        %v1981 = vsel %vm1922, %v1893, 0
        %v1984 = vsel %vm1922, %v1894, 0
        %v1987 = vsel %vm1922, %v1895, 0
        %v1990 = vsel %vm1922, %v1896, 0
        %v1993 = vsel %vm1922, %v1897, 0
        %v1996 = vsel %vm1922, %v1898, 0
        %v1999 = vsel %vm1922, %v1899, 0
        %v2002 = vsel %vm1922, %v1900, 0
        %v2005 = vsel %vm1922, %v1901, 0
        %v2008 = vsel %vm1922, %v1902, 0
        %v2011 = vsel %vm1922, %v1903, 0
        %v2014 = vsel %vm1922, %v1904, 0
        %v2017 = vsel %vm1922, %v1905, 0
        %2019 = vmatprep.subr.mxu0 0.0
        %2020 = vmatpush1.msra.mxu0 0.0
        %2021 = vmatprep.subr.mxu0 0.0
        %2022 = vmatpush1.msra.mxu0 0.0
        %2023 = vmatprep.subr.mxu0 0.0
        %2024 = vmatpush1.msra.mxu0 0.0
        %2025 = vmatprep.subr.mxu0 0.0
        %2026 = vmatpush1.msra.mxu0 0.0
        %2027 = vmatprep.subr.mxu0 0.0
        %2028 = vmatpush1.msra.mxu0 0.0
        %2029 = vmatprep.subr.mxu0 0.0
        %2030 = vmatpush1.msra.mxu0 0.0
        %2031 = vmatprep.subr.mxu0 0.0
        %2032 = vmatpush1.msra.mxu0 0.0
        %2033 = vmatprep.subr.mxu0 0.0
        %2034 = vmatpush1.msra.mxu0 %v1914
        %2035 = vmatprep.subr.mxu0 0.0
        %2036 = vmatpush1.msra.mxu0 %v1913
        %2037 = vmatprep.subr.mxu0 0.0
        %2038 = vmatpush1.msra.mxu0 %v1912
        %2039 = vmatprep.subr.mxu0 0.0
        %2040 = vmatpush1.msra.mxu0 %v1911
        %2041 = vmatprep.subr.mxu0 0.0
        %2042 = vmatpush1.msra.mxu0 %v1910
        %2043 = vmatprep.subr.mxu0 0.0
        %2044 = vmatpush1.msra.mxu0 %v1909
        %2045 = vmatprep.subr.mxu0 0.0
        %2046 = vmatpush1.msra.mxu0 %v1908
        %2047 = vmatprep.subr.mxu0 0.0
        %2048 = vmatpush1.msra.mxu0 %v1907
        %2049 = vmatprep.subr.mxu0 0.0
        %2050 = vmatpush1.msra.mxu0 %v1906
        %2051 = vmatprep.subr.mxu0 0.0
        %2052 = vmatpush2.msra.mxu0 0.0
        %2053 = vmatprep.subr.mxu0 0.0
        %2054 = vmatpush2.msra.mxu0 0.0
        %2055 = vmatprep.subr.mxu0 0.0
        %2056 = vmatpush2.msra.mxu0 0.0
        %2057 = vmatprep.subr.mxu0 0.0
        %2058 = vmatpush2.msra.mxu0 0.0
        %2059 = vmatprep.subr.mxu0 0.0
        %2060 = vmatpush2.msra.mxu0 0.0
        %2061 = vmatprep.subr.mxu0 0.0
        %2062 = vmatpush2.msra.mxu0 0.0
        %2063 = vmatprep.subr.mxu0 0.0
        %2064 = vmatpush2.msra.mxu0 0.0
        %2065 = vmatprep.subr.mxu0 0.0
        %2066 = vmatpush2.msra.mxu0 0.0
        %2067 = vmatprep.subr.mxu0 0.0
        %2068 = vmatpush2.msra.mxu0 0.0
        %2069 = vmatprep.subr.mxu0 0.0
        %2070 = vmatpush2.msra.mxu0 0.0
        %2071 = vmatprep.subr.mxu0 0.0
        %2072 = vmatpush2.msra.mxu0 0.0
        %2073 = vmatprep.subr.mxu0 0.0
        %2074 = vmatpush2.msra.mxu0 0.0
        %2075 = vmatprep.subr.mxu0 0.0
        %2076 = vmatpush2.msra.mxu0 0.0
        %2077 = vmatprep.subr.mxu0 0.0
        %2078 = vmatpush2.msra.mxu0 0.0
        %2079 = vmatprep.subr.mxu0 0.0
        %2080 = vmatpush2.msra.mxu0 0.0
        %2081 = vmatprep.subr.mxu0 0.0
        %2082 = vmatpush2.msra.mxu0 0.0
        %2083 = vmatprep.mubr.f32.mxu0 0.0
        %2084 = vmatmul.mubr.f32.gmra.mxu0 %v1924
        %v2085 = vpop.f32.mrf.mxu0
        %v2086 = vadd.f32 %v1920, %v2085
        %v2087 = vpop.f32.mrf.mxu0
        %2088 = vmatprep.mubr.f32.mxu0 0.0
        %2089 = vmatmul.mubr.f32.gmra.mxu0 %v1927
        %v2090 = vpop.f32.mrf.mxu0
        %v2091 = vadd.f32 %v1920, %v2090
        %v2092 = vpop.f32.mrf.mxu0
        %2093 = vmatprep.mubr.f32.mxu0 0.0
        %2094 = vmatmul.mubr.f32.gmra.mxu0 %v1930
        %v2095 = vpop.f32.mrf.mxu0
        %v2096 = vadd.f32 %v1920, %v2095
        %v2097 = vpop.f32.mrf.mxu0
        %2098 = vmatprep.mubr.f32.mxu0 0.0
        %2099 = vmatmul.mubr.f32.gmra.mxu0 %v1933
        %v2100 = vpop.f32.mrf.mxu0
        %v2101 = vadd.f32 %v1920, %v2100
        %v2102 = vpop.f32.mrf.mxu0
        %2103 = vmatprep.mubr.f32.mxu0 0.0
        %2104 = vmatmul.mubr.f32.gmra.mxu0 %v1936
        %v2105 = vpop.f32.mrf.mxu0
        %v2106 = vadd.f32 %v1920, %v2105
        %v2107 = vpop.f32.mrf.mxu0
        %2108 = vmatprep.mubr.f32.mxu0 0.0
        %2109 = vmatmul.mubr.f32.gmra.mxu0 %v1939
        %v2110 = vpop.f32.mrf.mxu0
        %v2111 = vadd.f32 %v1920, %v2110
        %v2112 = vpop.f32.mrf.mxu0
        %2113 = vmatprep.mubr.f32.mxu0 0.0
        %2114 = vmatmul.mubr.f32.gmra.mxu0 %v1942
        %v2115 = vpop.f32.mrf.mxu0
        %v2116 = vadd.f32 %v1920, %v2115
        %v2117 = vpop.f32.mrf.mxu0
        %2118 = vmatprep.mubr.f32.mxu0 0.0
        %2119 = vmatmul.mubr.f32.gmra.mxu0 %v1945
        %v2120 = vpop.f32.mrf.mxu0
        %v2121 = vadd.f32 %v1920, %v2120
        %v2122 = vpop.f32.mrf.mxu0
        %2123 = vmatprep.mubr.f32.mxu0 0.0
        %2124 = vmatmul.mubr.f32.gmra.mxu0 %v1948
        %v2125 = vpop.f32.mrf.mxu0
        %v2126 = vadd.f32 %v1920, %v2125
        %v2127 = vpop.f32.mrf.mxu0
        %2128 = vmatprep.mubr.f32.mxu0 0.0
        %2129 = vmatmul.mubr.f32.gmra.mxu0 %v1951
        %v2130 = vpop.f32.mrf.mxu0
        %v2131 = vadd.f32 %v1920, %v2130
        %v2132 = vpop.f32.mrf.mxu0
        %2133 = vmatprep.mubr.f32.mxu0 0.0
        %2134 = vmatmul.mubr.f32.gmra.mxu0 %v1954
        %v2135 = vpop.f32.mrf.mxu0
        %v2136 = vadd.f32 %v1920, %v2135
        %v2137 = vpop.f32.mrf.mxu0
        %2138 = vmatprep.mubr.f32.mxu0 0.0
        %2139 = vmatmul.mubr.f32.gmra.mxu0 %v1957
        %v2140 = vpop.f32.mrf.mxu0
        %v2141 = vadd.f32 %v1920, %v2140
        %v2142 = vpop.f32.mrf.mxu0
        %2143 = vmatprep.mubr.f32.mxu0 0.0
        %2144 = vmatmul.mubr.f32.gmra.mxu0 %v1960
        %v2145 = vpop.f32.mrf.mxu0
        %v2146 = vadd.f32 %v1920, %v2145
        %v2147 = vpop.f32.mrf.mxu0
        %2148 = vmatprep.mubr.f32.mxu0 0.0
        %2149 = vmatmul.mubr.f32.gmra.mxu0 %v1963
        %v2150 = vpop.f32.mrf.mxu0
        %v2151 = vadd.f32 %v1920, %v2150
        %v2152 = vpop.f32.mrf.mxu0
        %2153 = vmatprep.mubr.f32.mxu0 0.0
        %2154 = vmatmul.mubr.f32.gmra.mxu0 %v1966
        %v2155 = vpop.f32.mrf.mxu0
        %v2156 = vadd.f32 %v1920, %v2155
        %v2157 = vpop.f32.mrf.mxu0
        %2158 = vmatprep.mubr.f32.mxu0 0.0
        %2159 = vmatmul.mubr.f32.gmra.mxu0 %v1969
        %v2160 = vpop.f32.mrf.mxu0
        %v2161 = vadd.f32 %v1920, %v2160
        %v2162 = vpop.f32.mrf.mxu0
        %2163 = vmatprep.mubr.f32.mxu0 0.0
        %2164 = vmatmul.mubr.f32.gmra.mxu0 %v1972
        %v2165 = vpop.f32.mrf.mxu0
        %v2166 = vadd.f32 %v1920, %v2165
        %v2167 = vpop.f32.mrf.mxu0
        %2168 = vmatprep.mubr.f32.mxu0 0.0
        %2169 = vmatmul.mubr.f32.gmra.mxu0 %v1975
        %v2170 = vpop.f32.mrf.mxu0
        %v2171 = vadd.f32 %v1920, %v2170
        %v2172 = vpop.f32.mrf.mxu0
        %2173 = vmatprep.mubr.f32.mxu0 0.0
        %2174 = vmatmul.mubr.f32.gmra.mxu0 %v1978
        %v2175 = vpop.f32.mrf.mxu0
        %v2176 = vadd.f32 %v1920, %v2175
        %v2177 = vpop.f32.mrf.mxu0
        %2178 = vmatprep.mubr.f32.mxu0 0.0
        %2179 = vmatmul.mubr.f32.gmra.mxu0 %v1981
        %v2180 = vpop.f32.mrf.mxu0
        %v2181 = vadd.f32 %v1920, %v2180
        %v2182 = vpop.f32.mrf.mxu0
        %2183 = vmatprep.mubr.f32.mxu0 0.0
        %2184 = vmatmul.mubr.f32.gmra.mxu0 %v1984
        %v2185 = vpop.f32.mrf.mxu0
        %v2186 = vadd.f32 %v1920, %v2185
        %v2187 = vpop.f32.mrf.mxu0
        %2188 = vmatprep.mubr.f32.mxu0 0.0
        %2189 = vmatmul.mubr.f32.gmra.mxu0 %v1987
        %v2190 = vpop.f32.mrf.mxu0
        %v2191 = vadd.f32 %v1920, %v2190
        %v2192 = vpop.f32.mrf.mxu0
        %2193 = vmatprep.mubr.f32.mxu0 0.0
        %2194 = vmatmul.mubr.f32.gmra.mxu0 %v1990
        %v2195 = vpop.f32.mrf.mxu0
        %v2196 = vadd.f32 %v1920, %v2195
        %v2197 = vpop.f32.mrf.mxu0
        %2198 = vmatprep.mubr.f32.mxu0 0.0
        %2199 = vmatmul.mubr.f32.gmra.mxu0 %v1993
        %v2200 = vpop.f32.mrf.mxu0
        %v2201 = vadd.f32 %v1920, %v2200
        %v2202 = vpop.f32.mrf.mxu0
        %2203 = vmatprep.mubr.f32.mxu0 0.0
        %2204 = vmatmul.mubr.f32.gmra.mxu0 %v1996
        %v2205 = vpop.f32.mrf.mxu0
        %v2206 = vadd.f32 %v1920, %v2205
        %v2207 = vpop.f32.mrf.mxu0
        %2208 = vmatprep.mubr.f32.mxu0 0.0
        %2209 = vmatmul.mubr.f32.gmra.mxu0 %v1999
        %v2210 = vpop.f32.mrf.mxu0
        %v2211 = vadd.f32 %v1920, %v2210
        %v2212 = vpop.f32.mrf.mxu0
        %2213 = vmatprep.mubr.f32.mxu0 0.0
        %2214 = vmatmul.mubr.f32.gmra.mxu0 %v2002
        %v2215 = vpop.f32.mrf.mxu0
        %v2216 = vadd.f32 %v1920, %v2215
        %v2217 = vpop.f32.mrf.mxu0
        %2218 = vmatprep.mubr.f32.mxu0 0.0
        %2219 = vmatmul.mubr.f32.gmra.mxu0 %v2005
        %v2220 = vpop.f32.mrf.mxu0
        %v2221 = vadd.f32 %v1920, %v2220
        %v2222 = vpop.f32.mrf.mxu0
        %2223 = vmatprep.mubr.f32.mxu0 0.0
        %2224 = vmatmul.mubr.f32.gmra.mxu0 %v2008
        %v2225 = vpop.f32.mrf.mxu0
        %v2226 = vadd.f32 %v1920, %v2225
        %v2227 = vpop.f32.mrf.mxu0
        %2228 = vmatprep.mubr.f32.mxu0 0.0
        %2229 = vmatmul.mubr.f32.gmra.mxu0 %v2011
        %v2230 = vpop.f32.mrf.mxu0
        %v2231 = vadd.f32 %v1920, %v2230
        %v2232 = vpop.f32.mrf.mxu0
        %2233 = vmatprep.mubr.f32.mxu0 0.0
        %2234 = vmatmul.mubr.f32.gmra.mxu0 %v2014
        %v2235 = vpop.f32.mrf.mxu0
        %v2236 = vadd.f32 %v1920, %v2235
        %v2237 = vpop.f32.mrf.mxu0
        %2238 = vmatprep.mubr.f32.mxu0 0.0
        %2239 = vmatmul.mubr.f32.gmra.mxu0 %v2017
        %v2240 = vpop.f32.mrf.mxu0
        %v2241 = vadd.f32 %v1920, %v2240
        %v2242 = vpop.f32.mrf.mxu0
        %2243 = vdwg.mxu0
        %v2244 = vmax.f32 %v2086, 0.0
        %v2245 = vmax.f32 %v2091, 0.0
        %v2246 = vmax.f32 %v2096, 0.0
        %v2247 = vmax.f32 %v2101, 0.0
        %v2248 = vmax.f32 %v2106, 0.0
        %v2249 = vmax.f32 %v2111, 0.0
        %v2250 = vmax.f32 %v2116, 0.0
        %v2251 = vmax.f32 %v2121, 0.0
        %v2252 = vmax.f32 %v2126, 0.0
        %v2253 = vmax.f32 %v2131, 0.0
        %v2254 = vmax.f32 %v2136, 0.0
        %v2255 = vmax.f32 %v2141, 0.0
        %v2256 = vmax.f32 %v2146, 0.0
        %v2257 = vmax.f32 %v2151, 0.0
        %v2258 = vmax.f32 %v2156, 0.0
        %v2259 = vmax.f32 %v2161, 0.0
        %v2260 = vmax.f32 %v2166, 0.0
        %v2261 = vmax.f32 %v2171, 0.0
        %v2262 = vmax.f32 %v2176, 0.0
        %v2263 = vmax.f32 %v2181, 0.0
        %v2264 = vmax.f32 %v2186, 0.0
        %v2265 = vmax.f32 %v2191, 0.0
        %v2266 = vmax.f32 %v2196, 0.0
        %v2267 = vmax.f32 %v2201, 0.0
        %v2268 = vmax.f32 %v2206, 0.0
        %v2269 = vmax.f32 %v2211, 0.0
        %v2270 = vmax.f32 %v2216, 0.0
        %v2271 = vmax.f32 %v2221, 0.0
        %v2272 = vmax.f32 %v2226, 0.0
        %v2273 = vmax.f32 %v2231, 0.0
        %v2274 = vmax.f32 %v2236, 0.0
        %v2275 = vmax.f32 %v2241, 0.0
        %2276 = vst.msk [vmem:[#allocation3] sm:$0xff] %vm255, 0.0
        %2277 = vst.msk [vmem:[#allocation3 + $0x8] sm:$0xff] %vm255, 0.0
        %2278 = vst.msk [vmem:[#allocation3 + $0x10] sm:$0x3] %vm258, 0.0
        %s2279 = scalar_lea.vmem [#allocation3], 408
        %2280 = vst.msk [vmem:[%s2279] sm:$0xff] %vm255, 0.0
        %2281 = vst.msk [vmem:[%s2279 + $0x8] sm:$0xff] %vm255, 0.0
        %2282 = vst.msk [vmem:[%s2279 + $0x10] sm:$0x3] %vm258, 0.0
        %s2283 = scalar_lea.vmem [#allocation3], 24
        %2284 = vst.msk [vmem:[%s2283] sm:$0x1] %vm265, 0.0
        %2285 = vst.msk [vmem:[%s2283 + $0x18] sm:$0x1] %vm265, 0.0
        %2286 = vst.msk [vmem:[%s2283 + $0x30] sm:$0x1] %vm265, 0.0
        %2287 = vst.msk [vmem:[%s2283 + $0x48] sm:$0x1] %vm265, 0.0
        %2288 = vst.msk [vmem:[%s2283 + $0x60] sm:$0x1] %vm265, 0.0
        %2289 = vst.msk [vmem:[%s2283 + $0x78] sm:$0x1] %vm265, 0.0
        %2290 = vst.msk [vmem:[%s2283 + $0x90] sm:$0x1] %vm265, 0.0
        %2291 = vst.msk [vmem:[%s2283 + $0xa8] sm:$0x1] %vm265, 0.0
        %2292 = vst.msk [vmem:[%s2283 + $0xc0] sm:$0x1] %vm265, 0.0
        %2293 = vst.msk [vmem:[%s2283 + $0xd8] sm:$0x1] %vm265, 0.0
        %2294 = vst.msk [vmem:[%s2283 + $0xf0] sm:$0x1] %vm265, 0.0
        %2295 = vst.msk [vmem:[%s2283 + $0x108] sm:$0x1] %vm265, 0.0
        %2296 = vst.msk [vmem:[%s2283 + $0x120] sm:$0x1] %vm265, 0.0
        %2297 = vst.msk [vmem:[%s2283 + $0x138] sm:$0x1] %vm265, 0.0
        %2298 = vst.msk [vmem:[%s2283 + $0x150] sm:$0x1] %vm265, 0.0
        %2299 = vst.msk [vmem:[%s2283 + $0x168] sm:$0x1] %vm265, 0.0
        %2300 = vst.msk [vmem:[%s2283 + $0x11] sm:$0x1] %vm265, 0.0
        %2301 = vst.msk [vmem:[%s2283 + $0x29] sm:$0x1] %vm265, 0.0
        %2302 = vst.msk [vmem:[%s2283 + $0x41] sm:$0x1] %vm265, 0.0
        %2303 = vst.msk [vmem:[%s2283 + $0x59] sm:$0x1] %vm265, 0.0
        %2304 = vst.msk [vmem:[%s2283 + $0x71] sm:$0x1] %vm265, 0.0
        %2305 = vst.msk [vmem:[%s2283 + $0x89] sm:$0x1] %vm265, 0.0
        %2306 = vst.msk [vmem:[%s2283 + $0xa1] sm:$0x1] %vm265, 0.0
        %2307 = vst.msk [vmem:[%s2283 + $0xb9] sm:$0x1] %vm265, 0.0
        %2308 = vst.msk [vmem:[%s2283 + $0xd1] sm:$0x1] %vm265, 0.0
        %2309 = vst.msk [vmem:[%s2283 + $0xe9] sm:$0x1] %vm265, 0.0
        %2310 = vst.msk [vmem:[%s2283 + $0x101] sm:$0x1] %vm265, 0.0
        %2311 = vst.msk [vmem:[%s2283 + $0x119] sm:$0x1] %vm265, 0.0
        %2312 = vst.msk [vmem:[%s2283 + $0x131] sm:$0x1] %vm265, 0.0
        %2313 = vst.msk [vmem:[%s2283 + $0x149] sm:$0x1] %vm265, 0.0
        %2314 = vst.msk [vmem:[%s2283 + $0x161] sm:$0x1] %vm265, 0.0
        %2315 = vst.msk [vmem:[%s2283 + $0x179] sm:$0x1] %vm265, 0.0
        %2316 = vst.msk [vmem:[%s2283 + $0x1] sm:$0xff] %vm255, %v2244
        %2317 = vst.msk [vmem:[%s2283 + $0x9] sm:$0xff] %vm255, %v2245
        %2318 = vst.msk [vmem:[%s2283 + $0x19] sm:$0xff] %vm255, %v2246
        %2319 = vst.msk [vmem:[%s2283 + $0x21] sm:$0xff] %vm255, %v2247
        %2320 = vst.msk [vmem:[%s2283 + $0x31] sm:$0xff] %vm255, %v2248
        %2321 = vst.msk [vmem:[%s2283 + $0x39] sm:$0xff] %vm255, %v2249
        %2322 = vst.msk [vmem:[%s2283 + $0x49] sm:$0xff] %vm255, %v2250
        %2323 = vst.msk [vmem:[%s2283 + $0x51] sm:$0xff] %vm255, %v2251
        %2324 = vst.msk [vmem:[%s2283 + $0x61] sm:$0xff] %vm255, %v2252
        %2325 = vst.msk [vmem:[%s2283 + $0x69] sm:$0xff] %vm255, %v2253
        %2326 = vst.msk [vmem:[%s2283 + $0x79] sm:$0xff] %vm255, %v2254
        %2327 = vst.msk [vmem:[%s2283 + $0x81] sm:$0xff] %vm255, %v2255
        %2328 = vst.msk [vmem:[%s2283 + $0x91] sm:$0xff] %vm255, %v2256
        %2329 = vst.msk [vmem:[%s2283 + $0x99] sm:$0xff] %vm255, %v2257
        %2330 = vst.msk [vmem:[%s2283 + $0xa9] sm:$0xff] %vm255, %v2258
        %2331 = vst.msk [vmem:[%s2283 + $0xb1] sm:$0xff] %vm255, %v2259
        %2332 = vst.msk [vmem:[%s2283 + $0xc1] sm:$0xff] %vm255, %v2260
        %2333 = vst.msk [vmem:[%s2283 + $0xc9] sm:$0xff] %vm255, %v2261
        %2334 = vst.msk [vmem:[%s2283 + $0xd9] sm:$0xff] %vm255, %v2262
        %2335 = vst.msk [vmem:[%s2283 + $0xe1] sm:$0xff] %vm255, %v2263
        %2336 = vst.msk [vmem:[%s2283 + $0xf1] sm:$0xff] %vm255, %v2264
        %2337 = vst.msk [vmem:[%s2283 + $0xf9] sm:$0xff] %vm255, %v2265
        %2338 = vst.msk [vmem:[%s2283 + $0x109] sm:$0xff] %vm255, %v2266
        %2339 = vst.msk [vmem:[%s2283 + $0x111] sm:$0xff] %vm255, %v2267
        %2340 = vst.msk [vmem:[%s2283 + $0x121] sm:$0xff] %vm255, %v2268
        %2341 = vst.msk [vmem:[%s2283 + $0x129] sm:$0xff] %vm255, %v2269
        %2342 = vst.msk [vmem:[%s2283 + $0x139] sm:$0xff] %vm255, %v2270
        %2343 = vst.msk [vmem:[%s2283 + $0x141] sm:$0xff] %vm255, %v2271
        %2344 = vst.msk [vmem:[%s2283 + $0x151] sm:$0xff] %vm255, %v2272
        %2345 = vst.msk [vmem:[%s2283 + $0x159] sm:$0xff] %vm255, %v2273
        %2346 = vst.msk [vmem:[%s2283 + $0x169] sm:$0xff] %vm255, %v2274
        %2347 = vst.msk [vmem:[%s2283 + $0x171] sm:$0xff] %vm255, %v2275
        %v2348 = vld [vmem:[#allocation3] sm:$0xff]
        %v2349 = vld [vmem:[#allocation3 + $0x8] sm:$0xff]
        %v2350 = vld [vmem:[#allocation3 + $0x18] sm:$0xff]
        %v2351 = vld [vmem:[#allocation3 + $0x20] sm:$0xff]
        %v2352 = vld [vmem:[#allocation3 + $0x30] sm:$0xff]
        %v2353 = vld [vmem:[#allocation3 + $0x38] sm:$0xff]
        %v2354 = vld [vmem:[#allocation3 + $0x48] sm:$0xff]
        %v2355 = vld [vmem:[#allocation3 + $0x50] sm:$0xff]
        %v2356 = vld [vmem:[#allocation3 + $0x60] sm:$0xff]
        %v2357 = vld [vmem:[#allocation3 + $0x68] sm:$0xff]
        %v2358 = vld [vmem:[#allocation3 + $0x78] sm:$0xff]
        %v2359 = vld [vmem:[#allocation3 + $0x80] sm:$0xff]
        %v2360 = vld [vmem:[#allocation3 + $0x90] sm:$0xff]
        %v2361 = vld [vmem:[#allocation3 + $0x98] sm:$0xff]
        %v2362 = vld [vmem:[#allocation3 + $0xa8] sm:$0xff]
        %v2363 = vld [vmem:[#allocation3 + $0xb0] sm:$0xff]
        %v2364 = vld [vmem:[#allocation3 + $0xc0] sm:$0xff]
        %v2365 = vld [vmem:[#allocation3 + $0xc8] sm:$0xff]
        %v2366 = vld [vmem:[#allocation3 + $0xd8] sm:$0xff]
        %v2367 = vld [vmem:[#allocation3 + $0xe0] sm:$0xff]
        %v2368 = vld [vmem:[#allocation3 + $0xf0] sm:$0xff]
        %v2369 = vld [vmem:[#allocation3 + $0xf8] sm:$0xff]
        %v2370 = vld [vmem:[#allocation3 + $0x108] sm:$0xff]
        %v2371 = vld [vmem:[#allocation3 + $0x110] sm:$0xff]
        %v2372 = vld [vmem:[#allocation3 + $0x120] sm:$0xff]
        %v2373 = vld [vmem:[#allocation3 + $0x128] sm:$0xff]
        %v2374 = vld [vmem:[#allocation3 + $0x138] sm:$0xff]
        %v2375 = vld [vmem:[#allocation3 + $0x140] sm:$0xff]
        %v2376 = vld [vmem:[#allocation3 + $0x150] sm:$0xff]
        %v2377 = vld [vmem:[#allocation3 + $0x158] sm:$0xff]
        %v2378 = vld [vmem:[#allocation3 + $0x168] sm:$0xff]
        %v2379 = vld [vmem:[#allocation3 + $0x170] sm:$0xff]
        %v2380 = vld [vmem:[#allocation3 + $0x1] sm:$0xff]
        %v2381 = vld [vmem:[#allocation3 + $0x9] sm:$0xff]
        %v2382 = vld [vmem:[#allocation3 + $0x19] sm:$0xff]
        %v2383 = vld [vmem:[#allocation3 + $0x21] sm:$0xff]
        %v2384 = vld [vmem:[#allocation3 + $0x31] sm:$0xff]
        %v2385 = vld [vmem:[#allocation3 + $0x39] sm:$0xff]
        %v2386 = vld [vmem:[#allocation3 + $0x49] sm:$0xff]
        %v2387 = vld [vmem:[#allocation3 + $0x51] sm:$0xff]
        %v2388 = vld [vmem:[#allocation3 + $0x61] sm:$0xff]
        %v2389 = vld [vmem:[#allocation3 + $0x69] sm:$0xff]
        %v2390 = vld [vmem:[#allocation3 + $0x79] sm:$0xff]
        %v2391 = vld [vmem:[#allocation3 + $0x81] sm:$0xff]
        %v2392 = vld [vmem:[#allocation3 + $0x91] sm:$0xff]
        %v2393 = vld [vmem:[#allocation3 + $0x99] sm:$0xff]
        %v2394 = vld [vmem:[#allocation3 + $0xa9] sm:$0xff]
        %v2395 = vld [vmem:[#allocation3 + $0xb1] sm:$0xff]
        %v2396 = vld [vmem:[#allocation3 + $0xc1] sm:$0xff]
        %v2397 = vld [vmem:[#allocation3 + $0xc9] sm:$0xff]
        %v2398 = vld [vmem:[#allocation3 + $0xd9] sm:$0xff]
        %v2399 = vld [vmem:[#allocation3 + $0xe1] sm:$0xff]
        %v2400 = vld [vmem:[#allocation3 + $0xf1] sm:$0xff]
        %v2401 = vld [vmem:[#allocation3 + $0xf9] sm:$0xff]
        %v2402 = vld [vmem:[#allocation3 + $0x109] sm:$0xff]
        %v2403 = vld [vmem:[#allocation3 + $0x111] sm:$0xff]
        %v2404 = vld [vmem:[#allocation3 + $0x121] sm:$0xff]
        %v2405 = vld [vmem:[#allocation3 + $0x129] sm:$0xff]
        %v2406 = vld [vmem:[#allocation3 + $0x139] sm:$0xff]
        %v2407 = vld [vmem:[#allocation3 + $0x141] sm:$0xff]
        %v2408 = vld [vmem:[#allocation3 + $0x151] sm:$0xff]
        %v2409 = vld [vmem:[#allocation3 + $0x159] sm:$0xff]
        %v2410 = vld [vmem:[#allocation3 + $0x169] sm:$0xff]
        %v2411 = vld [vmem:[#allocation3 + $0x171] sm:$0xff]
        %v2412 = vld [vmem:[#allocation3 + $0x2] sm:$0xff]
        %v2413 = vld [vmem:[#allocation3 + $0xa] sm:$0xff]
        %v2414 = vld [vmem:[#allocation3 + $0x1a] sm:$0xff]
        %v2415 = vld [vmem:[#allocation3 + $0x22] sm:$0xff]
        %v2416 = vld [vmem:[#allocation3 + $0x32] sm:$0xff]
        %v2417 = vld [vmem:[#allocation3 + $0x3a] sm:$0xff]
        %v2418 = vld [vmem:[#allocation3 + $0x4a] sm:$0xff]
        %v2419 = vld [vmem:[#allocation3 + $0x52] sm:$0xff]
        %v2420 = vld [vmem:[#allocation3 + $0x62] sm:$0xff]
        %v2421 = vld [vmem:[#allocation3 + $0x6a] sm:$0xff]
        %v2422 = vld [vmem:[#allocation3 + $0x7a] sm:$0xff]
        %v2423 = vld [vmem:[#allocation3 + $0x82] sm:$0xff]
        %v2424 = vld [vmem:[#allocation3 + $0x92] sm:$0xff]
        %v2425 = vld [vmem:[#allocation3 + $0x9a] sm:$0xff]
        %v2426 = vld [vmem:[#allocation3 + $0xaa] sm:$0xff]
        %v2427 = vld [vmem:[#allocation3 + $0xb2] sm:$0xff]
        %v2428 = vld [vmem:[#allocation3 + $0xc2] sm:$0xff]
        %v2429 = vld [vmem:[#allocation3 + $0xca] sm:$0xff]
        %v2430 = vld [vmem:[#allocation3 + $0xda] sm:$0xff]
        %v2431 = vld [vmem:[#allocation3 + $0xe2] sm:$0xff]
        %v2432 = vld [vmem:[#allocation3 + $0xf2] sm:$0xff]
        %v2433 = vld [vmem:[#allocation3 + $0xfa] sm:$0xff]
        %v2434 = vld [vmem:[#allocation3 + $0x10a] sm:$0xff]
        %v2435 = vld [vmem:[#allocation3 + $0x112] sm:$0xff]
        %v2436 = vld [vmem:[#allocation3 + $0x122] sm:$0xff]
        %v2437 = vld [vmem:[#allocation3 + $0x12a] sm:$0xff]
        %v2438 = vld [vmem:[#allocation3 + $0x13a] sm:$0xff]
        %v2439 = vld [vmem:[#allocation3 + $0x142] sm:$0xff]
        %v2440 = vld [vmem:[#allocation3 + $0x152] sm:$0xff]
        %v2441 = vld [vmem:[#allocation3 + $0x15a] sm:$0xff]
        %v2442 = vld [vmem:[#allocation3 + $0x16a] sm:$0xff]
        %v2443 = vld [vmem:[#allocation3 + $0x172] sm:$0xff]
        %v2444 = vld [vmem:[%s2283] sm:$0xff]
        %v2445 = vld [vmem:[%s2283 + $0x8] sm:$0xff]
        %v2446 = vld [vmem:[%s2283 + $0x18] sm:$0xff]
        %v2447 = vld [vmem:[%s2283 + $0x20] sm:$0xff]
        %v2448 = vld [vmem:[%s2283 + $0x30] sm:$0xff]
        %v2449 = vld [vmem:[%s2283 + $0x38] sm:$0xff]
        %v2450 = vld [vmem:[%s2283 + $0x48] sm:$0xff]
        %v2451 = vld [vmem:[%s2283 + $0x50] sm:$0xff]
        %v2452 = vld [vmem:[%s2283 + $0x60] sm:$0xff]
        %v2453 = vld [vmem:[%s2283 + $0x68] sm:$0xff]
        %v2454 = vld [vmem:[%s2283 + $0x78] sm:$0xff]
        %v2455 = vld [vmem:[%s2283 + $0x80] sm:$0xff]
        %v2456 = vld [vmem:[%s2283 + $0x90] sm:$0xff]
        %v2457 = vld [vmem:[%s2283 + $0x98] sm:$0xff]
        %v2458 = vld [vmem:[%s2283 + $0xa8] sm:$0xff]
        %v2459 = vld [vmem:[%s2283 + $0xb0] sm:$0xff]
        %v2460 = vld [vmem:[%s2283 + $0xc0] sm:$0xff]
        %v2461 = vld [vmem:[%s2283 + $0xc8] sm:$0xff]
        %v2462 = vld [vmem:[%s2283 + $0xd8] sm:$0xff]
        %v2463 = vld [vmem:[%s2283 + $0xe0] sm:$0xff]
        %v2464 = vld [vmem:[%s2283 + $0xf0] sm:$0xff]
        %v2465 = vld [vmem:[%s2283 + $0xf8] sm:$0xff]
        %v2466 = vld [vmem:[%s2283 + $0x108] sm:$0xff]
        %v2467 = vld [vmem:[%s2283 + $0x110] sm:$0xff]
        %v2468 = vld [vmem:[%s2283 + $0x120] sm:$0xff]
        %v2469 = vld [vmem:[%s2283 + $0x128] sm:$0xff]
        %v2470 = vld [vmem:[%s2283 + $0x138] sm:$0xff]
        %v2471 = vld [vmem:[%s2283 + $0x140] sm:$0xff]
        %v2472 = vld [vmem:[%s2283 + $0x150] sm:$0xff]
        %v2473 = vld [vmem:[%s2283 + $0x158] sm:$0xff]
        %v2474 = vld [vmem:[%s2283 + $0x168] sm:$0xff]
        %v2475 = vld [vmem:[%s2283 + $0x170] sm:$0xff]
        %v2476 = vld [vmem:[%s2283 + $0x1] sm:$0xff]
        %v2477 = vld [vmem:[%s2283 + $0x9] sm:$0xff]
        %v2478 = vld [vmem:[%s2283 + $0x19] sm:$0xff]
        %v2479 = vld [vmem:[%s2283 + $0x21] sm:$0xff]
        %v2480 = vld [vmem:[%s2283 + $0x31] sm:$0xff]
        %v2481 = vld [vmem:[%s2283 + $0x39] sm:$0xff]
        %v2482 = vld [vmem:[%s2283 + $0x49] sm:$0xff]
        %v2483 = vld [vmem:[%s2283 + $0x51] sm:$0xff]
        %v2484 = vld [vmem:[%s2283 + $0x61] sm:$0xff]
        %v2485 = vld [vmem:[%s2283 + $0x69] sm:$0xff]
        %v2486 = vld [vmem:[%s2283 + $0x79] sm:$0xff]
        %v2487 = vld [vmem:[%s2283 + $0x81] sm:$0xff]
        %v2488 = vld [vmem:[%s2283 + $0x91] sm:$0xff]
        %v2489 = vld [vmem:[%s2283 + $0x99] sm:$0xff]
        %v2490 = vld [vmem:[%s2283 + $0xa9] sm:$0xff]
        %v2491 = vld [vmem:[%s2283 + $0xb1] sm:$0xff]
        %v2492 = vld [vmem:[%s2283 + $0xc1] sm:$0xff]
        %v2493 = vld [vmem:[%s2283 + $0xc9] sm:$0xff]
        %v2494 = vld [vmem:[%s2283 + $0xd9] sm:$0xff]
        %v2495 = vld [vmem:[%s2283 + $0xe1] sm:$0xff]
        %v2496 = vld [vmem:[%s2283 + $0xf1] sm:$0xff]
        %v2497 = vld [vmem:[%s2283 + $0xf9] sm:$0xff]
        %v2498 = vld [vmem:[%s2283 + $0x109] sm:$0xff]
        %v2499 = vld [vmem:[%s2283 + $0x111] sm:$0xff]
        %v2500 = vld [vmem:[%s2283 + $0x121] sm:$0xff]
        %v2501 = vld [vmem:[%s2283 + $0x129] sm:$0xff]
        %v2502 = vld [vmem:[%s2283 + $0x139] sm:$0xff]
        %v2503 = vld [vmem:[%s2283 + $0x141] sm:$0xff]
        %v2504 = vld [vmem:[%s2283 + $0x151] sm:$0xff]
        %v2505 = vld [vmem:[%s2283 + $0x159] sm:$0xff]
        %v2506 = vld [vmem:[%s2283 + $0x169] sm:$0xff]
        %v2507 = vld [vmem:[%s2283 + $0x171] sm:$0xff]
        %v2508 = vld [vmem:[%s2283 + $0x2] sm:$0xff]
        %v2509 = vld [vmem:[%s2283 + $0xa] sm:$0xff]
        %v2510 = vld [vmem:[%s2283 + $0x1a] sm:$0xff]
        %v2511 = vld [vmem:[%s2283 + $0x22] sm:$0xff]
        %v2512 = vld [vmem:[%s2283 + $0x32] sm:$0xff]
        %v2513 = vld [vmem:[%s2283 + $0x3a] sm:$0xff]
        %v2514 = vld [vmem:[%s2283 + $0x4a] sm:$0xff]
        %v2515 = vld [vmem:[%s2283 + $0x52] sm:$0xff]
        %v2516 = vld [vmem:[%s2283 + $0x62] sm:$0xff]
        %v2517 = vld [vmem:[%s2283 + $0x6a] sm:$0xff]
        %v2518 = vld [vmem:[%s2283 + $0x7a] sm:$0xff]
        %v2519 = vld [vmem:[%s2283 + $0x82] sm:$0xff]
        %v2520 = vld [vmem:[%s2283 + $0x92] sm:$0xff]
        %v2521 = vld [vmem:[%s2283 + $0x9a] sm:$0xff]
        %v2522 = vld [vmem:[%s2283 + $0xaa] sm:$0xff]
        %v2523 = vld [vmem:[%s2283 + $0xb2] sm:$0xff]
        %v2524 = vld [vmem:[%s2283 + $0xc2] sm:$0xff]
        %v2525 = vld [vmem:[%s2283 + $0xca] sm:$0xff]
        %v2526 = vld [vmem:[%s2283 + $0xda] sm:$0xff]
        %v2527 = vld [vmem:[%s2283 + $0xe2] sm:$0xff]
        %v2528 = vld [vmem:[%s2283 + $0xf2] sm:$0xff]
        %v2529 = vld [vmem:[%s2283 + $0xfa] sm:$0xff]
        %v2530 = vld [vmem:[%s2283 + $0x10a] sm:$0xff]
        %v2531 = vld [vmem:[%s2283 + $0x112] sm:$0xff]
        %v2532 = vld [vmem:[%s2283 + $0x122] sm:$0xff]
        %v2533 = vld [vmem:[%s2283 + $0x12a] sm:$0xff]
        %v2534 = vld [vmem:[%s2283 + $0x13a] sm:$0xff]
        %v2535 = vld [vmem:[%s2283 + $0x142] sm:$0xff]
        %v2536 = vld [vmem:[%s2283 + $0x152] sm:$0xff]
        %v2537 = vld [vmem:[%s2283 + $0x15a] sm:$0xff]
        %v2538 = vld [vmem:[%s2283 + $0x16a] sm:$0xff]
        %v2539 = vld [vmem:[%s2283 + $0x172] sm:$0xff]
        %s2540 = scalar_lea.vmem [#allocation3], 48
        %v2541 = vld [vmem:[%s2540] sm:$0xff]
        %v2542 = vld [vmem:[%s2540 + $0x8] sm:$0xff]
        %v2543 = vld [vmem:[%s2540 + $0x18] sm:$0xff]
        %v2544 = vld [vmem:[%s2540 + $0x20] sm:$0xff]
        %v2545 = vld [vmem:[%s2540 + $0x30] sm:$0xff]
        %v2546 = vld [vmem:[%s2540 + $0x38] sm:$0xff]
        %v2547 = vld [vmem:[%s2540 + $0x48] sm:$0xff]
        %v2548 = vld [vmem:[%s2540 + $0x50] sm:$0xff]
        %v2549 = vld [vmem:[%s2540 + $0x60] sm:$0xff]
        %v2550 = vld [vmem:[%s2540 + $0x68] sm:$0xff]
        %v2551 = vld [vmem:[%s2540 + $0x78] sm:$0xff]
        %v2552 = vld [vmem:[%s2540 + $0x80] sm:$0xff]
        %v2553 = vld [vmem:[%s2540 + $0x90] sm:$0xff]
        %v2554 = vld [vmem:[%s2540 + $0x98] sm:$0xff]
        %v2555 = vld [vmem:[%s2540 + $0xa8] sm:$0xff]
        %v2556 = vld [vmem:[%s2540 + $0xb0] sm:$0xff]
        %v2557 = vld [vmem:[%s2540 + $0xc0] sm:$0xff]
        %v2558 = vld [vmem:[%s2540 + $0xc8] sm:$0xff]
        %v2559 = vld [vmem:[%s2540 + $0xd8] sm:$0xff]
        %v2560 = vld [vmem:[%s2540 + $0xe0] sm:$0xff]
        %v2561 = vld [vmem:[%s2540 + $0xf0] sm:$0xff]
        %v2562 = vld [vmem:[%s2540 + $0xf8] sm:$0xff]
        %v2563 = vld [vmem:[%s2540 + $0x108] sm:$0xff]
        %v2564 = vld [vmem:[%s2540 + $0x110] sm:$0xff]
        %v2565 = vld [vmem:[%s2540 + $0x120] sm:$0xff]
        %v2566 = vld [vmem:[%s2540 + $0x128] sm:$0xff]
        %v2567 = vld [vmem:[%s2540 + $0x138] sm:$0xff]
        %v2568 = vld [vmem:[%s2540 + $0x140] sm:$0xff]
        %v2569 = vld [vmem:[%s2540 + $0x150] sm:$0xff]
        %v2570 = vld [vmem:[%s2540 + $0x158] sm:$0xff]
        %v2571 = vld [vmem:[%s2540 + $0x168] sm:$0xff]
        %v2572 = vld [vmem:[%s2540 + $0x170] sm:$0xff]
        %v2573 = vld [vmem:[%s2540 + $0x1] sm:$0xff]
        %v2574 = vld [vmem:[%s2540 + $0x9] sm:$0xff]
        %v2575 = vld [vmem:[%s2540 + $0x19] sm:$0xff]
        %v2576 = vld [vmem:[%s2540 + $0x21] sm:$0xff]
        %v2577 = vld [vmem:[%s2540 + $0x31] sm:$0xff]
        %v2578 = vld [vmem:[%s2540 + $0x39] sm:$0xff]
        %v2579 = vld [vmem:[%s2540 + $0x49] sm:$0xff]
        %v2580 = vld [vmem:[%s2540 + $0x51] sm:$0xff]
        %v2581 = vld [vmem:[%s2540 + $0x61] sm:$0xff]
        %v2582 = vld [vmem:[%s2540 + $0x69] sm:$0xff]
        %v2583 = vld [vmem:[%s2540 + $0x79] sm:$0xff]
        %v2584 = vld [vmem:[%s2540 + $0x81] sm:$0xff]
        %v2585 = vld [vmem:[%s2540 + $0x91] sm:$0xff]
        %v2586 = vld [vmem:[%s2540 + $0x99] sm:$0xff]
        %v2587 = vld [vmem:[%s2540 + $0xa9] sm:$0xff]
        %v2588 = vld [vmem:[%s2540 + $0xb1] sm:$0xff]
        %v2589 = vld [vmem:[%s2540 + $0xc1] sm:$0xff]
        %v2590 = vld [vmem:[%s2540 + $0xc9] sm:$0xff]
        %v2591 = vld [vmem:[%s2540 + $0xd9] sm:$0xff]
        %v2592 = vld [vmem:[%s2540 + $0xe1] sm:$0xff]
        %v2593 = vld [vmem:[%s2540 + $0xf1] sm:$0xff]
        %v2594 = vld [vmem:[%s2540 + $0xf9] sm:$0xff]
        %v2595 = vld [vmem:[%s2540 + $0x109] sm:$0xff]
        %v2596 = vld [vmem:[%s2540 + $0x111] sm:$0xff]
        %v2597 = vld [vmem:[%s2540 + $0x121] sm:$0xff]
        %v2598 = vld [vmem:[%s2540 + $0x129] sm:$0xff]
        %v2599 = vld [vmem:[%s2540 + $0x139] sm:$0xff]
        %v2600 = vld [vmem:[%s2540 + $0x141] sm:$0xff]
        %v2601 = vld [vmem:[%s2540 + $0x151] sm:$0xff]
        %v2602 = vld [vmem:[%s2540 + $0x159] sm:$0xff]
        %v2603 = vld [vmem:[%s2540 + $0x169] sm:$0xff]
        %v2604 = vld [vmem:[%s2540 + $0x171] sm:$0xff]
        %v2605 = vld [vmem:[%s2540 + $0x2] sm:$0xff]
        %v2606 = vld [vmem:[%s2540 + $0xa] sm:$0xff]
        %v2607 = vld [vmem:[%s2540 + $0x1a] sm:$0xff]
        %v2608 = vld [vmem:[%s2540 + $0x22] sm:$0xff]
        %v2609 = vld [vmem:[%s2540 + $0x32] sm:$0xff]
        %v2610 = vld [vmem:[%s2540 + $0x3a] sm:$0xff]
        %v2611 = vld [vmem:[%s2540 + $0x4a] sm:$0xff]
        %v2612 = vld [vmem:[%s2540 + $0x52] sm:$0xff]
        %v2613 = vld [vmem:[%s2540 + $0x62] sm:$0xff]
        %v2614 = vld [vmem:[%s2540 + $0x6a] sm:$0xff]
        %v2615 = vld [vmem:[%s2540 + $0x7a] sm:$0xff]
        %v2616 = vld [vmem:[%s2540 + $0x82] sm:$0xff]
        %v2617 = vld [vmem:[%s2540 + $0x92] sm:$0xff]
        %v2618 = vld [vmem:[%s2540 + $0x9a] sm:$0xff]
        %v2619 = vld [vmem:[%s2540 + $0xaa] sm:$0xff]
        %v2620 = vld [vmem:[%s2540 + $0xb2] sm:$0xff]
        %v2621 = vld [vmem:[%s2540 + $0xc2] sm:$0xff]
        %v2622 = vld [vmem:[%s2540 + $0xca] sm:$0xff]
        %v2623 = vld [vmem:[%s2540 + $0xda] sm:$0xff]
        %v2624 = vld [vmem:[%s2540 + $0xe2] sm:$0xff]
        %v2625 = vld [vmem:[%s2540 + $0xf2] sm:$0xff]
        %v2626 = vld [vmem:[%s2540 + $0xfa] sm:$0xff]
        %v2627 = vld [vmem:[%s2540 + $0x10a] sm:$0xff]
        %v2628 = vld [vmem:[%s2540 + $0x112] sm:$0xff]
        %v2629 = vld [vmem:[%s2540 + $0x122] sm:$0xff]
        %v2630 = vld [vmem:[%s2540 + $0x12a] sm:$0xff]
        %v2631 = vld [vmem:[%s2540 + $0x13a] sm:$0xff]
        %v2632 = vld [vmem:[%s2540 + $0x142] sm:$0xff]
        %v2633 = vld [vmem:[%s2540 + $0x152] sm:$0xff]
        %v2634 = vld [vmem:[%s2540 + $0x15a] sm:$0xff]
        %v2635 = vld [vmem:[%s2540 + $0x16a] sm:$0xff]
        %v2636 = vld [vmem:[%s2540 + $0x172] sm:$0xff]
        %2669 = vrot.lane.b32.xlu0 %v2380, 8
        %v2670 = vpop.permute.xlu0 %2669
        %2671 = vrot.lane.b32.xlu0 %v2381, 8
        %v2672 = vpop.permute.xlu0 %2671
        %2673 = vrot.lane.b32.xlu0 %v2382, 8
        %v2674 = vpop.permute.xlu0 %2673
        %2675 = vrot.lane.b32.xlu0 %v2383, 8
        %v2676 = vpop.permute.xlu0 %2675
        %2677 = vrot.lane.b32.xlu0 %v2384, 8
        %v2678 = vpop.permute.xlu0 %2677
        %2679 = vrot.lane.b32.xlu0 %v2385, 8
        %v2680 = vpop.permute.xlu0 %2679
        %2681 = vrot.lane.b32.xlu0 %v2386, 8
        %v2682 = vpop.permute.xlu0 %2681
        %2683 = vrot.lane.b32.xlu0 %v2387, 8
        %v2684 = vpop.permute.xlu0 %2683
        %2685 = vrot.lane.b32.xlu0 %v2388, 8
        %v2686 = vpop.permute.xlu0 %2685
        %2687 = vrot.lane.b32.xlu0 %v2389, 8
        %v2688 = vpop.permute.xlu0 %2687
        %2689 = vrot.lane.b32.xlu0 %v2390, 8
        %v2690 = vpop.permute.xlu0 %2689
        %2691 = vrot.lane.b32.xlu0 %v2391, 8
        %v2692 = vpop.permute.xlu0 %2691
        %2693 = vrot.lane.b32.xlu0 %v2392, 8
        %v2694 = vpop.permute.xlu0 %2693
        %2695 = vrot.lane.b32.xlu0 %v2393, 8
        %v2696 = vpop.permute.xlu0 %2695
        %2697 = vrot.lane.b32.xlu0 %v2394, 8
        %v2698 = vpop.permute.xlu0 %2697
        %2699 = vrot.lane.b32.xlu0 %v2395, 8
        %v2700 = vpop.permute.xlu0 %2699
        %2701 = vrot.lane.b32.xlu0 %v2396, 8
        %v2702 = vpop.permute.xlu0 %2701
        %2703 = vrot.lane.b32.xlu0 %v2397, 8
        %v2704 = vpop.permute.xlu0 %2703
        %2705 = vrot.lane.b32.xlu0 %v2398, 8
        %v2706 = vpop.permute.xlu0 %2705
        %2707 = vrot.lane.b32.xlu0 %v2399, 8
        %v2708 = vpop.permute.xlu0 %2707
        %2709 = vrot.lane.b32.xlu0 %v2400, 8
        %v2710 = vpop.permute.xlu0 %2709
        %2711 = vrot.lane.b32.xlu0 %v2401, 8
        %v2712 = vpop.permute.xlu0 %2711
        %2713 = vrot.lane.b32.xlu0 %v2402, 8
        %v2714 = vpop.permute.xlu0 %2713
        %2715 = vrot.lane.b32.xlu0 %v2403, 8
        %v2716 = vpop.permute.xlu0 %2715
        %2717 = vrot.lane.b32.xlu0 %v2404, 8
        %v2718 = vpop.permute.xlu0 %2717
        %2719 = vrot.lane.b32.xlu0 %v2405, 8
        %v2720 = vpop.permute.xlu0 %2719
        %2721 = vrot.lane.b32.xlu0 %v2406, 8
        %v2722 = vpop.permute.xlu0 %2721
        %2723 = vrot.lane.b32.xlu0 %v2407, 8
        %v2724 = vpop.permute.xlu0 %2723
        %2725 = vrot.lane.b32.xlu0 %v2408, 8
        %v2726 = vpop.permute.xlu0 %2725
        %2727 = vrot.lane.b32.xlu0 %v2409, 8
        %v2728 = vpop.permute.xlu0 %2727
        %2729 = vrot.lane.b32.xlu0 %v2410, 8
        %v2730 = vpop.permute.xlu0 %2729
        %2731 = vrot.lane.b32.xlu0 %v2411, 8
        %v2732 = vpop.permute.xlu0 %2731
        %2797 = vrot.lane.b32.xlu0 %v2412, 16
        %v2798 = vpop.permute.xlu0 %2797
        %2799 = vrot.lane.b32.xlu0 %v2413, 16
        %v2800 = vpop.permute.xlu0 %2799
        %2801 = vrot.lane.b32.xlu0 %v2414, 16
        %v2802 = vpop.permute.xlu0 %2801
        %2803 = vrot.lane.b32.xlu0 %v2415, 16
        %v2804 = vpop.permute.xlu0 %2803
        %2805 = vrot.lane.b32.xlu0 %v2416, 16
        %v2806 = vpop.permute.xlu0 %2805
        %2807 = vrot.lane.b32.xlu0 %v2417, 16
        %v2808 = vpop.permute.xlu0 %2807
        %2809 = vrot.lane.b32.xlu0 %v2418, 16
        %v2810 = vpop.permute.xlu0 %2809
        %2811 = vrot.lane.b32.xlu0 %v2419, 16
        %v2812 = vpop.permute.xlu0 %2811
        %2813 = vrot.lane.b32.xlu0 %v2420, 16
        %v2814 = vpop.permute.xlu0 %2813
        %2815 = vrot.lane.b32.xlu0 %v2421, 16
        %v2816 = vpop.permute.xlu0 %2815
        %2817 = vrot.lane.b32.xlu0 %v2422, 16
        %v2818 = vpop.permute.xlu0 %2817
        %2819 = vrot.lane.b32.xlu0 %v2423, 16
        %v2820 = vpop.permute.xlu0 %2819
        %2821 = vrot.lane.b32.xlu0 %v2424, 16
        %v2822 = vpop.permute.xlu0 %2821
        %2823 = vrot.lane.b32.xlu0 %v2425, 16
        %v2824 = vpop.permute.xlu0 %2823
        %2825 = vrot.lane.b32.xlu0 %v2426, 16
        %v2826 = vpop.permute.xlu0 %2825
        %2827 = vrot.lane.b32.xlu0 %v2427, 16
        %v2828 = vpop.permute.xlu0 %2827
        %2829 = vrot.lane.b32.xlu0 %v2428, 16
        %v2830 = vpop.permute.xlu0 %2829
        %2831 = vrot.lane.b32.xlu0 %v2429, 16
        %v2832 = vpop.permute.xlu0 %2831
        %2833 = vrot.lane.b32.xlu0 %v2430, 16
        %v2834 = vpop.permute.xlu0 %2833
        %2835 = vrot.lane.b32.xlu0 %v2431, 16
        %v2836 = vpop.permute.xlu0 %2835
        %2837 = vrot.lane.b32.xlu0 %v2432, 16
        %v2838 = vpop.permute.xlu0 %2837
        %2839 = vrot.lane.b32.xlu0 %v2433, 16
        %v2840 = vpop.permute.xlu0 %2839
        %2841 = vrot.lane.b32.xlu0 %v2434, 16
        %v2842 = vpop.permute.xlu0 %2841
        %2843 = vrot.lane.b32.xlu0 %v2435, 16
        %v2844 = vpop.permute.xlu0 %2843
        %2845 = vrot.lane.b32.xlu0 %v2436, 16
        %v2846 = vpop.permute.xlu0 %2845
        %2847 = vrot.lane.b32.xlu0 %v2437, 16
        %v2848 = vpop.permute.xlu0 %2847
        %2849 = vrot.lane.b32.xlu0 %v2438, 16
        %v2850 = vpop.permute.xlu0 %2849
        %2851 = vrot.lane.b32.xlu0 %v2439, 16
        %v2852 = vpop.permute.xlu0 %2851
        %2853 = vrot.lane.b32.xlu0 %v2440, 16
        %v2854 = vpop.permute.xlu0 %2853
        %2855 = vrot.lane.b32.xlu0 %v2441, 16
        %v2856 = vpop.permute.xlu0 %2855
        %2857 = vrot.lane.b32.xlu0 %v2442, 16
        %v2858 = vpop.permute.xlu0 %2857
        %2859 = vrot.lane.b32.xlu0 %v2443, 16
        %v2860 = vpop.permute.xlu0 %2859
        %2925 = vrot.lane.b32.xlu0 %v2444, 24
        %v2926 = vpop.permute.xlu0 %2925
        %2927 = vrot.lane.b32.xlu0 %v2445, 24
        %v2928 = vpop.permute.xlu0 %2927
        %2929 = vrot.lane.b32.xlu0 %v2446, 24
        %v2930 = vpop.permute.xlu0 %2929
        %2931 = vrot.lane.b32.xlu0 %v2447, 24
        %v2932 = vpop.permute.xlu0 %2931
        %2933 = vrot.lane.b32.xlu0 %v2448, 24
        %v2934 = vpop.permute.xlu0 %2933
        %2935 = vrot.lane.b32.xlu0 %v2449, 24
        %v2936 = vpop.permute.xlu0 %2935
        %2937 = vrot.lane.b32.xlu0 %v2450, 24
        %v2938 = vpop.permute.xlu0 %2937
        %2939 = vrot.lane.b32.xlu0 %v2451, 24
        %v2940 = vpop.permute.xlu0 %2939
        %2941 = vrot.lane.b32.xlu0 %v2452, 24
        %v2942 = vpop.permute.xlu0 %2941
        %2943 = vrot.lane.b32.xlu0 %v2453, 24
        %v2944 = vpop.permute.xlu0 %2943
        %2945 = vrot.lane.b32.xlu0 %v2454, 24
        %v2946 = vpop.permute.xlu0 %2945
        %2947 = vrot.lane.b32.xlu0 %v2455, 24
        %v2948 = vpop.permute.xlu0 %2947
        %2949 = vrot.lane.b32.xlu0 %v2456, 24
        %v2950 = vpop.permute.xlu0 %2949
        %2951 = vrot.lane.b32.xlu0 %v2457, 24
        %v2952 = vpop.permute.xlu0 %2951
        %2953 = vrot.lane.b32.xlu0 %v2458, 24
        %v2954 = vpop.permute.xlu0 %2953
        %2955 = vrot.lane.b32.xlu0 %v2459, 24
        %v2956 = vpop.permute.xlu0 %2955
        %2957 = vrot.lane.b32.xlu0 %v2460, 24
        %v2958 = vpop.permute.xlu0 %2957
        %2959 = vrot.lane.b32.xlu0 %v2461, 24
        %v2960 = vpop.permute.xlu0 %2959
        %2961 = vrot.lane.b32.xlu0 %v2462, 24
        %v2962 = vpop.permute.xlu0 %2961
        %2963 = vrot.lane.b32.xlu0 %v2463, 24
        %v2964 = vpop.permute.xlu0 %2963
        %2965 = vrot.lane.b32.xlu0 %v2464, 24
        %v2966 = vpop.permute.xlu0 %2965
        %2967 = vrot.lane.b32.xlu0 %v2465, 24
        %v2968 = vpop.permute.xlu0 %2967
        %2969 = vrot.lane.b32.xlu0 %v2466, 24
        %v2970 = vpop.permute.xlu0 %2969
        %2971 = vrot.lane.b32.xlu0 %v2467, 24
        %v2972 = vpop.permute.xlu0 %2971
        %2973 = vrot.lane.b32.xlu0 %v2468, 24
        %v2974 = vpop.permute.xlu0 %2973
        %2975 = vrot.lane.b32.xlu0 %v2469, 24
        %v2976 = vpop.permute.xlu0 %2975
        %2977 = vrot.lane.b32.xlu0 %v2470, 24
        %v2978 = vpop.permute.xlu0 %2977
        %2979 = vrot.lane.b32.xlu0 %v2471, 24
        %v2980 = vpop.permute.xlu0 %2979
        %2981 = vrot.lane.b32.xlu0 %v2472, 24
        %v2982 = vpop.permute.xlu0 %2981
        %2983 = vrot.lane.b32.xlu0 %v2473, 24
        %v2984 = vpop.permute.xlu0 %2983
        %2985 = vrot.lane.b32.xlu0 %v2474, 24
        %v2986 = vpop.permute.xlu0 %2985
        %2987 = vrot.lane.b32.xlu0 %v2475, 24
        %v2988 = vpop.permute.xlu0 %2987
        %3053 = vrot.lane.b32.xlu0 %v2476, 32
        %v3054 = vpop.permute.xlu0 %3053
        %3055 = vrot.lane.b32.xlu0 %v2477, 32
        %v3056 = vpop.permute.xlu0 %3055
        %3057 = vrot.lane.b32.xlu0 %v2478, 32
        %v3058 = vpop.permute.xlu0 %3057
        %3059 = vrot.lane.b32.xlu0 %v2479, 32
        %v3060 = vpop.permute.xlu0 %3059
        %3061 = vrot.lane.b32.xlu0 %v2480, 32
        %v3062 = vpop.permute.xlu0 %3061
        %3063 = vrot.lane.b32.xlu0 %v2481, 32
        %v3064 = vpop.permute.xlu0 %3063
        %3065 = vrot.lane.b32.xlu0 %v2482, 32
        %v3066 = vpop.permute.xlu0 %3065
        %3067 = vrot.lane.b32.xlu0 %v2483, 32
        %v3068 = vpop.permute.xlu0 %3067
        %3069 = vrot.lane.b32.xlu0 %v2484, 32
        %v3070 = vpop.permute.xlu0 %3069
        %3071 = vrot.lane.b32.xlu0 %v2485, 32
        %v3072 = vpop.permute.xlu0 %3071
        %3073 = vrot.lane.b32.xlu0 %v2486, 32
        %v3074 = vpop.permute.xlu0 %3073
        %3075 = vrot.lane.b32.xlu0 %v2487, 32
        %v3076 = vpop.permute.xlu0 %3075
        %3077 = vrot.lane.b32.xlu0 %v2488, 32
        %v3078 = vpop.permute.xlu0 %3077
        %3079 = vrot.lane.b32.xlu0 %v2489, 32
        %v3080 = vpop.permute.xlu0 %3079
        %3081 = vrot.lane.b32.xlu0 %v2490, 32
        %v3082 = vpop.permute.xlu0 %3081
        %3083 = vrot.lane.b32.xlu0 %v2491, 32
        %v3084 = vpop.permute.xlu0 %3083
        %3085 = vrot.lane.b32.xlu0 %v2492, 32
        %v3086 = vpop.permute.xlu0 %3085
        %3087 = vrot.lane.b32.xlu0 %v2493, 32
        %v3088 = vpop.permute.xlu0 %3087
        %3089 = vrot.lane.b32.xlu0 %v2494, 32
        %v3090 = vpop.permute.xlu0 %3089
        %3091 = vrot.lane.b32.xlu0 %v2495, 32
        %v3092 = vpop.permute.xlu0 %3091
        %3093 = vrot.lane.b32.xlu0 %v2496, 32
        %v3094 = vpop.permute.xlu0 %3093
        %3095 = vrot.lane.b32.xlu0 %v2497, 32
        %v3096 = vpop.permute.xlu0 %3095
        %3097 = vrot.lane.b32.xlu0 %v2498, 32
        %v3098 = vpop.permute.xlu0 %3097
        %3099 = vrot.lane.b32.xlu0 %v2499, 32
        %v3100 = vpop.permute.xlu0 %3099
        %3101 = vrot.lane.b32.xlu0 %v2500, 32
        %v3102 = vpop.permute.xlu0 %3101
        %3103 = vrot.lane.b32.xlu0 %v2501, 32
        %v3104 = vpop.permute.xlu0 %3103
        %3105 = vrot.lane.b32.xlu0 %v2502, 32
        %v3106 = vpop.permute.xlu0 %3105
        %3107 = vrot.lane.b32.xlu0 %v2503, 32
        %v3108 = vpop.permute.xlu0 %3107
        %3109 = vrot.lane.b32.xlu0 %v2504, 32
        %v3110 = vpop.permute.xlu0 %3109
        %3111 = vrot.lane.b32.xlu0 %v2505, 32
        %v3112 = vpop.permute.xlu0 %3111
        %3113 = vrot.lane.b32.xlu0 %v2506, 32
        %v3114 = vpop.permute.xlu0 %3113
        %3115 = vrot.lane.b32.xlu0 %v2507, 32
        %v3116 = vpop.permute.xlu0 %3115
        %3181 = vrot.lane.b32.xlu0 %v2508, 40
        %v3182 = vpop.permute.xlu0 %3181
        %3183 = vrot.lane.b32.xlu0 %v2509, 40
        %v3184 = vpop.permute.xlu0 %3183
        %3185 = vrot.lane.b32.xlu0 %v2510, 40
        %v3186 = vpop.permute.xlu0 %3185
        %3187 = vrot.lane.b32.xlu0 %v2511, 40
        %v3188 = vpop.permute.xlu0 %3187
        %3189 = vrot.lane.b32.xlu0 %v2512, 40
        %v3190 = vpop.permute.xlu0 %3189
        %3191 = vrot.lane.b32.xlu0 %v2513, 40
        %v3192 = vpop.permute.xlu0 %3191
        %3193 = vrot.lane.b32.xlu0 %v2514, 40
        %v3194 = vpop.permute.xlu0 %3193
        %3195 = vrot.lane.b32.xlu0 %v2515, 40
        %v3196 = vpop.permute.xlu0 %3195
        %3197 = vrot.lane.b32.xlu0 %v2516, 40
        %v3198 = vpop.permute.xlu0 %3197
        %3199 = vrot.lane.b32.xlu0 %v2517, 40
        %v3200 = vpop.permute.xlu0 %3199
        %3201 = vrot.lane.b32.xlu0 %v2518, 40
        %v3202 = vpop.permute.xlu0 %3201
        %3203 = vrot.lane.b32.xlu0 %v2519, 40
        %v3204 = vpop.permute.xlu0 %3203
        %3205 = vrot.lane.b32.xlu0 %v2520, 40
        %v3206 = vpop.permute.xlu0 %3205
        %3207 = vrot.lane.b32.xlu0 %v2521, 40
        %v3208 = vpop.permute.xlu0 %3207
        %3209 = vrot.lane.b32.xlu0 %v2522, 40
        %v3210 = vpop.permute.xlu0 %3209
        %3211 = vrot.lane.b32.xlu0 %v2523, 40
        %v3212 = vpop.permute.xlu0 %3211
        %3213 = vrot.lane.b32.xlu0 %v2524, 40
        %v3214 = vpop.permute.xlu0 %3213
        %3215 = vrot.lane.b32.xlu0 %v2525, 40
        %v3216 = vpop.permute.xlu0 %3215
        %3217 = vrot.lane.b32.xlu0 %v2526, 40
        %v3218 = vpop.permute.xlu0 %3217
        %3219 = vrot.lane.b32.xlu0 %v2527, 40
        %v3220 = vpop.permute.xlu0 %3219
        %3221 = vrot.lane.b32.xlu0 %v2528, 40
        %v3222 = vpop.permute.xlu0 %3221
        %3223 = vrot.lane.b32.xlu0 %v2529, 40
        %v3224 = vpop.permute.xlu0 %3223
        %3225 = vrot.lane.b32.xlu0 %v2530, 40
        %v3226 = vpop.permute.xlu0 %3225
        %3227 = vrot.lane.b32.xlu0 %v2531, 40
        %v3228 = vpop.permute.xlu0 %3227
        %3229 = vrot.lane.b32.xlu0 %v2532, 40
        %v3230 = vpop.permute.xlu0 %3229
        %3231 = vrot.lane.b32.xlu0 %v2533, 40
        %v3232 = vpop.permute.xlu0 %3231
        %3233 = vrot.lane.b32.xlu0 %v2534, 40
        %v3234 = vpop.permute.xlu0 %3233
        %3235 = vrot.lane.b32.xlu0 %v2535, 40
        %v3236 = vpop.permute.xlu0 %3235
        %3237 = vrot.lane.b32.xlu0 %v2536, 40
        %v3238 = vpop.permute.xlu0 %3237
        %3239 = vrot.lane.b32.xlu0 %v2537, 40
        %v3240 = vpop.permute.xlu0 %3239
        %3241 = vrot.lane.b32.xlu0 %v2538, 40
        %v3242 = vpop.permute.xlu0 %3241
        %3243 = vrot.lane.b32.xlu0 %v2539, 40
        %v3244 = vpop.permute.xlu0 %3243
        %3309 = vrot.lane.b32.xlu0 %v2541, 48
        %v3310 = vpop.permute.xlu0 %3309
        %3311 = vrot.lane.b32.xlu0 %v2542, 48
        %v3312 = vpop.permute.xlu0 %3311
        %3313 = vrot.lane.b32.xlu0 %v2543, 48
        %v3314 = vpop.permute.xlu0 %3313
        %3315 = vrot.lane.b32.xlu0 %v2544, 48
        %v3316 = vpop.permute.xlu0 %3315
        %3317 = vrot.lane.b32.xlu0 %v2545, 48
        %v3318 = vpop.permute.xlu0 %3317
        %3319 = vrot.lane.b32.xlu0 %v2546, 48
        %v3320 = vpop.permute.xlu0 %3319
        %3321 = vrot.lane.b32.xlu0 %v2547, 48
        %v3322 = vpop.permute.xlu0 %3321
        %3323 = vrot.lane.b32.xlu0 %v2548, 48
        %v3324 = vpop.permute.xlu0 %3323
        %3325 = vrot.lane.b32.xlu0 %v2549, 48
        %v3326 = vpop.permute.xlu0 %3325
        %3327 = vrot.lane.b32.xlu0 %v2550, 48
        %v3328 = vpop.permute.xlu0 %3327
        %3329 = vrot.lane.b32.xlu0 %v2551, 48
        %v3330 = vpop.permute.xlu0 %3329
        %3331 = vrot.lane.b32.xlu0 %v2552, 48
        %v3332 = vpop.permute.xlu0 %3331
        %3333 = vrot.lane.b32.xlu0 %v2553, 48
        %v3334 = vpop.permute.xlu0 %3333
        %3335 = vrot.lane.b32.xlu0 %v2554, 48
        %v3336 = vpop.permute.xlu0 %3335
        %3337 = vrot.lane.b32.xlu0 %v2555, 48
        %v3338 = vpop.permute.xlu0 %3337
        %3339 = vrot.lane.b32.xlu0 %v2556, 48
        %v3340 = vpop.permute.xlu0 %3339
        %3341 = vrot.lane.b32.xlu0 %v2557, 48
        %v3342 = vpop.permute.xlu0 %3341
        %3343 = vrot.lane.b32.xlu0 %v2558, 48
        %v3344 = vpop.permute.xlu0 %3343
        %3345 = vrot.lane.b32.xlu0 %v2559, 48
        %v3346 = vpop.permute.xlu0 %3345
        %3347 = vrot.lane.b32.xlu0 %v2560, 48
        %v3348 = vpop.permute.xlu0 %3347
        %3349 = vrot.lane.b32.xlu0 %v2561, 48
        %v3350 = vpop.permute.xlu0 %3349
        %3351 = vrot.lane.b32.xlu0 %v2562, 48
        %v3352 = vpop.permute.xlu0 %3351
        %3353 = vrot.lane.b32.xlu0 %v2563, 48
        %v3354 = vpop.permute.xlu0 %3353
        %3355 = vrot.lane.b32.xlu0 %v2564, 48
        %v3356 = vpop.permute.xlu0 %3355
        %3357 = vrot.lane.b32.xlu0 %v2565, 48
        %v3358 = vpop.permute.xlu0 %3357
        %3359 = vrot.lane.b32.xlu0 %v2566, 48
        %v3360 = vpop.permute.xlu0 %3359
        %3361 = vrot.lane.b32.xlu0 %v2567, 48
        %v3362 = vpop.permute.xlu0 %3361
        %3363 = vrot.lane.b32.xlu0 %v2568, 48
        %v3364 = vpop.permute.xlu0 %3363
        %3365 = vrot.lane.b32.xlu0 %v2569, 48
        %v3366 = vpop.permute.xlu0 %3365
        %3367 = vrot.lane.b32.xlu0 %v2570, 48
        %v3368 = vpop.permute.xlu0 %3367
        %3369 = vrot.lane.b32.xlu0 %v2571, 48
        %v3370 = vpop.permute.xlu0 %3369
        %3371 = vrot.lane.b32.xlu0 %v2572, 48
        %v3372 = vpop.permute.xlu0 %3371
        %3437 = vrot.lane.b32.xlu0 %v2573, 56
        %v3438 = vpop.permute.xlu0 %3437
        %3439 = vrot.lane.b32.xlu0 %v2574, 56
        %v3440 = vpop.permute.xlu0 %3439
        %3441 = vrot.lane.b32.xlu0 %v2575, 56
        %v3442 = vpop.permute.xlu0 %3441
        %3443 = vrot.lane.b32.xlu0 %v2576, 56
        %v3444 = vpop.permute.xlu0 %3443
        %3445 = vrot.lane.b32.xlu0 %v2577, 56
        %v3446 = vpop.permute.xlu0 %3445
        %3447 = vrot.lane.b32.xlu0 %v2578, 56
        %v3448 = vpop.permute.xlu0 %3447
        %3449 = vrot.lane.b32.xlu0 %v2579, 56
        %v3450 = vpop.permute.xlu0 %3449
        %3451 = vrot.lane.b32.xlu0 %v2580, 56
        %v3452 = vpop.permute.xlu0 %3451
        %3453 = vrot.lane.b32.xlu0 %v2581, 56
        %v3454 = vpop.permute.xlu0 %3453
        %3455 = vrot.lane.b32.xlu0 %v2582, 56
        %v3456 = vpop.permute.xlu0 %3455
        %3457 = vrot.lane.b32.xlu0 %v2583, 56
        %v3458 = vpop.permute.xlu0 %3457
        %3459 = vrot.lane.b32.xlu0 %v2584, 56
        %v3460 = vpop.permute.xlu0 %3459
        %3461 = vrot.lane.b32.xlu0 %v2585, 56
        %v3462 = vpop.permute.xlu0 %3461
        %3463 = vrot.lane.b32.xlu0 %v2586, 56
        %v3464 = vpop.permute.xlu0 %3463
        %3465 = vrot.lane.b32.xlu0 %v2587, 56
        %v3466 = vpop.permute.xlu0 %3465
        %3467 = vrot.lane.b32.xlu0 %v2588, 56
        %v3468 = vpop.permute.xlu0 %3467
        %3469 = vrot.lane.b32.xlu0 %v2589, 56
        %v3470 = vpop.permute.xlu0 %3469
        %3471 = vrot.lane.b32.xlu0 %v2590, 56
        %v3472 = vpop.permute.xlu0 %3471
        %3473 = vrot.lane.b32.xlu0 %v2591, 56
        %v3474 = vpop.permute.xlu0 %3473
        %3475 = vrot.lane.b32.xlu0 %v2592, 56
        %v3476 = vpop.permute.xlu0 %3475
        %3477 = vrot.lane.b32.xlu0 %v2593, 56
        %v3478 = vpop.permute.xlu0 %3477
        %3479 = vrot.lane.b32.xlu0 %v2594, 56
        %v3480 = vpop.permute.xlu0 %3479
        %3481 = vrot.lane.b32.xlu0 %v2595, 56
        %v3482 = vpop.permute.xlu0 %3481
        %3483 = vrot.lane.b32.xlu0 %v2596, 56
        %v3484 = vpop.permute.xlu0 %3483
        %3485 = vrot.lane.b32.xlu0 %v2597, 56
        %v3486 = vpop.permute.xlu0 %3485
        %3487 = vrot.lane.b32.xlu0 %v2598, 56
        %v3488 = vpop.permute.xlu0 %3487
        %3489 = vrot.lane.b32.xlu0 %v2599, 56
        %v3490 = vpop.permute.xlu0 %3489
        %3491 = vrot.lane.b32.xlu0 %v2600, 56
        %v3492 = vpop.permute.xlu0 %3491
        %3493 = vrot.lane.b32.xlu0 %v2601, 56
        %v3494 = vpop.permute.xlu0 %3493
        %3495 = vrot.lane.b32.xlu0 %v2602, 56
        %v3496 = vpop.permute.xlu0 %3495
        %3497 = vrot.lane.b32.xlu0 %v2603, 56
        %v3498 = vpop.permute.xlu0 %3497
        %3499 = vrot.lane.b32.xlu0 %v2604, 56
        %v3500 = vpop.permute.xlu0 %3499
        %3565 = vrot.lane.b32.xlu0 %v2605, 64
        %v3566 = vpop.permute.xlu0 %3565
        %3567 = vrot.lane.b32.xlu0 %v2606, 64
        %v3568 = vpop.permute.xlu0 %3567
        %3569 = vrot.lane.b32.xlu0 %v2607, 64
        %v3570 = vpop.permute.xlu0 %3569
        %3571 = vrot.lane.b32.xlu0 %v2608, 64
        %v3572 = vpop.permute.xlu0 %3571
        %3573 = vrot.lane.b32.xlu0 %v2609, 64
        %v3574 = vpop.permute.xlu0 %3573
        %3575 = vrot.lane.b32.xlu0 %v2610, 64
        %v3576 = vpop.permute.xlu0 %3575
        %3577 = vrot.lane.b32.xlu0 %v2611, 64
        %v3578 = vpop.permute.xlu0 %3577
        %3579 = vrot.lane.b32.xlu0 %v2612, 64
        %v3580 = vpop.permute.xlu0 %3579
        %3581 = vrot.lane.b32.xlu0 %v2613, 64
        %v3582 = vpop.permute.xlu0 %3581
        %3583 = vrot.lane.b32.xlu0 %v2614, 64
        %v3584 = vpop.permute.xlu0 %3583
        %3585 = vrot.lane.b32.xlu0 %v2615, 64
        %v3586 = vpop.permute.xlu0 %3585
        %3587 = vrot.lane.b32.xlu0 %v2616, 64
        %v3588 = vpop.permute.xlu0 %3587
        %3589 = vrot.lane.b32.xlu0 %v2617, 64
        %v3590 = vpop.permute.xlu0 %3589
        %3591 = vrot.lane.b32.xlu0 %v2618, 64
        %v3592 = vpop.permute.xlu0 %3591
        %3593 = vrot.lane.b32.xlu0 %v2619, 64
        %v3594 = vpop.permute.xlu0 %3593
        %3595 = vrot.lane.b32.xlu0 %v2620, 64
        %v3596 = vpop.permute.xlu0 %3595
        %3597 = vrot.lane.b32.xlu0 %v2621, 64
        %v3598 = vpop.permute.xlu0 %3597
        %3599 = vrot.lane.b32.xlu0 %v2622, 64
        %v3600 = vpop.permute.xlu0 %3599
        %3601 = vrot.lane.b32.xlu0 %v2623, 64
        %v3602 = vpop.permute.xlu0 %3601
        %3603 = vrot.lane.b32.xlu0 %v2624, 64
        %v3604 = vpop.permute.xlu0 %3603
        %3605 = vrot.lane.b32.xlu0 %v2625, 64
        %v3606 = vpop.permute.xlu0 %3605
        %3607 = vrot.lane.b32.xlu0 %v2626, 64
        %v3608 = vpop.permute.xlu0 %3607
        %3609 = vrot.lane.b32.xlu0 %v2627, 64
        %v3610 = vpop.permute.xlu0 %3609
        %3611 = vrot.lane.b32.xlu0 %v2628, 64
        %v3612 = vpop.permute.xlu0 %3611
        %3613 = vrot.lane.b32.xlu0 %v2629, 64
        %v3614 = vpop.permute.xlu0 %3613
        %3615 = vrot.lane.b32.xlu0 %v2630, 64
        %v3616 = vpop.permute.xlu0 %3615
        %3617 = vrot.lane.b32.xlu0 %v2631, 64
        %v3618 = vpop.permute.xlu0 %3617
        %3619 = vrot.lane.b32.xlu0 %v2632, 64
        %v3620 = vpop.permute.xlu0 %3619
        %3621 = vrot.lane.b32.xlu0 %v2633, 64
        %v3622 = vpop.permute.xlu0 %3621
        %3623 = vrot.lane.b32.xlu0 %v2634, 64
        %v3624 = vpop.permute.xlu0 %3623
        %3625 = vrot.lane.b32.xlu0 %v2635, 64
        %v3626 = vpop.permute.xlu0 %3625
        %3627 = vrot.lane.b32.xlu0 %v2636, 64
        %v3628 = vpop.permute.xlu0 %3627
        %v3661 = vsel %vm255, %v2348, %v2670
        %v3662 = vsel %vm255, %v2349, %v2672
        %v3663 = vsel %vm255, %v2350, %v2674
        %v3664 = vsel %vm255, %v2351, %v2676
        %v3665 = vsel %vm255, %v2352, %v2678
        %v3666 = vsel %vm255, %v2353, %v2680
        %v3667 = vsel %vm255, %v2354, %v2682
        %v3668 = vsel %vm255, %v2355, %v2684
        %v3669 = vsel %vm255, %v2356, %v2686
        %v3670 = vsel %vm255, %v2357, %v2688
        %v3671 = vsel %vm255, %v2358, %v2690
        %v3672 = vsel %vm255, %v2359, %v2692
        %v3673 = vsel %vm255, %v2360, %v2694
        %v3674 = vsel %vm255, %v2361, %v2696
        %v3675 = vsel %vm255, %v2362, %v2698
        %v3676 = vsel %vm255, %v2363, %v2700
        %v3677 = vsel %vm255, %v2364, %v2702
        %v3678 = vsel %vm255, %v2365, %v2704
        %v3679 = vsel %vm255, %v2366, %v2706
        %v3680 = vsel %vm255, %v2367, %v2708
        %v3681 = vsel %vm255, %v2368, %v2710
        %v3682 = vsel %vm255, %v2369, %v2712
        %v3683 = vsel %vm255, %v2370, %v2714
        %v3684 = vsel %vm255, %v2371, %v2716
        %v3685 = vsel %vm255, %v2372, %v2718
        %v3686 = vsel %vm255, %v2373, %v2720
        %v3687 = vsel %vm255, %v2374, %v2722
        %v3688 = vsel %vm255, %v2375, %v2724
        %v3689 = vsel %vm255, %v2376, %v2726
        %v3690 = vsel %vm255, %v2377, %v2728
        %v3691 = vsel %vm255, %v2378, %v2730
        %v3692 = vsel %vm255, %v2379, %v2732
        %v3693 = vsel %vm1675, %v3661, %v2798
        %v3694 = vsel %vm1675, %v3662, %v2800
        %v3695 = vsel %vm1675, %v3663, %v2802
        %v3696 = vsel %vm1675, %v3664, %v2804
        %v3697 = vsel %vm1675, %v3665, %v2806
        %v3698 = vsel %vm1675, %v3666, %v2808
        %v3699 = vsel %vm1675, %v3667, %v2810
        %v3700 = vsel %vm1675, %v3668, %v2812
        %v3701 = vsel %vm1675, %v3669, %v2814
        %v3702 = vsel %vm1675, %v3670, %v2816
        %v3703 = vsel %vm1675, %v3671, %v2818
        %v3704 = vsel %vm1675, %v3672, %v2820
        %v3705 = vsel %vm1675, %v3673, %v2822
        %v3706 = vsel %vm1675, %v3674, %v2824
        %v3707 = vsel %vm1675, %v3675, %v2826
        %v3708 = vsel %vm1675, %v3676, %v2828
        %v3709 = vsel %vm1675, %v3677, %v2830
        %v3710 = vsel %vm1675, %v3678, %v2832
        %v3711 = vsel %vm1675, %v3679, %v2834
        %v3712 = vsel %vm1675, %v3680, %v2836
        %v3713 = vsel %vm1675, %v3681, %v2838
        %v3714 = vsel %vm1675, %v3682, %v2840
        %v3715 = vsel %vm1675, %v3683, %v2842
        %v3716 = vsel %vm1675, %v3684, %v2844
        %v3717 = vsel %vm1675, %v3685, %v2846
        %v3718 = vsel %vm1675, %v3686, %v2848
        %v3719 = vsel %vm1675, %v3687, %v2850
        %v3720 = vsel %vm1675, %v3688, %v2852
        %v3721 = vsel %vm1675, %v3689, %v2854
        %v3722 = vsel %vm1675, %v3690, %v2856
        %v3723 = vsel %vm1675, %v3691, %v2858
        %v3724 = vsel %vm1675, %v3692, %v2860
        %v3725 = vsel %vm1708, %v3693, %v2926
        %v3726 = vsel %vm1708, %v3694, %v2928
        %v3727 = vsel %vm1708, %v3695, %v2930
        %v3728 = vsel %vm1708, %v3696, %v2932
        %v3729 = vsel %vm1708, %v3697, %v2934
        %v3730 = vsel %vm1708, %v3698, %v2936
        %v3731 = vsel %vm1708, %v3699, %v2938
        %v3732 = vsel %vm1708, %v3700, %v2940
        %v3733 = vsel %vm1708, %v3701, %v2942
        %v3734 = vsel %vm1708, %v3702, %v2944
        %v3735 = vsel %vm1708, %v3703, %v2946
        %v3736 = vsel %vm1708, %v3704, %v2948
        %v3737 = vsel %vm1708, %v3705, %v2950
        %v3738 = vsel %vm1708, %v3706, %v2952
        %v3739 = vsel %vm1708, %v3707, %v2954
        %v3740 = vsel %vm1708, %v3708, %v2956
        %v3741 = vsel %vm1708, %v3709, %v2958
        %v3742 = vsel %vm1708, %v3710, %v2960
        %v3743 = vsel %vm1708, %v3711, %v2962
        %v3744 = vsel %vm1708, %v3712, %v2964
        %v3745 = vsel %vm1708, %v3713, %v2966
        %v3746 = vsel %vm1708, %v3714, %v2968
        %v3747 = vsel %vm1708, %v3715, %v2970
        %v3748 = vsel %vm1708, %v3716, %v2972
        %v3749 = vsel %vm1708, %v3717, %v2974
        %v3750 = vsel %vm1708, %v3718, %v2976
        %v3751 = vsel %vm1708, %v3719, %v2978
        %v3752 = vsel %vm1708, %v3720, %v2980
        %v3753 = vsel %vm1708, %v3721, %v2982
        %v3754 = vsel %vm1708, %v3722, %v2984
        %v3755 = vsel %vm1708, %v3723, %v2986
        %v3756 = vsel %vm1708, %v3724, %v2988
        %v3757 = vsel %vm1741, %v3725, %v3054
        %v3758 = vsel %vm1741, %v3726, %v3056
        %v3759 = vsel %vm1741, %v3727, %v3058
        %v3760 = vsel %vm1741, %v3728, %v3060
        %v3761 = vsel %vm1741, %v3729, %v3062
        %v3762 = vsel %vm1741, %v3730, %v3064
        %v3763 = vsel %vm1741, %v3731, %v3066
        %v3764 = vsel %vm1741, %v3732, %v3068
        %v3765 = vsel %vm1741, %v3733, %v3070
        %v3766 = vsel %vm1741, %v3734, %v3072
        %v3767 = vsel %vm1741, %v3735, %v3074
        %v3768 = vsel %vm1741, %v3736, %v3076
        %v3769 = vsel %vm1741, %v3737, %v3078
        %v3770 = vsel %vm1741, %v3738, %v3080
        %v3771 = vsel %vm1741, %v3739, %v3082
        %v3772 = vsel %vm1741, %v3740, %v3084
        %v3773 = vsel %vm1741, %v3741, %v3086
        %v3774 = vsel %vm1741, %v3742, %v3088
        %v3775 = vsel %vm1741, %v3743, %v3090
        %v3776 = vsel %vm1741, %v3744, %v3092
        %v3777 = vsel %vm1741, %v3745, %v3094
        %v3778 = vsel %vm1741, %v3746, %v3096
        %v3779 = vsel %vm1741, %v3747, %v3098
        %v3780 = vsel %vm1741, %v3748, %v3100
        %v3781 = vsel %vm1741, %v3749, %v3102
        %v3782 = vsel %vm1741, %v3750, %v3104
        %v3783 = vsel %vm1741, %v3751, %v3106
        %v3784 = vsel %vm1741, %v3752, %v3108
        %v3785 = vsel %vm1741, %v3753, %v3110
        %v3786 = vsel %vm1741, %v3754, %v3112
        %v3787 = vsel %vm1741, %v3755, %v3114
        %v3788 = vsel %vm1741, %v3756, %v3116
        %v3789 = vsel %vm1774, %v3757, %v3182
        %v3790 = vsel %vm1774, %v3758, %v3184
        %v3791 = vsel %vm1774, %v3759, %v3186
        %v3792 = vsel %vm1774, %v3760, %v3188
        %v3793 = vsel %vm1774, %v3761, %v3190
        %v3794 = vsel %vm1774, %v3762, %v3192
        %v3795 = vsel %vm1774, %v3763, %v3194
        %v3796 = vsel %vm1774, %v3764, %v3196
        %v3797 = vsel %vm1774, %v3765, %v3198
        %v3798 = vsel %vm1774, %v3766, %v3200
        %v3799 = vsel %vm1774, %v3767, %v3202
        %v3800 = vsel %vm1774, %v3768, %v3204
        %v3801 = vsel %vm1774, %v3769, %v3206
        %v3802 = vsel %vm1774, %v3770, %v3208
        %v3803 = vsel %vm1774, %v3771, %v3210
        %v3804 = vsel %vm1774, %v3772, %v3212
        %v3805 = vsel %vm1774, %v3773, %v3214
        %v3806 = vsel %vm1774, %v3774, %v3216
        %v3807 = vsel %vm1774, %v3775, %v3218
        %v3808 = vsel %vm1774, %v3776, %v3220
        %v3809 = vsel %vm1774, %v3777, %v3222
        %v3810 = vsel %vm1774, %v3778, %v3224
        %v3811 = vsel %vm1774, %v3779, %v3226
        %v3812 = vsel %vm1774, %v3780, %v3228
        %v3813 = vsel %vm1774, %v3781, %v3230
        %v3814 = vsel %vm1774, %v3782, %v3232
        %v3815 = vsel %vm1774, %v3783, %v3234
        %v3816 = vsel %vm1774, %v3784, %v3236
        %v3817 = vsel %vm1774, %v3785, %v3238
        %v3818 = vsel %vm1774, %v3786, %v3240
        %v3819 = vsel %vm1774, %v3787, %v3242
        %v3820 = vsel %vm1774, %v3788, %v3244
        %v3821 = vsel %vm1807, %v3789, %v3310
        %v3822 = vsel %vm1807, %v3790, %v3312
        %v3823 = vsel %vm1807, %v3791, %v3314
        %v3824 = vsel %vm1807, %v3792, %v3316
        %v3825 = vsel %vm1807, %v3793, %v3318
        %v3826 = vsel %vm1807, %v3794, %v3320
        %v3827 = vsel %vm1807, %v3795, %v3322
        %v3828 = vsel %vm1807, %v3796, %v3324
        %v3829 = vsel %vm1807, %v3797, %v3326
        %v3830 = vsel %vm1807, %v3798, %v3328
        %v3831 = vsel %vm1807, %v3799, %v3330
        %v3832 = vsel %vm1807, %v3800, %v3332
        %v3833 = vsel %vm1807, %v3801, %v3334
        %v3834 = vsel %vm1807, %v3802, %v3336
        %v3835 = vsel %vm1807, %v3803, %v3338
        %v3836 = vsel %vm1807, %v3804, %v3340
        %v3837 = vsel %vm1807, %v3805, %v3342
        %v3838 = vsel %vm1807, %v3806, %v3344
        %v3839 = vsel %vm1807, %v3807, %v3346
        %v3840 = vsel %vm1807, %v3808, %v3348
        %v3841 = vsel %vm1807, %v3809, %v3350
        %v3842 = vsel %vm1807, %v3810, %v3352
        %v3843 = vsel %vm1807, %v3811, %v3354
        %v3844 = vsel %vm1807, %v3812, %v3356
        %v3845 = vsel %vm1807, %v3813, %v3358
        %v3846 = vsel %vm1807, %v3814, %v3360
        %v3847 = vsel %vm1807, %v3815, %v3362
        %v3848 = vsel %vm1807, %v3816, %v3364
        %v3849 = vsel %vm1807, %v3817, %v3366
        %v3850 = vsel %vm1807, %v3818, %v3368
        %v3851 = vsel %vm1807, %v3819, %v3370
        %v3852 = vsel %vm1807, %v3820, %v3372
        %v3853 = vsel %vm1840, %v3821, %v3438
        %v3854 = vsel %vm1840, %v3822, %v3440
        %v3855 = vsel %vm1840, %v3823, %v3442
        %v3856 = vsel %vm1840, %v3824, %v3444
        %v3857 = vsel %vm1840, %v3825, %v3446
        %v3858 = vsel %vm1840, %v3826, %v3448
        %v3859 = vsel %vm1840, %v3827, %v3450
        %v3860 = vsel %vm1840, %v3828, %v3452
        %v3861 = vsel %vm1840, %v3829, %v3454
        %v3862 = vsel %vm1840, %v3830, %v3456
        %v3863 = vsel %vm1840, %v3831, %v3458
        %v3864 = vsel %vm1840, %v3832, %v3460
        %v3865 = vsel %vm1840, %v3833, %v3462
        %v3866 = vsel %vm1840, %v3834, %v3464
        %v3867 = vsel %vm1840, %v3835, %v3466
        %v3868 = vsel %vm1840, %v3836, %v3468
        %v3869 = vsel %vm1840, %v3837, %v3470
        %v3870 = vsel %vm1840, %v3838, %v3472
        %v3871 = vsel %vm1840, %v3839, %v3474
        %v3872 = vsel %vm1840, %v3840, %v3476
        %v3873 = vsel %vm1840, %v3841, %v3478
        %v3874 = vsel %vm1840, %v3842, %v3480
        %v3875 = vsel %vm1840, %v3843, %v3482
        %v3876 = vsel %vm1840, %v3844, %v3484
        %v3877 = vsel %vm1840, %v3845, %v3486
        %v3878 = vsel %vm1840, %v3846, %v3488
        %v3879 = vsel %vm1840, %v3847, %v3490
        %v3880 = vsel %vm1840, %v3848, %v3492
        %v3881 = vsel %vm1840, %v3849, %v3494
        %v3882 = vsel %vm1840, %v3850, %v3496
        %v3883 = vsel %vm1840, %v3851, %v3498
        %v3884 = vsel %vm1840, %v3852, %v3500
        %v3885 = vsel %vm1873, %v3853, %v3566
        %v3886 = vsel %vm1873, %v3854, %v3568
        %v3887 = vsel %vm1873, %v3855, %v3570
        %v3888 = vsel %vm1873, %v3856, %v3572
        %v3889 = vsel %vm1873, %v3857, %v3574
        %v3890 = vsel %vm1873, %v3858, %v3576
        %v3891 = vsel %vm1873, %v3859, %v3578
        %v3892 = vsel %vm1873, %v3860, %v3580
        %v3893 = vsel %vm1873, %v3861, %v3582
        %v3894 = vsel %vm1873, %v3862, %v3584
        %v3895 = vsel %vm1873, %v3863, %v3586
        %v3896 = vsel %vm1873, %v3864, %v3588
        %v3897 = vsel %vm1873, %v3865, %v3590
        %v3898 = vsel %vm1873, %v3866, %v3592
        %v3899 = vsel %vm1873, %v3867, %v3594
        %v3900 = vsel %vm1873, %v3868, %v3596
        %v3901 = vsel %vm1873, %v3869, %v3598
        %v3902 = vsel %vm1873, %v3870, %v3600
        %v3903 = vsel %vm1873, %v3871, %v3602
        %v3904 = vsel %vm1873, %v3872, %v3604
        %v3905 = vsel %vm1873, %v3873, %v3606
        %v3906 = vsel %vm1873, %v3874, %v3608
        %v3907 = vsel %vm1873, %v3875, %v3610
        %v3908 = vsel %vm1873, %v3876, %v3612
        %v3909 = vsel %vm1873, %v3877, %v3614
        %v3910 = vsel %vm1873, %v3878, %v3616
        %v3911 = vsel %vm1873, %v3879, %v3618
        %v3912 = vsel %vm1873, %v3880, %v3620
        %v3913 = vsel %vm1873, %v3881, %v3622
        %v3914 = vsel %vm1873, %v3882, %v3624
        %v3915 = vsel %vm1873, %v3883, %v3626
        %v3916 = vsel %vm1873, %v3884, %v3628
        %v3917 = vld [vmem:[%s3] sm:$0xff]
        %v3918 = vld [vmem:[%s3 + $0x8] sm:$0xff]
        %v3919 = vld [vmem:[%s4] sm:$0xff]
        %v3920 = vld [vmem:[%s4 + $0x8] sm:$0xff]
        %3922 = vset.pattern.permute.xlu0 0
        %3923 = vperm.xlu0 %3922, %v3919
        %v3924 = vpop.permute.xlu0 %3923
        %3927 = vset.pattern.permute.xlu0 0
        %3928 = vperm.xlu0 %3927, %v3920
        %v3929 = vpop.permute.xlu0 %3928
        %v3932 = vsel %vm1922, %v3917, 0
        %v3935 = vsel %vm1922, %v3918, 0
        %v3938 = vsel %vm1922, %v3885, 0
        %v3941 = vsel %vm1922, %v3886, 0
        %v3944 = vsel %vm1922, %v3887, 0
        %v3947 = vsel %vm1922, %v3888, 0
        %v3950 = vsel %vm1922, %v3889, 0
        %v3953 = vsel %vm1922, %v3890, 0
        %v3956 = vsel %vm1922, %v3891, 0
        %v3959 = vsel %vm1922, %v3892, 0
        %v3962 = vsel %vm1922, %v3893, 0
        %v3965 = vsel %vm1922, %v3894, 0
        %v3968 = vsel %vm1922, %v3895, 0
        %v3971 = vsel %vm1922, %v3896, 0
        %v3974 = vsel %vm1922, %v3897, 0
        %v3977 = vsel %vm1922, %v3898, 0
        %v3980 = vsel %vm1922, %v3899, 0
        %v3983 = vsel %vm1922, %v3900, 0
        %v3986 = vsel %vm1922, %v3901, 0
        %v3989 = vsel %vm1922, %v3902, 0
        %v3992 = vsel %vm1922, %v3903, 0
        %v3995 = vsel %vm1922, %v3904, 0
        %v3998 = vsel %vm1922, %v3905, 0
        %v4001 = vsel %vm1922, %v3906, 0
        %v4004 = vsel %vm1922, %v3907, 0
        %v4007 = vsel %vm1922, %v3908, 0
        %v4010 = vsel %vm1922, %v3909, 0
        %v4013 = vsel %vm1922, %v3910, 0
        %v4016 = vsel %vm1922, %v3911, 0
        %v4019 = vsel %vm1922, %v3912, 0
        %v4022 = vsel %vm1922, %v3913, 0
        %v4025 = vsel %vm1922, %v3914, 0
        %v4028 = vsel %vm1922, %v3915, 0
        %v4031 = vsel %vm1922, %v3916, 0
        %4033 = vmatprep.subr.mxu0 0.0
        %4034 = vmatpush1.xpose.msra.mxu0 %v3983
        %4035 = vmatprep.subr.mxu0 0.0
        %4036 = vmatpush1.xpose.msra.mxu0 %v3980
        %4037 = vmatprep.subr.mxu0 0.0
        %4038 = vmatpush1.xpose.msra.mxu0 %v3977
        %4039 = vmatprep.subr.mxu0 0.0
        %4040 = vmatpush1.xpose.msra.mxu0 %v3974
        %4041 = vmatprep.subr.mxu0 0.0
        %4042 = vmatpush1.xpose.msra.mxu0 %v3971
        %4043 = vmatprep.subr.mxu0 0.0
        %4044 = vmatpush1.xpose.msra.mxu0 %v3968
        %4045 = vmatprep.subr.mxu0 0.0
        %4046 = vmatpush1.xpose.msra.mxu0 %v3965
        %4047 = vmatprep.subr.mxu0 0.0
        %4048 = vmatpush1.xpose.msra.mxu0 %v3962
        %4049 = vmatprep.subr.mxu0 0.0
        %4050 = vmatpush1.xpose.msra.mxu0 %v3959
        %4051 = vmatprep.subr.mxu0 0.0
        %4052 = vmatpush1.xpose.msra.mxu0 %v3956
        %4053 = vmatprep.subr.mxu0 0.0
        %4054 = vmatpush1.xpose.msra.mxu0 %v3953
        %4055 = vmatprep.subr.mxu0 0.0
        %4056 = vmatpush1.xpose.msra.mxu0 %v3950
        %4057 = vmatprep.subr.mxu0 0.0
        %4058 = vmatpush1.xpose.msra.mxu0 %v3947
        %4059 = vmatprep.subr.mxu0 0.0
        %4060 = vmatpush1.xpose.msra.mxu0 %v3944
        %4061 = vmatprep.subr.mxu0 0.0
        %4062 = vmatpush1.xpose.msra.mxu0 %v3941
        %4063 = vmatprep.subr.mxu0 0.0
        %4064 = vmatpush1.xpose.msra.mxu0 %v3938
        %4065 = vmatprep.subr.mxu0 0.0
        %4066 = vmatpush2.xpose.msra.mxu0 %v4031
        %4067 = vmatprep.subr.mxu0 0.0
        %4068 = vmatpush2.xpose.msra.mxu0 %v4028
        %4069 = vmatprep.subr.mxu0 0.0
        %4070 = vmatpush2.xpose.msra.mxu0 %v4025
        %4071 = vmatprep.subr.mxu0 0.0
        %4072 = vmatpush2.xpose.msra.mxu0 %v4022
        %4073 = vmatprep.subr.mxu0 0.0
        %4074 = vmatpush2.xpose.msra.mxu0 %v4019
        %4075 = vmatprep.subr.mxu0 0.0
        %4076 = vmatpush2.xpose.msra.mxu0 %v4016
        %4077 = vmatprep.subr.mxu0 0.0
        %4078 = vmatpush2.xpose.msra.mxu0 %v4013
        %4079 = vmatprep.subr.mxu0 0.0
        %4080 = vmatpush2.xpose.msra.mxu0 %v4010
        %4081 = vmatprep.subr.mxu0 0.0
        %4082 = vmatpush2.xpose.msra.mxu0 %v4007
        %4083 = vmatprep.subr.mxu0 0.0
        %4084 = vmatpush2.xpose.msra.mxu0 %v4004
        %4085 = vmatprep.subr.mxu0 0.0
        %4086 = vmatpush2.xpose.msra.mxu0 %v4001
        %4087 = vmatprep.subr.mxu0 0.0
        %4088 = vmatpush2.xpose.msra.mxu0 %v3998
        %4089 = vmatprep.subr.mxu0 0.0
        %4090 = vmatpush2.xpose.msra.mxu0 %v3995
        %4091 = vmatprep.subr.mxu0 0.0
        %4092 = vmatpush2.xpose.msra.mxu0 %v3992
        %4093 = vmatprep.subr.mxu0 0.0
        %4094 = vmatpush2.xpose.msra.mxu0 %v3989
        %4095 = vmatprep.subr.mxu0 0.0
        %4096 = vmatpush2.xpose.msra.mxu0 %v3986
        %4097 = vmatprep.mubr.f32.mxu0 0.0
        %4098 = vmatmul.mubr.f32.gmra.mxu0 %v3932
        %v4099 = vpop.f32.mrf.mxu0
        %v4100 = vadd.f32 %v3924, %v4099
        %v4101 = vpop.f32.mrf.mxu0
        %v4102 = vadd.f32 %v3924, %v4101
        %4103 = vmatprep.mubr.f32.mxu0 0.0
        %4104 = vmatmul.mubr.f32.gmra.mxu0 %v3935
        %v4105 = vpop.f32.mrf.mxu0
        %v4106 = vadd.f32 %v3929, %v4105
        %v4107 = vpop.f32.mrf.mxu0
        %v4108 = vadd.f32 %v3929, %v4107
        %4109 = vdwg.mxu0
        %v4110 = vmax.f32 %v4100, 0.0
        %v4111 = vmax.f32 %v4102, 0.0
        %v4112 = vmax.f32 %v4106, 0.0
        %v4113 = vmax.f32 %v4108, 0.0
        %4114 = vst [vmem:[%s217] sm:$0xff] %v4110
        %4115 = vst [vmem:[%s217 + $0x8] sm:$0xff] %v4111
        %4116 = vst [vmem:[%s217 + $0x10] sm:$0xff] %v4112
        %4117 = vst [vmem:[%s217 + $0x18] sm:$0xff] %v4113
        %s4118 = sand.u32 %s137, 1
        %s4119 = scalar_lea.sflag [#allocation5], %s4118
        %s4120 = sand.u32 %s137, 1
        %s4121 = smul.addr %s4120, 32
        %s4122 = scalar_lea.vmem [#allocation4], %s4121
        // Predicated region
        $region41: #{tpu_custom_call.1} parent=39 // pred_check
          %p4123 = pneg %p147
        $region42: #{tpu_custom_call.1} parent=39 // pred_check_branch
          %4125 = sbr.rel (%p4123) target = $region44
        $region43: #{tpu_custom_call.1} parent=39 // pred_region
          %s4127 = ssub.s32 512, 512
          %4128 = vsyncadd %s4119, %s4127
          %s4129 = smul.addr %s19, 4
          %s4130 = smul.addr %s4129, 128
          %s4131 = scalar_lea.hbm %s5, %s4130
          %s4132 = sshll.u32 %s4122, 4
          %s4133 = int_to_ptr.vmem [resolvable:$true] %s4132
          %4138 = dma.vmem_to_hbm [thread:$0]  %s4133, 512, %s4131, %s4119, 256, 256, 16
        $region44: #{tpu_custom_call.1} parent=39 // pred_fallthru
          _
      $region40: #{tpu_custom_call.1} parent=5 // pred_fallthru
        _
      %p4139 = scmp.le.s32.totalorder 2, %s14
      // Predicated region
      $region45: #{tpu_custom_call.1} parent=5 // pred_check
        %p4140 = pneg %p4139
      $region46: #{tpu_custom_call.1} parent=5 // pred_check_branch
        %4142 = sbr.rel (%p4140) target = $region48
      $region47: #{tpu_custom_call.1} parent=5 // pred_region
        %s4143 = ssub.s32 %s14, 2
        // Predicated region
        $region49: #{tpu_custom_call.1} parent=47 // pred_check
          %p4144 = pneg %p153
        $region50: #{tpu_custom_call.1} parent=47 // pred_check_branch
          %4146 = sbr.rel (%p4144) target = $region52
        $region51: #{tpu_custom_call.1} parent=47 // pred_region
          %s4147 = sand.u32 %s138, 1
          %s4148 = scalar_lea.sflag [#allocation5], %s4147
          %s4149 = sand.u32 %s138, 1
          %s4150 = smul.addr %s4149, 32
          %s4151 = scalar_lea.vmem [#allocation4], %s4150
          %4152 = dma.done %s4148, 512
        $region52: #{tpu_custom_call.1} parent=47 // pred_fallthru
          _
      $region48: #{tpu_custom_call.1} parent=5 // pred_fallthru
        _
    $region6: #{tpu_custom_call.1} parent=1 // loop_footer
      %s18 = sadd.s32 1, %s14
    $region7: #{tpu_custom_call.1} parent=1 // loop_footer_branch
      %13 = sbr.rel target = $region3
    $region8: #{tpu_custom_call.1} parent=1 // loop_exit
      _
    %4153 = vsyncpa [#allocation5], 1
    %s4154 = scalar_lea.sflag [#allocation5], 1
    %4155 = vsyncpa %s4154, 1

</llo_original>
